<compile_context>
chip_gen: v5e
topology: v5e:2x2
jax: 0.10.0
libtpu: 0.0.40
codegen_flags: <defaults>
</compile_context>

<pallas_src>
import jax
import jax.numpy as jnp
import numpy as np
from jax.experimental import pallas as pl
from jax.experimental.pallas import tpu as pltpu

# ------------------------- model hyper-parameters (small) -------------------
FEATURE_DIM = 128
HIDDEN_SIZE = 128
FC_DIM = 128
NUM_CLASSES = 2
OUT_PAD = 128           # lane-dense padded output width (kernel-side)
NUM_LAYERS = 3          # kernel specialized for 3 layers (module default)
N_BATCH = 8
T_SEQ = 8


# ------------------------------- Pallas kernel ------------------------------
def _lstm_kernel(len_ref, x_ref,
                 w_ih0_ref, w_hh0_ref, b0_ref,
                 w1_ref, b1_ref,
                 w2_ref, b2_ref,
                 fc1_w_ref, fc1_b_ref, fc2_w_ref, fc2_b_ref,
                 out_ref,
                 x0_ref):
    N = len_ref.shape[0]
    TN = x_ref.shape[0]
    T = TN // N
    H = w_hh0_ref.shape[0]

    lengths = len_ref[...]                                   # (N, 1) int32

    # ---- layer-0 input projection hoisted out of the recurrence -------------
    # one (T*N, F) @ (F, 4H) bf16 MXU call, f32 accumulation, bias folded in.
    # Result lives in a VMEM scratch; only one (N, 4H) slab is read per step,
    # so the 128 KB value is never live across the unrolled loop.
    x0_ref[...] = (jnp.dot(x_ref[...], w_ih0_ref[...],
                           preferred_element_type=jnp.float32)
                   + b0_ref[...])

    # ---- loop-invariant recurrent weights / biases, loaded once -------------
    w_hh0 = w_hh0_ref[...]                                   # (H, 4H)  bf16
    w1 = w1_ref[...]                                         # (2H, 4H) bf16
    w2 = w2_ref[...]                                         # (2H, 4H) bf16
    b1 = b1_ref[...]                                         # (1, 4H)  f32
    b2 = b2_ref[...]                                         # (1, 4H)  f32

    def act(gates):
        # gate order (i, f, o, g): one EUP tanh over the 3H sigmoid slab
        # (sigmoid(x) == 0.5*tanh(0.5*x)+0.5), one tanh over the last H slab.
        sig = jnp.tanh(gates[:, :3 * H] * 0.5) * 0.5 + 0.5
        i = sig[:, 0 * H:1 * H]
        f = sig[:, 1 * H:2 * H]
        o = sig[:, 2 * H:3 * H]
        g = jnp.tanh(gates[:, 3 * H:])
        return i, f, o, g

    zeros = jnp.zeros((N, H), jnp.float32)
    h0 = c0 = h1 = c1 = h2 = c2 = zeros

    # Statically unrolled time loop (T is small and static): exposes the
    # layer/time wavefront to the scheduler without explicit restructuring.
    for t in range(T):
        # packed-sequence semantics: state frozen once t >= length_i
        valid = t < lengths                                  # (N, 1) bool

        # ---- layer 0: input term precomputed, only the H-recurrence GEMM ----
        g0 = x0_ref[t * N:(t + 1) * N, :] + jnp.dot(
            h0.astype(jnp.bfloat16), w_hh0,
            preferred_element_type=jnp.float32)
        i0, f0, o0, gg0 = act(g0)
        c0n = f0 * c0 + i0 * gg0
        h0n = o0 * jnp.tanh(c0n)
        h0 = jnp.where(valid, h0n, h0)
        c0 = jnp.where(valid, c0n, c0)

        # ---- layer 1: single fused (N, 2H) @ (2H, 4H) gate GEMM (K = 256) ---
        in1 = jnp.concatenate([h0, h1], axis=1).astype(jnp.bfloat16)
        g1 = jnp.dot(in1, w1, preferred_element_type=jnp.float32) + b1
        i1, f1, o1, gg1 = act(g1)
        c1n = f1 * c1 + i1 * gg1
        h1n = o1 * jnp.tanh(c1n)
        h1 = jnp.where(valid, h1n, h1)
        c1 = jnp.where(valid, c1n, c1)

        # ---- layer 2 ---------------------------------------------------------
        in2 = jnp.concatenate([h1, h2], axis=1).astype(jnp.bfloat16)
        g2 = jnp.dot(in2, w2, preferred_element_type=jnp.float32) + b2
        i2, f2, o2, gg2 = act(g2)
        c2n = f2 * c2 + i2 * gg2
        h2n = o2 * jnp.tanh(c2n)
        h2 = jnp.where(valid, h2n, h2)
        c2 = jnp.where(valid, c2n, c2)

    # pad_packed_sequence output at t = max(lengths) - 1: nonzero only for
    # sequences of maximal length; their frozen final state equals the hidden
    # state at that timestep.
    max_len = jnp.max(lengths)
    last = jnp.where(lengths == max_len, h2, 0.0).astype(jnp.bfloat16)

    # ---- FC head: bf16 operands, f32 accumulation, lane-dense output --------
    y = (jnp.dot(last, fc1_w_ref[...], preferred_element_type=jnp.float32)
         + fc1_b_ref[...])
    y = jnp.maximum(y, 0.0).astype(jnp.bfloat16)
    out_ref[...] = (jnp.dot(y, fc2_w_ref[...], preferred_element_type=jnp.float32)
                    + fc2_b_ref[...])


# -------------------------- one-time weight preparation ----------------------
def prepare_params(params):
    """Hoisted out of the inference path: transpose, gate reorder (i,f,g,o ->
    i,f,o,g), layer-1/2 gate-GEMM fusion, bf16 casts, fc2 lane padding.
    Call once; pass the result to lstm_forward."""
    H = HIDDEN_SIZE
    (w_ih0, w_hh0, b_ih0, b_hh0,
     w_ih1, w_hh1, b_ih1, b_hh1,
     w_ih2, w_hh2, b_ih2, b_hh2,
     fc1_w, fc1_b, fc2_w, fc2_b) = params

    def reorder(m):
        # gate columns: PyTorch (i, f, g, o) -> kernel (i, f, o, g)
        return jnp.concatenate([m[:, :2 * H], m[:, 3 * H:], m[:, 2 * H:3 * H]],
                               axis=1)

    def prep(w_ih, w_hh, b_ih, b_hh):
        w_ih_t = reorder(jnp.transpose(w_ih))                 # (in_dim, 4H)
        w_hh_t = reorder(jnp.transpose(w_hh))                 # (H, 4H)
        b = reorder((b_ih + b_hh).reshape(1, 4 * H))          # (1, 4H)
        return w_ih_t, w_hh_t, b

    wi0, wh0, b0 = prep(w_ih0, w_hh0, b_ih0, b_hh0)
    wi1, wh1, b1 = prep(w_ih1, w_hh1, b_ih1, b_hh1)
    wi2, wh2, b2 = prep(w_ih2, w_hh2, b_ih2, b_hh2)

    # fuse the two gate GEMMs of layers 1/2 into one K = 2H contraction.
    w1f = jnp.concatenate([wi1, wh1], axis=0).astype(jnp.bfloat16)   # (2H, 4H)
    w2f = jnp.concatenate([wi2, wh2], axis=0).astype(jnp.bfloat16)

    # lane-dense output: pad fc2 output columns 2 -> 128 with zeros.
    fc2_w_p = jnp.zeros((FC_DIM, OUT_PAD), jnp.float32)
    fc2_w_p = fc2_w_p.at[:, :NUM_CLASSES].set(jnp.transpose(fc2_w))
    fc2_b_p = jnp.zeros((1, OUT_PAD), jnp.float32)
    fc2_b_p = fc2_b_p.at[:, :NUM_CLASSES].set(fc2_b.reshape(1, -1))

    prepared = (wi0.astype(jnp.bfloat16), wh0.astype(jnp.bfloat16), b0,
                w1f, b1, w2f, b2,
                jnp.transpose(fc1_w).astype(jnp.bfloat16), fc1_b.reshape(1, -1),
                fc2_w_p.astype(jnp.bfloat16), fc2_b_p)
    # materialize now so nothing is re-derived per call
    return tuple(jax.block_until_ready(p) for p in prepared)


# ----------------------------------- wrapper --------------------------------
@jax.jit
def lstm_forward(x_rnn, x_lengths, prepared):
    """x_rnn: (N, T, F) float32 batch-first, x_lengths: (N,) int32,
    prepared: output of prepare_params (already transposed/fused/bf16)."""
    N, T, F = x_rnn.shape
    (wi0, wh0, b0, w1f, b1, w2f, b2,
     fc1_w, fc1_b, fc2_w, fc2_b) = prepared

    # time-major flattened input: row slab [t*N:(t+1)*N] is timestep t.
    x_tm = jnp.transpose(x_rnn, (1, 0, 2)).reshape(T * N, F).astype(jnp.bfloat16)
    lens = x_lengths.reshape(N, 1).astype(jnp.int32)

    inputs = [lens, x_tm,
              wi0, wh0, b0,
              w1f, b1, w2f, b2,
              fc1_w, fc1_b, fc2_w, fc2_b]

    vmem = pl.BlockSpec(memory_space=pltpu.MemorySpace.VMEM)
    out = pl.pallas_call(
        _lstm_kernel,
        out_shape=jax.ShapeDtypeStruct((N, OUT_PAD), jnp.float32),
        in_specs=[vmem] * len(inputs),
        out_specs=vmem,
        scratch_shapes=[pltpu.VMEM((T * N, 4 * HIDDEN_SIZE), jnp.float32)],
    )(*inputs)
    return out[:, :NUM_CLASSES]


# ----------------------------- parameter creation ---------------------------
def make_params(key):
    """PyTorch-convention LSTM + FC parameters (gate order i, f, g, o)."""
    scale = 1.0 / np.sqrt(HIDDEN_SIZE)
    keys = jax.random.split(key, 16)
    k = iter(keys)

    def u(kk, shape):
        return jax.random.uniform(kk, shape, jnp.float32, -scale, scale)

    params = []
    in_dims = [FEATURE_DIM, HIDDEN_SIZE, HIDDEN_SIZE]
    for layer in range(NUM_LAYERS):
        params += [u(next(k), (4 * HIDDEN_SIZE, in_dims[layer])),   # weight_ih
                   u(next(k), (4 * HIDDEN_SIZE, HIDDEN_SIZE)),      # weight_hh
                   u(next(k), (4 * HIDDEN_SIZE,)),                  # bias_ih
                   u(next(k), (4 * HIDDEN_SIZE,))]                  # bias_hh
    params += [u(next(k), (FC_DIM, HIDDEN_SIZE)), u(next(k), (FC_DIM,)),
               u(next(k), (NUM_CLASSES, FC_DIM)), u(next(k), (NUM_CLASSES,))]
    return params


# --------------------------- plain-JAX reference ----------------------------
def ref_forward(x_rnn, x_lengths, params):
    (w_ih0, w_hh0, b_ih0, b_hh0,
     w_ih1, w_hh1, b_ih1, b_hh1,
     w_ih2, w_hh2, b_ih2, b_hh2,
     fc1_w, fc1_b, fc2_w, fc2_b) = params
    N, T, F = x_rnn.shape
    H = HIDDEN_SIZE
    lens = x_lengths.reshape(N, 1).astype(jnp.int32)

    def cell(x_t, h, c, w_ih, w_hh, b_ih, b_hh, valid):
        g = x_t @ w_ih.T + h @ w_hh.T + b_ih + b_hh
        i = jax.nn.sigmoid(g[:, :H])
        f = jax.nn.sigmoid(g[:, H:2 * H])
        gg = jnp.tanh(g[:, 2 * H:3 * H])
        o = jax.nn.sigmoid(g[:, 3 * H:])
        c_new = f * c + i * gg
        h_new = o * jnp.tanh(c_new)
        return jnp.where(valid, h_new, h), jnp.where(valid, c_new, c)

    layers = [(w_ih0, w_hh0, b_ih0, b_hh0),
              (w_ih1, w_hh1, b_ih1, b_hh1),
              (w_ih2, w_hh2, b_ih2, b_hh2)]
    h = [jnp.zeros((N, H), jnp.float32) for _ in range(NUM_LAYERS)]
    c = [jnp.zeros((N, H), jnp.float32) for _ in range(NUM_LAYERS)]
    for t in range(T):
        valid = t < lens
        inp = x_rnn[:, t, :]
        for l in range(NUM_LAYERS):
            h[l], c[l] = cell(inp, h[l], c[l], *layers[l], valid)
            inp = h[l]
    last = jnp.where(lens == jnp.max(lens), h[-1], 0.0)
    y = jnp.maximum(last @ fc1_w.T + fc1_b, 0.0)
    return y @ fc2_w.T + fc2_b


# ------------------------------------ main -----------------------------------
if __name__ == "__main__":
    key = jax.random.PRNGKey(0)
    k_x, k_p = jax.random.split(key)

    x = jax.random.normal(k_x, (N_BATCH, T_SEQ, FEATURE_DIM), jnp.float32)
    lengths = jnp.array([8, 5, 8, 3, 6, 8, 2, 8], dtype=jnp.int32)   # max == T_SEQ
    params = make_params(k_p)

    prepared = prepare_params(params)          # one-time weight prep (hoisted)
    out = lstm_forward(x, lengths, prepared)
    out = jax.block_until_ready(out)

    ref = ref_forward(x, lengths, params)
    # tolerance accommodates bf16 matmul operands (recurrence + FC head);
    # state / gates / accumulation stay f32.
    np.testing.assert_allclose(np.asarray(out), np.asarray(ref), rtol=2e-2, atol=2e-2)

    print("KERNEL_OK")
</pallas_src>

<mosaic_0001>
module attributes {stable_mosaic.version = 11 : i64} {
  func.func @_lstm_kernel(%arg0: memref<8x1xi32, #tpu.memory_space<vmem>>, %arg1: memref<64x128xbf16, #tpu.memory_space<vmem>>, %arg2: memref<128x512xbf16, #tpu.memory_space<vmem>>, %arg3: memref<128x512xbf16, #tpu.memory_space<vmem>>, %arg4: memref<1x512xf32, #tpu.memory_space<vmem>>, %arg5: memref<256x512xbf16, #tpu.memory_space<vmem>>, %arg6: memref<1x512xf32, #tpu.memory_space<vmem>>, %arg7: memref<256x512xbf16, #tpu.memory_space<vmem>>, %arg8: memref<1x512xf32, #tpu.memory_space<vmem>>, %arg9: memref<128x128xbf16, #tpu.memory_space<vmem>>, %arg10: memref<1x128xf32, #tpu.memory_space<vmem>>, %arg11: memref<128x128xbf16, #tpu.memory_space<vmem>>, %arg12: memref<1x128xf32, #tpu.memory_space<vmem>>, %arg13: memref<8x128xf32, #tpu.memory_space<vmem>>, %arg14: memref<64x512xf32, #tpu.memory_space<vmem>>) attributes {dimension_semantics = [], scalar_prefetch = 0 : i64, scratch_operands = 1 : i64, tpu.core_type = #tpu.core_type<tc>} {
    %c0 = arith.constant 0 : index
    %c0_0 = arith.constant 0 : index
    %0 = vector.load %arg0[%c0, %c0_0] : memref<8x1xi32, #tpu.memory_space<vmem>>, vector<8x1xi32>
    %c0_1 = arith.constant 0 : index
    %c0_2 = arith.constant 0 : index
    %1 = vector.load %arg1[%c0_1, %c0_2] : memref<64x128xbf16, #tpu.memory_space<vmem>>, vector<64x128xbf16>
    %c0_3 = arith.constant 0 : index
    %c0_4 = arith.constant 0 : index
    %2 = vector.load %arg2[%c0_3, %c0_4] : memref<128x512xbf16, #tpu.memory_space<vmem>>, vector<128x512xbf16>
    %cst = arith.constant dense<0.000000e+00> : vector<64x512xf32>
    %3 = tpu.matmul %1, %2, %cst {dimension_numbers = #tpu.dot_dimension_numbers<[1], [0], [0], [1], [0, 0, 1, 1], [], []>} : vector<64x128xbf16>, vector<128x512xbf16>, vector<64x512xf32> -> vector<64x512xf32>
    %c0_5 = arith.constant 0 : index
    %c0_6 = arith.constant 0 : index
    %4 = vector.load %arg4[%c0_5, %c0_6] : memref<1x512xf32, #tpu.memory_space<vmem>>, vector<1x512xf32>
    %5 = vector.broadcast %4 : vector<1x512xf32> to vector<64x512xf32>
    %6 = arith.addf %3, %5 : vector<64x512xf32>
    %c0_7 = arith.constant 0 : index
    %c0_8 = arith.constant 0 : index
    %7 = vector.load %arg14[%c0_7, %c0_8] : memref<64x512xf32, #tpu.memory_space<vmem>>, vector<64x512xf32>
    tpu.vector_store %arg14[%c0_7, %c0_8], %6 {strides = array<i32>} : memref<64x512xf32, #tpu.memory_space<vmem>>, vector<64x512xf32>,
    %c0_9 = arith.constant 0 : index
    %c0_10 = arith.constant 0 : index
    %8 = vector.load %arg3[%c0_9, %c0_10] : memref<128x512xbf16, #tpu.memory_space<vmem>>, vector<128x512xbf16>
    %c0_11 = arith.constant 0 : index
    %c0_12 = arith.constant 0 : index
    %9 = vector.load %arg5[%c0_11, %c0_12] : memref<256x512xbf16, #tpu.memory_space<vmem>>, vector<256x512xbf16>
    %c0_13 = arith.constant 0 : index
    %c0_14 = arith.constant 0 : index
    %10 = vector.load %arg7[%c0_13, %c0_14] : memref<256x512xbf16, #tpu.memory_space<vmem>>, vector<256x512xbf16>
    %c0_15 = arith.constant 0 : index
    %c0_16 = arith.constant 0 : index
    %11 = vector.load %arg6[%c0_15, %c0_16] : memref<1x512xf32, #tpu.memory_space<vmem>>, vector<1x512xf32>
    %c0_17 = arith.constant 0 : index
    %c0_18 = arith.constant 0 : index
    %12 = vector.load %arg8[%c0_17, %c0_18] : memref<1x512xf32, #tpu.memory_space<vmem>>, vector<1x512xf32>
    %cst_19 = arith.constant 0.000000e+00 : f32
    %13 = vector.broadcast %cst_19 : f32 to vector<8x128xf32>
    %c0_i32 = arith.constant 0 : i32
    %14 = vector.broadcast %c0_i32 : i32 to vector<8x1xi32>
    %15 = arith.cmpi sgt, %0, %14 : vector<8x1xi32>
    %c0_20 = arith.constant 0 : index
    %c0_21 = arith.constant 0 : index
    %16 = vector.load %arg14[%c0_20, %c0_21] : memref<64x512xf32, #tpu.memory_space<vmem>>, vector<8x512xf32>
    %17 = arith.truncf %13 : vector<8x128xf32> to vector<8x128xbf16>
    %cst_22 = arith.constant dense<0.000000e+00> : vector<8x512xf32>
    %18 = tpu.matmul %17, %8, %cst_22 {dimension_numbers = #tpu.dot_dimension_numbers<[1], [0], [0], [1], [0, 0, 1, 1], [], []>} : vector<8x128xbf16>, vector<128x512xbf16>, vector<8x512xf32> -> vector<8x512xf32>
    %19 = arith.addf %16, %18 : vector<8x512xf32>
    %20 = vector.extract_strided_slice %19 {offsets = [0, 0], sizes = [8, 384], strides = [1, 1]} : vector<8x512xf32> to vector<8x384xf32>
    %cst_23 = arith.constant 5.000000e-01 : f32
    %21 = vector.broadcast %cst_23 : f32 to vector<8x384xf32>
    %22 = arith.mulf %20, %21 : vector<8x384xf32>
    %23 = math.tanh %22 : vector<8x384xf32>
    %cst_24 = arith.constant 5.000000e-01 : f32
    %24 = vector.broadcast %cst_24 : f32 to vector<8x384xf32>
    %25 = arith.mulf %23, %24 : vector<8x384xf32>
    %cst_25 = arith.constant 5.000000e-01 : f32
    %26 = vector.broadcast %cst_25 : f32 to vector<8x384xf32>
    %27 = arith.addf %25, %26 : vector<8x384xf32>
    %28 = vector.extract_strided_slice %27 {offsets = [0, 0], sizes = [8, 128], strides = [1, 1]} : vector<8x384xf32> to vector<8x128xf32>
    %29 = vector.extract_strided_slice %27 {offsets = [0, 128], sizes = [8, 128], strides = [1, 1]} : vector<8x384xf32> to vector<8x128xf32>
    %30 = vector.extract_strided_slice %27 {offsets = [0, 256], sizes = [8, 128], strides = [1, 1]} : vector<8x384xf32> to vector<8x128xf32>
    %31 = vector.extract_strided_slice %19 {offsets = [0, 384], sizes = [8, 128], strides = [1, 1]} : vector<8x512xf32> to vector<8x128xf32>
    %32 = math.tanh %31 : vector<8x128xf32>
    %33 = arith.mulf %29, %13 : vector<8x128xf32>
    %34 = arith.mulf %28, %32 : vector<8x128xf32>
    %35 = arith.addf %33, %34 : vector<8x128xf32>
    %36 = math.tanh %35 : vector<8x128xf32>
    %37 = arith.mulf %30, %36 : vector<8x128xf32>
    %38 = vector.shape_cast %15 : vector<8x1xi1> to vector<8x1xi1>
    %39 = vector.broadcast %38 : vector<8x1xi1> to vector<8x128xi1>
    %40 = arith.select %39, %37, %13 : vector<8x128xi1>, vector<8x128xf32>
    %41 = vector.shape_cast %15 : vector<8x1xi1> to vector<8x1xi1>
    %42 = vector.broadcast %41 : vector<8x1xi1> to vector<8x128xi1>
    %43 = arith.select %42, %35, %13 : vector<8x128xi1>, vector<8x128xf32>
    %44 = tpu.concatenate %40, %13 in 1 : vector<8x128xf32>, vector<8x128xf32> -> vector<8x256xf32>
    %45 = arith.truncf %44 : vector<8x256xf32> to vector<8x256xbf16>
    %cst_26 = arith.constant dense<0.000000e+00> : vector<8x512xf32>
    %46 = tpu.matmul %45, %9, %cst_26 {dimension_numbers = #tpu.dot_dimension_numbers<[1], [0], [0], [1], [0, 0, 1, 1], [], []>} : vector<8x256xbf16>, vector<256x512xbf16>, vector<8x512xf32> -> vector<8x512xf32>
    %47 = vector.broadcast %11 : vector<1x512xf32> to vector<8x512xf32>
    %48 = arith.addf %46, %47 : vector<8x512xf32>
    %49 = vector.extract_strided_slice %48 {offsets = [0, 0], sizes = [8, 384], strides = [1, 1]} : vector<8x512xf32> to vector<8x384xf32>
    %cst_27 = arith.constant 5.000000e-01 : f32
    %50 = vector.broadcast %cst_27 : f32 to vector<8x384xf32>
    %51 = arith.mulf %49, %50 : vector<8x384xf32>
    %52 = math.tanh %51 : vector<8x384xf32>
    %cst_28 = arith.constant 5.000000e-01 : f32
    %53 = vector.broadcast %cst_28 : f32 to vector<8x384xf32>
    %54 = arith.mulf %52, %53 : vector<8x384xf32>
    %cst_29 = arith.constant 5.000000e-01 : f32
    %55 = vector.broadcast %cst_29 : f32 to vector<8x384xf32>
    %56 = arith.addf %54, %55 : vector<8x384xf32>
    %57 = vector.extract_strided_slice %56 {offsets = [0, 0], sizes = [8, 128], strides = [1, 1]} : vector<8x384xf32> to vector<8x128xf32>
    %58 = vector.extract_strided_slice %56 {offsets = [0, 128], sizes = [8, 128], strides = [1, 1]} : vector<8x384xf32> to vector<8x128xf32>
    %59 = vector.extract_strided_slice %56 {offsets = [0, 256], sizes = [8, 128], strides = [1, 1]} : vector<8x384xf32> to vector<8x128xf32>
    %60 = vector.extract_strided_slice %48 {offsets = [0, 384], sizes = [8, 128], strides = [1, 1]} : vector<8x512xf32> to vector<8x128xf32>
    %61 = math.tanh %60 : vector<8x128xf32>
    %62 = arith.mulf %58, %13 : vector<8x128xf32>
    %63 = arith.mulf %57, %61 : vector<8x128xf32>
    %64 = arith.addf %62, %63 : vector<8x128xf32>
    %65 = math.tanh %64 : vector<8x128xf32>
    %66 = arith.mulf %59, %65 : vector<8x128xf32>
    %67 = vector.shape_cast %15 : vector<8x1xi1> to vector<8x1xi1>
    %68 = vector.broadcast %67 : vector<8x1xi1> to vector<8x128xi1>
    %69 = arith.select %68, %66, %13 : vector<8x128xi1>, vector<8x128xf32>
    %70 = vector.shape_cast %15 : vector<8x1xi1> to vector<8x1xi1>
    %71 = vector.broadcast %70 : vector<8x1xi1> to vector<8x128xi1>
    %72 = arith.select %71, %64, %13 : vector<8x128xi1>, vector<8x128xf32>
    %73 = tpu.concatenate %69, %13 in 1 : vector<8x128xf32>, vector<8x128xf32> -> vector<8x256xf32>
    %74 = arith.truncf %73 : vector<8x256xf32> to vector<8x256xbf16>
    %cst_30 = arith.constant dense<0.000000e+00> : vector<8x512xf32>
    %75 = tpu.matmul %74, %10, %cst_30 {dimension_numbers = #tpu.dot_dimension_numbers<[1], [0], [0], [1], [0, 0, 1, 1], [], []>} : vector<8x256xbf16>, vector<256x512xbf16>, vector<8x512xf32> -> vector<8x512xf32>
    %76 = vector.broadcast %12 : vector<1x512xf32> to vector<8x512xf32>
    %77 = arith.addf %75, %76 : vector<8x512xf32>
    %78 = vector.extract_strided_slice %77 {offsets = [0, 0], sizes = [8, 384], strides = [1, 1]} : vector<8x512xf32> to vector<8x384xf32>
    %cst_31 = arith.constant 5.000000e-01 : f32
    %79 = vector.broadcast %cst_31 : f32 to vector<8x384xf32>
    %80 = arith.mulf %78, %79 : vector<8x384xf32>
    %81 = math.tanh %80 : vector<8x384xf32>
    %cst_32 = arith.constant 5.000000e-01 : f32
    %82 = vector.broadcast %cst_32 : f32 to vector<8x384xf32>
    %83 = arith.mulf %81, %82 : vector<8x384xf32>
    %cst_33 = arith.constant 5.000000e-01 : f32
    %84 = vector.broadcast %cst_33 : f32 to vector<8x384xf32>
    %85 = arith.addf %83, %84 : vector<8x384xf32>
    %86 = vector.extract_strided_slice %85 {offsets = [0, 0], sizes = [8, 128], strides = [1, 1]} : vector<8x384xf32> to vector<8x128xf32>
    %87 = vector.extract_strided_slice %85 {offsets = [0, 128], sizes = [8, 128], strides = [1, 1]} : vector<8x384xf32> to vector<8x128xf32>
    %88 = vector.extract_strided_slice %85 {offsets = [0, 256], sizes = [8, 128], strides = [1, 1]} : vector<8x384xf32> to vector<8x128xf32>
    %89 = vector.extract_strided_slice %77 {offsets = [0, 384], sizes = [8, 128], strides = [1, 1]} : vector<8x512xf32> to vector<8x128xf32>
    %90 = math.tanh %89 : vector<8x128xf32>
    %91 = arith.mulf %87, %13 : vector<8x128xf32>
    %92 = arith.mulf %86, %90 : vector<8x128xf32>
    %93 = arith.addf %91, %92 : vector<8x128xf32>
    %94 = math.tanh %93 : vector<8x128xf32>
    %95 = arith.mulf %88, %94 : vector<8x128xf32>
    %96 = vector.shape_cast %15 : vector<8x1xi1> to vector<8x1xi1>
    %97 = vector.broadcast %96 : vector<8x1xi1> to vector<8x128xi1>
    %98 = arith.select %97, %95, %13 : vector<8x128xi1>, vector<8x128xf32>
    %99 = vector.shape_cast %15 : vector<8x1xi1> to vector<8x1xi1>
    %100 = vector.broadcast %99 : vector<8x1xi1> to vector<8x128xi1>
    %101 = arith.select %100, %93, %13 : vector<8x128xi1>, vector<8x128xf32>
    %c1_i32 = arith.constant 1 : i32
    %102 = vector.broadcast %c1_i32 : i32 to vector<8x1xi32>
    %103 = arith.cmpi sgt, %0, %102 : vector<8x1xi32>
    %c8 = arith.constant 8 : index
    %c0_34 = arith.constant 0 : index
    %104 = vector.load %arg14[%c8, %c0_34] : memref<64x512xf32, #tpu.memory_space<vmem>>, vector<8x512xf32>
    %105 = arith.truncf %40 : vector<8x128xf32> to vector<8x128xbf16>
    %cst_35 = arith.constant dense<0.000000e+00> : vector<8x512xf32>
    %106 = tpu.matmul %105, %8, %cst_35 {dimension_numbers = #tpu.dot_dimension_numbers<[1], [0], [0], [1], [0, 0, 1, 1], [], []>} : vector<8x128xbf16>, vector<128x512xbf16>, vector<8x512xf32> -> vector<8x512xf32>
    %107 = arith.addf %104, %106 : vector<8x512xf32>
    %108 = vector.extract_strided_slice %107 {offsets = [0, 0], sizes = [8, 384], strides = [1, 1]} : vector<8x512xf32> to vector<8x384xf32>
    %cst_36 = arith.constant 5.000000e-01 : f32
    %109 = vector.broadcast %cst_36 : f32 to vector<8x384xf32>
    %110 = arith.mulf %108, %109 : vector<8x384xf32>
    %111 = math.tanh %110 : vector<8x384xf32>
    %cst_37 = arith.constant 5.000000e-01 : f32
    %112 = vector.broadcast %cst_37 : f32 to vector<8x384xf32>
    %113 = arith.mulf %111, %112 : vector<8x384xf32>
    %cst_38 = arith.constant 5.000000e-01 : f32
    %114 = vector.broadcast %cst_38 : f32 to vector<8x384xf32>
    %115 = arith.addf %113, %114 : vector<8x384xf32>
    %116 = vector.extract_strided_slice %115 {offsets = [0, 0], sizes = [8, 128], strides = [1, 1]} : vector<8x384xf32> to vector<8x128xf32>
    %117 = vector.extract_strided_slice %115 {offsets = [0, 128], sizes = [8, 128], strides = [1, 1]} : vector<8x384xf32> to vector<8x128xf32>
    %118 = vector.extract_strided_slice %115 {offsets = [0, 256], sizes = [8, 128], strides = [1, 1]} : vector<8x384xf32> to vector<8x128xf32>
    %119 = vector.extract_strided_slice %107 {offsets = [0, 384], sizes = [8, 128], strides = [1, 1]} : vector<8x512xf32> to vector<8x128xf32>
    %120 = math.tanh %119 : vector<8x128xf32>
    %121 = arith.mulf %117, %43 : vector<8x128xf32>
    %122 = arith.mulf %116, %120 : vector<8x128xf32>
    %123 = arith.addf %121, %122 : vector<8x128xf32>
    %124 = math.tanh %123 : vector<8x128xf32>
    %125 = arith.mulf %118, %124 : vector<8x128xf32>
    %126 = vector.shape_cast %103 : vector<8x1xi1> to vector<8x1xi1>
    %127 = vector.broadcast %126 : vector<8x1xi1> to vector<8x128xi1>
    %128 = arith.select %127, %125, %40 : vector<8x128xi1>, vector<8x128xf32>
    %129 = vector.shape_cast %103 : vector<8x1xi1> to vector<8x1xi1>
    %130 = vector.broadcast %129 : vector<8x1xi1> to vector<8x128xi1>
    %131 = arith.select %130, %123, %43 : vector<8x128xi1>, vector<8x128xf32>
    %132 = tpu.concatenate %128, %69 in 1 : vector<8x128xf32>, vector<8x128xf32> -> vector<8x256xf32>
    %133 = arith.truncf %132 : vector<8x256xf32> to vector<8x256xbf16>
    %cst_39 = arith.constant dense<0.000000e+00> : vector<8x512xf32>
    %134 = tpu.matmul %133, %9, %cst_39 {dimension_numbers = #tpu.dot_dimension_numbers<[1], [0], [0], [1], [0, 0, 1, 1], [], []>} : vector<8x256xbf16>, vector<256x512xbf16>, vector<8x512xf32> -> vector<8x512xf32>
    %135 = vector.broadcast %11 : vector<1x512xf32> to vector<8x512xf32>
    %136 = arith.addf %134, %135 : vector<8x512xf32>
    %137 = vector.extract_strided_slice %136 {offsets = [0, 0], sizes = [8, 384], strides = [1, 1]} : vector<8x512xf32> to vector<8x384xf32>
    %cst_40 = arith.constant 5.000000e-01 : f32
    %138 = vector.broadcast %cst_40 : f32 to vector<8x384xf32>
    %139 = arith.mulf %137, %138 : vector<8x384xf32>
    %140 = math.tanh %139 : vector<8x384xf32>
    %cst_41 = arith.constant 5.000000e-01 : f32
    %141 = vector.broadcast %cst_41 : f32 to vector<8x384xf32>
    %142 = arith.mulf %140, %141 : vector<8x384xf32>
    %cst_42 = arith.constant 5.000000e-01 : f32
    %143 = vector.broadcast %cst_42 : f32 to vector<8x384xf32>
    %144 = arith.addf %142, %143 : vector<8x384xf32>
    %145 = vector.extract_strided_slice %144 {offsets = [0, 0], sizes = [8, 128], strides = [1, 1]} : vector<8x384xf32> to vector<8x128xf32>
    %146 = vector.extract_strided_slice %144 {offsets = [0, 128], sizes = [8, 128], strides = [1, 1]} : vector<8x384xf32> to vector<8x128xf32>
    %147 = vector.extract_strided_slice %144 {offsets = [0, 256], sizes = [8, 128], strides = [1, 1]} : vector<8x384xf32> to vector<8x128xf32>
    %148 = vector.extract_strided_slice %136 {offsets = [0, 384], sizes = [8, 128], strides = [1, 1]} : vector<8x512xf32> to vector<8x128xf32>
    %149 = math.tanh %148 : vector<8x128xf32>
    %150 = arith.mulf %146, %72 : vector<8x128xf32>
    %151 = arith.mulf %145, %149 : vector<8x128xf32>
    %152 = arith.addf %150, %151 : vector<8x128xf32>
    %153 = math.tanh %152 : vector<8x128xf32>
    %154 = arith.mulf %147, %153 : vector<8x128xf32>
    %155 = vector.shape_cast %103 : vector<8x1xi1> to vector<8x1xi1>
    %156 = vector.broadcast %155 : vector<8x1xi1> to vector<8x128xi1>
    %157 = arith.select %156, %154, %69 : vector<8x128xi1>, vector<8x128xf32>
    %158 = vector.shape_cast %103 : vector<8x1xi1> to vector<8x1xi1>
    %159 = vector.broadcast %158 : vector<8x1xi1> to vector<8x128xi1>
    %160 = arith.select %159, %152, %72 : vector<8x128xi1>, vector<8x128xf32>
    %161 = tpu.concatenate %157, %98 in 1 : vector<8x128xf32>, vector<8x128xf32> -> vector<8x256xf32>
    %162 = arith.truncf %161 : vector<8x256xf32> to vector<8x256xbf16>
    %cst_43 = arith.constant dense<0.000000e+00> : vector<8x512xf32>
    %163 = tpu.matmul %162, %10, %cst_43 {dimension_numbers = #tpu.dot_dimension_numbers<[1], [0], [0], [1], [0, 0, 1, 1], [], []>} : vector<8x256xbf16>, vector<256x512xbf16>, vector<8x512xf32> -> vector<8x512xf32>
    %164 = vector.broadcast %12 : vector<1x512xf32> to vector<8x512xf32>
    %165 = arith.addf %163, %164 : vector<8x512xf32>
    %166 = vector.extract_strided_slice %165 {offsets = [0, 0], sizes = [8, 384], strides = [1, 1]} : vector<8x512xf32> to vector<8x384xf32>
    %cst_44 = arith.constant 5.000000e-01 : f32
    %167 = vector.broadcast %cst_44 : f32 to vector<8x384xf32>
    %168 = arith.mulf %166, %167 : vector<8x384xf32>
    %169 = math.tanh %168 : vector<8x384xf32>
    %cst_45 = arith.constant 5.000000e-01 : f32
    %170 = vector.broadcast %cst_45 : f32 to vector<8x384xf32>
    %171 = arith.mulf %169, %170 : vector<8x384xf32>
    %cst_46 = arith.constant 5.000000e-01 : f32
    %172 = vector.broadcast %cst_46 : f32 to vector<8x384xf32>
    %173 = arith.addf %171, %172 : vector<8x384xf32>
    %174 = vector.extract_strided_slice %173 {offsets = [0, 0], sizes = [8, 128], strides = [1, 1]} : vector<8x384xf32> to vector<8x128xf32>
    %175 = vector.extract_strided_slice %173 {offsets = [0, 128], sizes = [8, 128], strides = [1, 1]} : vector<8x384xf32> to vector<8x128xf32>
    %176 = vector.extract_strided_slice %173 {offsets = [0, 256], sizes = [8, 128], strides = [1, 1]} : vector<8x384xf32> to vector<8x128xf32>
    %177 = vector.extract_strided_slice %165 {offsets = [0, 384], sizes = [8, 128], strides = [1, 1]} : vector<8x512xf32> to vector<8x128xf32>
    %178 = math.tanh %177 : vector<8x128xf32>
    %179 = arith.mulf %175, %101 : vector<8x128xf32>
    %180 = arith.mulf %174, %178 : vector<8x128xf32>
    %181 = arith.addf %179, %180 : vector<8x128xf32>
    %182 = math.tanh %181 : vector<8x128xf32>
    %183 = arith.mulf %176, %182 : vector<8x128xf32>
    %184 = vector.shape_cast %103 : vector<8x1xi1> to vector<8x1xi1>
    %185 = vector.broadcast %184 : vector<8x1xi1> to vector<8x128xi1>
    %186 = arith.select %185, %183, %98 : vector<8x128xi1>, vector<8x128xf32>
    %187 = vector.shape_cast %103 : vector<8x1xi1> to vector<8x1xi1>
    %188 = vector.broadcast %187 : vector<8x1xi1> to vector<8x128xi1>
    %189 = arith.select %188, %181, %101 : vector<8x128xi1>, vector<8x128xf32>
    %c2_i32 = arith.constant 2 : i32
    %190 = vector.broadcast %c2_i32 : i32 to vector<8x1xi32>
    %191 = arith.cmpi sgt, %0, %190 : vector<8x1xi32>
    %c16 = arith.constant 16 : index
    %c0_47 = arith.constant 0 : index
    %192 = vector.load %arg14[%c16, %c0_47] : memref<64x512xf32, #tpu.memory_space<vmem>>, vector<8x512xf32>
    %193 = arith.truncf %128 : vector<8x128xf32> to vector<8x128xbf16>
    %cst_48 = arith.constant dense<0.000000e+00> : vector<8x512xf32>
    %194 = tpu.matmul %193, %8, %cst_48 {dimension_numbers = #tpu.dot_dimension_numbers<[1], [0], [0], [1], [0, 0, 1, 1], [], []>} : vector<8x128xbf16>, vector<128x512xbf16>, vector<8x512xf32> -> vector<8x512xf32>
    %195 = arith.addf %192, %194 : vector<8x512xf32>
    %196 = vector.extract_strided_slice %195 {offsets = [0, 0], sizes = [8, 384], strides = [1, 1]} : vector<8x512xf32> to vector<8x384xf32>
    %cst_49 = arith.constant 5.000000e-01 : f32
    %197 = vector.broadcast %cst_49 : f32 to vector<8x384xf32>
    %198 = arith.mulf %196, %197 : vector<8x384xf32>
    %199 = math.tanh %198 : vector<8x384xf32>
    %cst_50 = arith.constant 5.000000e-01 : f32
    %200 = vector.broadcast %cst_50 : f32 to vector<8x384xf32>
    %201 = arith.mulf %199, %200 : vector<8x384xf32>
    %cst_51 = arith.constant 5.000000e-01 : f32
    %202 = vector.broadcast %cst_51 : f32 to vector<8x384xf32>
    %203 = arith.addf %201, %202 : vector<8x384xf32>
    %204 = vector.extract_strided_slice %203 {offsets = [0, 0], sizes = [8, 128], strides = [1, 1]} : vector<8x384xf32> to vector<8x128xf32>
    %205 = vector.extract_strided_slice %203 {offsets = [0, 128], sizes = [8, 128], strides = [1, 1]} : vector<8x384xf32> to vector<8x128xf32>
    %206 = vector.extract_strided_slice %203 {offsets = [0, 256], sizes = [8, 128], strides = [1, 1]} : vector<8x384xf32> to vector<8x128xf32>
    %207 = vector.extract_strided_slice %195 {offsets = [0, 384], sizes = [8, 128], strides = [1, 1]} : vector<8x512xf32> to vector<8x128xf32>
    %208 = math.tanh %207 : vector<8x128xf32>
    %209 = arith.mulf %205, %131 : vector<8x128xf32>
    %210 = arith.mulf %204, %208 : vector<8x128xf32>
    %211 = arith.addf %209, %210 : vector<8x128xf32>
    %212 = math.tanh %211 : vector<8x128xf32>
    %213 = arith.mulf %206, %212 : vector<8x128xf32>
    %214 = vector.shape_cast %191 : vector<8x1xi1> to vector<8x1xi1>
    %215 = vector.broadcast %214 : vector<8x1xi1> to vector<8x128xi1>
    %216 = arith.select %215, %213, %128 : vector<8x128xi1>, vector<8x128xf32>
    %217 = vector.shape_cast %191 : vector<8x1xi1> to vector<8x1xi1>
    %218 = vector.broadcast %217 : vector<8x1xi1> to vector<8x128xi1>
    %219 = arith.select %218, %211, %131 : vector<8x128xi1>, vector<8x128xf32>
    %220 = tpu.concatenate %216, %157 in 1 : vector<8x128xf32>, vector<8x128xf32> -> vector<8x256xf32>
    %221 = arith.truncf %220 : vector<8x256xf32> to vector<8x256xbf16>
    %cst_52 = arith.constant dense<0.000000e+00> : vector<8x512xf32>
    %222 = tpu.matmul %221, %9, %cst_52 {dimension_numbers = #tpu.dot_dimension_numbers<[1], [0], [0], [1], [0, 0, 1, 1], [], []>} : vector<8x256xbf16>, vector<256x512xbf16>, vector<8x512xf32> -> vector<8x512xf32>
    %223 = vector.broadcast %11 : vector<1x512xf32> to vector<8x512xf32>
    %224 = arith.addf %222, %223 : vector<8x512xf32>
    %225 = vector.extract_strided_slice %224 {offsets = [0, 0], sizes = [8, 384], strides = [1, 1]} : vector<8x512xf32> to vector<8x384xf32>
    %cst_53 = arith.constant 5.000000e-01 : f32
    %226 = vector.broadcast %cst_53 : f32 to vector<8x384xf32>
    %227 = arith.mulf %225, %226 : vector<8x384xf32>
    %228 = math.tanh %227 : vector<8x384xf32>
    %cst_54 = arith.constant 5.000000e-01 : f32
    %229 = vector.broadcast %cst_54 : f32 to vector<8x384xf32>
    %230 = arith.mulf %228, %229 : vector<8x384xf32>
    %cst_55 = arith.constant 5.000000e-01 : f32
    %231 = vector.broadcast %cst_55 : f32 to vector<8x384xf32>
    %232 = arith.addf %230, %231 : vector<8x384xf32>
    %233 = vector.extract_strided_slice %232 {offsets = [0, 0], sizes = [8, 128], strides = [1, 1]} : vector<8x384xf32> to vector<8x128xf32>
    %234 = vector.extract_strided_slice %232 {offsets = [0, 128], sizes = [8, 128], strides = [1, 1]} : vector<8x384xf32> to vector<8x128xf32>
    %235 = vector.extract_strided_slice %232 {offsets = [0, 256], sizes = [8, 128], strides = [1, 1]} : vector<8x384xf32> to vector<8x128xf32>
    %236 = vector.extract_strided_slice %224 {offsets = [0, 384], sizes = [8, 128], strides = [1, 1]} : vector<8x512xf32> to vector<8x128xf32>
    %237 = math.tanh %236 : vector<8x128xf32>
    %238 = arith.mulf %234, %160 : vector<8x128xf32>
    %239 = arith.mulf %233, %237 : vector<8x128xf32>
    %240 = arith.addf %238, %239 : vector<8x128xf32>
    %241 = math.tanh %240 : vector<8x128xf32>
    %242 = arith.mulf %235, %241 : vector<8x128xf32>
    %243 = vector.shape_cast %191 : vector<8x1xi1> to vector<8x1xi1>
    %244 = vector.broadcast %243 : vector<8x1xi1> to vector<8x128xi1>
    %245 = arith.select %244, %242, %157 : vector<8x128xi1>, vector<8x128xf32>
    %246 = vector.shape_cast %191 : vector<8x1xi1> to vector<8x1xi1>
    %247 = vector.broadcast %246 : vector<8x1xi1> to vector<8x128xi1>
    %248 = arith.select %247, %240, %160 : vector<8x128xi1>, vector<8x128xf32>
    %249 = tpu.concatenate %245, %186 in 1 : vector<8x128xf32>, vector<8x128xf32> -> vector<8x256xf32>
    %250 = arith.truncf %249 : vector<8x256xf32> to vector<8x256xbf16>
    %cst_56 = arith.constant dense<0.000000e+00> : vector<8x512xf32>
    %251 = tpu.matmul %250, %10, %cst_56 {dimension_numbers = #tpu.dot_dimension_numbers<[1], [0], [0], [1], [0, 0, 1, 1], [], []>} : vector<8x256xbf16>, vector<256x512xbf16>, vector<8x512xf32> -> vector<8x512xf32>
    %252 = vector.broadcast %12 : vector<1x512xf32> to vector<8x512xf32>
    %253 = arith.addf %251, %252 : vector<8x512xf32>
    %254 = vector.extract_strided_slice %253 {offsets = [0, 0], sizes = [8, 384], strides = [1, 1]} : vector<8x512xf32> to vector<8x384xf32>
    %cst_57 = arith.constant 5.000000e-01 : f32
    %255 = vector.broadcast %cst_57 : f32 to vector<8x384xf32>
    %256 = arith.mulf %254, %255 : vector<8x384xf32>
    %257 = math.tanh %256 : vector<8x384xf32>
    %cst_58 = arith.constant 5.000000e-01 : f32
    %258 = vector.broadcast %cst_58 : f32 to vector<8x384xf32>
    %259 = arith.mulf %257, %258 : vector<8x384xf32>
    %cst_59 = arith.constant 5.000000e-01 : f32
    %260 = vector.broadcast %cst_59 : f32 to vector<8x384xf32>
    %261 = arith.addf %259, %260 : vector<8x384xf32>
    %262 = vector.extract_strided_slice %261 {offsets = [0, 0], sizes = [8, 128], strides = [1, 1]} : vector<8x384xf32> to vector<8x128xf32>
    %263 = vector.extract_strided_slice %261 {offsets = [0, 128], sizes = [8, 128], strides = [1, 1]} : vector<8x384xf32> to vector<8x128xf32>
    %264 = vector.extract_strided_slice %261 {offsets = [0, 256], sizes = [8, 128], strides = [1, 1]} : vector<8x384xf32> to vector<8x128xf32>
    %265 = vector.extract_strided_slice %253 {offsets = [0, 384], sizes = [8, 128], strides = [1, 1]} : vector<8x512xf32> to vector<8x128xf32>
    %266 = math.tanh %265 : vector<8x128xf32>
    %267 = arith.mulf %263, %189 : vector<8x128xf32>
    %268 = arith.mulf %262, %266 : vector<8x128xf32>
    %269 = arith.addf %267, %268 : vector<8x128xf32>
    %270 = math.tanh %269 : vector<8x128xf32>
    %271 = arith.mulf %264, %270 : vector<8x128xf32>
    %272 = vector.shape_cast %191 : vector<8x1xi1> to vector<8x1xi1>
    %273 = vector.broadcast %272 : vector<8x1xi1> to vector<8x128xi1>
    %274 = arith.select %273, %271, %186 : vector<8x128xi1>, vector<8x128xf32>
    %275 = vector.shape_cast %191 : vector<8x1xi1> to vector<8x1xi1>
    %276 = vector.broadcast %275 : vector<8x1xi1> to vector<8x128xi1>
    %277 = arith.select %276, %269, %189 : vector<8x128xi1>, vector<8x128xf32>
    %c3_i32 = arith.constant 3 : i32
    %278 = vector.broadcast %c3_i32 : i32 to vector<8x1xi32>
    %279 = arith.cmpi sgt, %0, %278 : vector<8x1xi32>
    %c24 = arith.constant 24 : index
    %c0_60 = arith.constant 0 : index
    %280 = vector.load %arg14[%c24, %c0_60] : memref<64x512xf32, #tpu.memory_space<vmem>>, vector<8x512xf32>
    %281 = arith.truncf %216 : vector<8x128xf32> to vector<8x128xbf16>
    %cst_61 = arith.constant dense<0.000000e+00> : vector<8x512xf32>
    %282 = tpu.matmul %281, %8, %cst_61 {dimension_numbers = #tpu.dot_dimension_numbers<[1], [0], [0], [1], [0, 0, 1, 1], [], []>} : vector<8x128xbf16>, vector<128x512xbf16>, vector<8x512xf32> -> vector<8x512xf32>
    %283 = arith.addf %280, %282 : vector<8x512xf32>
    %284 = vector.extract_strided_slice %283 {offsets = [0, 0], sizes = [8, 384], strides = [1, 1]} : vector<8x512xf32> to vector<8x384xf32>
    %cst_62 = arith.constant 5.000000e-01 : f32
    %285 = vector.broadcast %cst_62 : f32 to vector<8x384xf32>
    %286 = arith.mulf %284, %285 : vector<8x384xf32>
    %287 = math.tanh %286 : vector<8x384xf32>
    %cst_63 = arith.constant 5.000000e-01 : f32
    %288 = vector.broadcast %cst_63 : f32 to vector<8x384xf32>
    %289 = arith.mulf %287, %288 : vector<8x384xf32>
    %cst_64 = arith.constant 5.000000e-01 : f32
    %290 = vector.broadcast %cst_64 : f32 to vector<8x384xf32>
    %291 = arith.addf %289, %290 : vector<8x384xf32>
    %292 = vector.extract_strided_slice %291 {offsets = [0, 0], sizes = [8, 128], strides = [1, 1]} : vector<8x384xf32> to vector<8x128xf32>
    %293 = vector.extract_strided_slice %291 {offsets = [0, 128], sizes = [8, 128], strides = [1, 1]} : vector<8x384xf32> to vector<8x128xf32>
    %294 = vector.extract_strided_slice %291 {offsets = [0, 256], sizes = [8, 128], strides = [1, 1]} : vector<8x384xf32> to vector<8x128xf32>
    %295 = vector.extract_strided_slice %283 {offsets = [0, 384], sizes = [8, 128], strides = [1, 1]} : vector<8x512xf32> to vector<8x128xf32>
    %296 = math.tanh %295 : vector<8x128xf32>
    %297 = arith.mulf %293, %219 : vector<8x128xf32>
    %298 = arith.mulf %292, %296 : vector<8x128xf32>
    %299 = arith.addf %297, %298 : vector<8x128xf32>
    %300 = math.tanh %299 : vector<8x128xf32>
    %301 = arith.mulf %294, %300 : vector<8x128xf32>
    %302 = vector.shape_cast %279 : vector<8x1xi1> to vector<8x1xi1>
    %303 = vector.broadcast %302 : vector<8x1xi1> to vector<8x128xi1>
    %304 = arith.select %303, %301, %216 : vector<8x128xi1>, vector<8x128xf32>
    %305 = vector.shape_cast %279 : vector<8x1xi1> to vector<8x1xi1>
    %306 = vector.broadcast %305 : vector<8x1xi1> to vector<8x128xi1>
    %307 = arith.select %306, %299, %219 : vector<8x128xi1>, vector<8x128xf32>
    %308 = tpu.concatenate %304, %245 in 1 : vector<8x128xf32>, vector<8x128xf32> -> vector<8x256xf32>
    %309 = arith.truncf %308 : vector<8x256xf32> to vector<8x256xbf16>
    %cst_65 = arith.constant dense<0.000000e+00> : vector<8x512xf32>
    %310 = tpu.matmul %309, %9, %cst_65 {dimension_numbers = #tpu.dot_dimension_numbers<[1], [0], [0], [1], [0, 0, 1, 1], [], []>} : vector<8x256xbf16>, vector<256x512xbf16>, vector<8x512xf32> -> vector<8x512xf32>
    %311 = vector.broadcast %11 : vector<1x512xf32> to vector<8x512xf32>
    %312 = arith.addf %310, %311 : vector<8x512xf32>
    %313 = vector.extract_strided_slice %312 {offsets = [0, 0], sizes = [8, 384], strides = [1, 1]} : vector<8x512xf32> to vector<8x384xf32>
    %cst_66 = arith.constant 5.000000e-01 : f32
    %314 = vector.broadcast %cst_66 : f32 to vector<8x384xf32>
    %315 = arith.mulf %313, %314 : vector<8x384xf32>
    %316 = math.tanh %315 : vector<8x384xf32>
    %cst_67 = arith.constant 5.000000e-01 : f32
    %317 = vector.broadcast %cst_67 : f32 to vector<8x384xf32>
    %318 = arith.mulf %316, %317 : vector<8x384xf32>
    %cst_68 = arith.constant 5.000000e-01 : f32
    %319 = vector.broadcast %cst_68 : f32 to vector<8x384xf32>
    %320 = arith.addf %318, %319 : vector<8x384xf32>
    %321 = vector.extract_strided_slice %320 {offsets = [0, 0], sizes = [8, 128], strides = [1, 1]} : vector<8x384xf32> to vector<8x128xf32>
    %322 = vector.extract_strided_slice %320 {offsets = [0, 128], sizes = [8, 128], strides = [1, 1]} : vector<8x384xf32> to vector<8x128xf32>
    %323 = vector.extract_strided_slice %320 {offsets = [0, 256], sizes = [8, 128], strides = [1, 1]} : vector<8x384xf32> to vector<8x128xf32>
    %324 = vector.extract_strided_slice %312 {offsets = [0, 384], sizes = [8, 128], strides = [1, 1]} : vector<8x512xf32> to vector<8x128xf32>
    %325 = math.tanh %324 : vector<8x128xf32>
    %326 = arith.mulf %322, %248 : vector<8x128xf32>
    %327 = arith.mulf %321, %325 : vector<8x128xf32>
    %328 = arith.addf %326, %327 : vector<8x128xf32>
    %329 = math.tanh %328 : vector<8x128xf32>
    %330 = arith.mulf %323, %329 : vector<8x128xf32>
    %331 = vector.shape_cast %279 : vector<8x1xi1> to vector<8x1xi1>
    %332 = vector.broadcast %331 : vector<8x1xi1> to vector<8x128xi1>
    %333 = arith.select %332, %330, %245 : vector<8x128xi1>, vector<8x128xf32>
    %334 = vector.shape_cast %279 : vector<8x1xi1> to vector<8x1xi1>
    %335 = vector.broadcast %334 : vector<8x1xi1> to vector<8x128xi1>
    %336 = arith.select %335, %328, %248 : vector<8x128xi1>, vector<8x128xf32>
    %337 = tpu.concatenate %333, %274 in 1 : vector<8x128xf32>, vector<8x128xf32> -> vector<8x256xf32>
    %338 = arith.truncf %337 : vector<8x256xf32> to vector<8x256xbf16>
    %cst_69 = arith.constant dense<0.000000e+00> : vector<8x512xf32>
    %339 = tpu.matmul %338, %10, %cst_69 {dimension_numbers = #tpu.dot_dimension_numbers<[1], [0], [0], [1], [0, 0, 1, 1], [], []>} : vector<8x256xbf16>, vector<256x512xbf16>, vector<8x512xf32> -> vector<8x512xf32>
    %340 = vector.broadcast %12 : vector<1x512xf32> to vector<8x512xf32>
    %341 = arith.addf %339, %340 : vector<8x512xf32>
    %342 = vector.extract_strided_slice %341 {offsets = [0, 0], sizes = [8, 384], strides = [1, 1]} : vector<8x512xf32> to vector<8x384xf32>
    %cst_70 = arith.constant 5.000000e-01 : f32
    %343 = vector.broadcast %cst_70 : f32 to vector<8x384xf32>
    %344 = arith.mulf %342, %343 : vector<8x384xf32>
    %345 = math.tanh %344 : vector<8x384xf32>
    %cst_71 = arith.constant 5.000000e-01 : f32
    %346 = vector.broadcast %cst_71 : f32 to vector<8x384xf32>
    %347 = arith.mulf %345, %346 : vector<8x384xf32>
    %cst_72 = arith.constant 5.000000e-01 : f32
    %348 = vector.broadcast %cst_72 : f32 to vector<8x384xf32>
    %349 = arith.addf %347, %348 : vector<8x384xf32>
    %350 = vector.extract_strided_slice %349 {offsets = [0, 0], sizes = [8, 128], strides = [1, 1]} : vector<8x384xf32> to vector<8x128xf32>
    %351 = vector.extract_strided_slice %349 {offsets = [0, 128], sizes = [8, 128], strides = [1, 1]} : vector<8x384xf32> to vector<8x128xf32>
    %352 = vector.extract_strided_slice %349 {offsets = [0, 256], sizes = [8, 128], strides = [1, 1]} : vector<8x384xf32> to vector<8x128xf32>
    %353 = vector.extract_strided_slice %341 {offsets = [0, 384], sizes = [8, 128], strides = [1, 1]} : vector<8x512xf32> to vector<8x128xf32>
    %354 = math.tanh %353 : vector<8x128xf32>
    %355 = arith.mulf %351, %277 : vector<8x128xf32>
    %356 = arith.mulf %350, %354 : vector<8x128xf32>
    %357 = arith.addf %355, %356 : vector<8x128xf32>
    %358 = math.tanh %357 : vector<8x128xf32>
    %359 = arith.mulf %352, %358 : vector<8x128xf32>
    %360 = vector.shape_cast %279 : vector<8x1xi1> to vector<8x1xi1>
    %361 = vector.broadcast %360 : vector<8x1xi1> to vector<8x128xi1>
    %362 = arith.select %361, %359, %274 : vector<8x128xi1>, vector<8x128xf32>
    %363 = vector.shape_cast %279 : vector<8x1xi1> to vector<8x1xi1>
    %364 = vector.broadcast %363 : vector<8x1xi1> to vector<8x128xi1>
    %365 = arith.select %364, %357, %277 : vector<8x128xi1>, vector<8x128xf32>
    %c4_i32 = arith.constant 4 : i32
    %366 = vector.broadcast %c4_i32 : i32 to vector<8x1xi32>
    %367 = arith.cmpi sgt, %0, %366 : vector<8x1xi32>
    %c32 = arith.constant 32 : index
    %c0_73 = arith.constant 0 : index
    %368 = vector.load %arg14[%c32, %c0_73] : memref<64x512xf32, #tpu.memory_space<vmem>>, vector<8x512xf32>
    %369 = arith.truncf %304 : vector<8x128xf32> to vector<8x128xbf16>
    %cst_74 = arith.constant dense<0.000000e+00> : vector<8x512xf32>
    %370 = tpu.matmul %369, %8, %cst_74 {dimension_numbers = #tpu.dot_dimension_numbers<[1], [0], [0], [1], [0, 0, 1, 1], [], []>} : vector<8x128xbf16>, vector<128x512xbf16>, vector<8x512xf32> -> vector<8x512xf32>
    %371 = arith.addf %368, %370 : vector<8x512xf32>
    %372 = vector.extract_strided_slice %371 {offsets = [0, 0], sizes = [8, 384], strides = [1, 1]} : vector<8x512xf32> to vector<8x384xf32>
    %cst_75 = arith.constant 5.000000e-01 : f32
    %373 = vector.broadcast %cst_75 : f32 to vector<8x384xf32>
    %374 = arith.mulf %372, %373 : vector<8x384xf32>
    %375 = math.tanh %374 : vector<8x384xf32>
    %cst_76 = arith.constant 5.000000e-01 : f32
    %376 = vector.broadcast %cst_76 : f32 to vector<8x384xf32>
    %377 = arith.mulf %375, %376 : vector<8x384xf32>
    %cst_77 = arith.constant 5.000000e-01 : f32
    %378 = vector.broadcast %cst_77 : f32 to vector<8x384xf32>
    %379 = arith.addf %377, %378 : vector<8x384xf32>
    %380 = vector.extract_strided_slice %379 {offsets = [0, 0], sizes = [8, 128], strides = [1, 1]} : vector<8x384xf32> to vector<8x128xf32>
    %381 = vector.extract_strided_slice %379 {offsets = [0, 128], sizes = [8, 128], strides = [1, 1]} : vector<8x384xf32> to vector<8x128xf32>
    %382 = vector.extract_strided_slice %379 {offsets = [0, 256], sizes = [8, 128], strides = [1, 1]} : vector<8x384xf32> to vector<8x128xf32>
    %383 = vector.extract_strided_slice %371 {offsets = [0, 384], sizes = [8, 128], strides = [1, 1]} : vector<8x512xf32> to vector<8x128xf32>
    %384 = math.tanh %383 : vector<8x128xf32>
    %385 = arith.mulf %381, %307 : vector<8x128xf32>
    %386 = arith.mulf %380, %384 : vector<8x128xf32>
    %387 = arith.addf %385, %386 : vector<8x128xf32>
    %388 = math.tanh %387 : vector<8x128xf32>
    %389 = arith.mulf %382, %388 : vector<8x128xf32>
    %390 = vector.shape_cast %367 : vector<8x1xi1> to vector<8x1xi1>
    %391 = vector.broadcast %390 : vector<8x1xi1> to vector<8x128xi1>
    %392 = arith.select %391, %389, %304 : vector<8x128xi1>, vector<8x128xf32>
    %393 = vector.shape_cast %367 : vector<8x1xi1> to vector<8x1xi1>
    %394 = vector.broadcast %393 : vector<8x1xi1> to vector<8x128xi1>
    %395 = arith.select %394, %387, %307 : vector<8x128xi1>, vector<8x128xf32>
    %396 = tpu.concatenate %392, %333 in 1 : vector<8x128xf32>, vector<8x128xf32> -> vector<8x256xf32>
    %397 = arith.truncf %396 : vector<8x256xf32> to vector<8x256xbf16>
    %cst_78 = arith.constant dense<0.000000e+00> : vector<8x512xf32>
    %398 = tpu.matmul %397, %9, %cst_78 {dimension_numbers = #tpu.dot_dimension_numbers<[1], [0], [0], [1], [0, 0, 1, 1], [], []>} : vector<8x256xbf16>, vector<256x512xbf16>, vector<8x512xf32> -> vector<8x512xf32>
    %399 = vector.broadcast %11 : vector<1x512xf32> to vector<8x512xf32>
    %400 = arith.addf %398, %399 : vector<8x512xf32>
    %401 = vector.extract_strided_slice %400 {offsets = [0, 0], sizes = [8, 384], strides = [1, 1]} : vector<8x512xf32> to vector<8x384xf32>
    %cst_79 = arith.constant 5.000000e-01 : f32
    %402 = vector.broadcast %cst_79 : f32 to vector<8x384xf32>
    %403 = arith.mulf %401, %402 : vector<8x384xf32>
    %404 = math.tanh %403 : vector<8x384xf32>
    %cst_80 = arith.constant 5.000000e-01 : f32
    %405 = vector.broadcast %cst_80 : f32 to vector<8x384xf32>
    %406 = arith.mulf %404, %405 : vector<8x384xf32>
    %cst_81 = arith.constant 5.000000e-01 : f32
    %407 = vector.broadcast %cst_81 : f32 to vector<8x384xf32>
    %408 = arith.addf %406, %407 : vector<8x384xf32>
    %409 = vector.extract_strided_slice %408 {offsets = [0, 0], sizes = [8, 128], strides = [1, 1]} : vector<8x384xf32> to vector<8x128xf32>
    %410 = vector.extract_strided_slice %408 {offsets = [0, 128], sizes = [8, 128], strides = [1, 1]} : vector<8x384xf32> to vector<8x128xf32>
    %411 = vector.extract_strided_slice %408 {offsets = [0, 256], sizes = [8, 128], strides = [1, 1]} : vector<8x384xf32> to vector<8x128xf32>
    %412 = vector.extract_strided_slice %400 {offsets = [0, 384], sizes = [8, 128], strides = [1, 1]} : vector<8x512xf32> to vector<8x128xf32>
    %413 = math.tanh %412 : vector<8x128xf32>
    %414 = arith.mulf %410, %336 : vector<8x128xf32>
    %415 = arith.mulf %409, %413 : vector<8x128xf32>
    %416 = arith.addf %414, %415 : vector<8x128xf32>
    %417 = math.tanh %416 : vector<8x128xf32>
    %418 = arith.mulf %411, %417 : vector<8x128xf32>
    %419 = vector.shape_cast %367 : vector<8x1xi1> to vector<8x1xi1>
    %420 = vector.broadcast %419 : vector<8x1xi1> to vector<8x128xi1>
    %421 = arith.select %420, %418, %333 : vector<8x128xi1>, vector<8x128xf32>
    %422 = vector.shape_cast %367 : vector<8x1xi1> to vector<8x1xi1>
    %423 = vector.broadcast %422 : vector<8x1xi1> to vector<8x128xi1>
    %424 = arith.select %423, %416, %336 : vector<8x128xi1>, vector<8x128xf32>
    %425 = tpu.concatenate %421, %362 in 1 : vector<8x128xf32>, vector<8x128xf32> -> vector<8x256xf32>
    %426 = arith.truncf %425 : vector<8x256xf32> to vector<8x256xbf16>
    %cst_82 = arith.constant dense<0.000000e+00> : vector<8x512xf32>
    %427 = tpu.matmul %426, %10, %cst_82 {dimension_numbers = #tpu.dot_dimension_numbers<[1], [0], [0], [1], [0, 0, 1, 1], [], []>} : vector<8x256xbf16>, vector<256x512xbf16>, vector<8x512xf32> -> vector<8x512xf32>
    %428 = vector.broadcast %12 : vector<1x512xf32> to vector<8x512xf32>
    %429 = arith.addf %427, %428 : vector<8x512xf32>
    %430 = vector.extract_strided_slice %429 {offsets = [0, 0], sizes = [8, 384], strides = [1, 1]} : vector<8x512xf32> to vector<8x384xf32>
    %cst_83 = arith.constant 5.000000e-01 : f32
    %431 = vector.broadcast %cst_83 : f32 to vector<8x384xf32>
    %432 = arith.mulf %430, %431 : vector<8x384xf32>
    %433 = math.tanh %432 : vector<8x384xf32>
    %cst_84 = arith.constant 5.000000e-01 : f32
    %434 = vector.broadcast %cst_84 : f32 to vector<8x384xf32>
    %435 = arith.mulf %433, %434 : vector<8x384xf32>
    %cst_85 = arith.constant 5.000000e-01 : f32
    %436 = vector.broadcast %cst_85 : f32 to vector<8x384xf32>
    %437 = arith.addf %435, %436 : vector<8x384xf32>
    %438 = vector.extract_strided_slice %437 {offsets = [0, 0], sizes = [8, 128], strides = [1, 1]} : vector<8x384xf32> to vector<8x128xf32>
    %439 = vector.extract_strided_slice %437 {offsets = [0, 128], sizes = [8, 128], strides = [1, 1]} : vector<8x384xf32> to vector<8x128xf32>
    %440 = vector.extract_strided_slice %437 {offsets = [0, 256], sizes = [8, 128], strides = [1, 1]} : vector<8x384xf32> to vector<8x128xf32>
    %441 = vector.extract_strided_slice %429 {offsets = [0, 384], sizes = [8, 128], strides = [1, 1]} : vector<8x512xf32> to vector<8x128xf32>
    %442 = math.tanh %441 : vector<8x128xf32>
    %443 = arith.mulf %439, %365 : vector<8x128xf32>
    %444 = arith.mulf %438, %442 : vector<8x128xf32>
    %445 = arith.addf %443, %444 : vector<8x128xf32>
    %446 = math.tanh %445 : vector<8x128xf32>
    %447 = arith.mulf %440, %446 : vector<8x128xf32>
    %448 = vector.shape_cast %367 : vector<8x1xi1> to vector<8x1xi1>
    %449 = vector.broadcast %448 : vector<8x1xi1> to vector<8x128xi1>
    %450 = arith.select %449, %447, %362 : vector<8x128xi1>, vector<8x128xf32>
    %451 = vector.shape_cast %367 : vector<8x1xi1> to vector<8x1xi1>
    %452 = vector.broadcast %451 : vector<8x1xi1> to vector<8x128xi1>
    %453 = arith.select %452, %445, %365 : vector<8x128xi1>, vector<8x128xf32>
    %c5_i32 = arith.constant 5 : i32
    %454 = vector.broadcast %c5_i32 : i32 to vector<8x1xi32>
    %455 = arith.cmpi sgt, %0, %454 : vector<8x1xi32>
    %c40 = arith.constant 40 : index
    %c0_86 = arith.constant 0 : index
    %456 = vector.load %arg14[%c40, %c0_86] : memref<64x512xf32, #tpu.memory_space<vmem>>, vector<8x512xf32>
    %457 = arith.truncf %392 : vector<8x128xf32> to vector<8x128xbf16>
    %cst_87 = arith.constant dense<0.000000e+00> : vector<8x512xf32>
    %458 = tpu.matmul %457, %8, %cst_87 {dimension_numbers = #tpu.dot_dimension_numbers<[1], [0], [0], [1], [0, 0, 1, 1], [], []>} : vector<8x128xbf16>, vector<128x512xbf16>, vector<8x512xf32> -> vector<8x512xf32>
    %459 = arith.addf %456, %458 : vector<8x512xf32>
    %460 = vector.extract_strided_slice %459 {offsets = [0, 0], sizes = [8, 384], strides = [1, 1]} : vector<8x512xf32> to vector<8x384xf32>
    %cst_88 = arith.constant 5.000000e-01 : f32
    %461 = vector.broadcast %cst_88 : f32 to vector<8x384xf32>
    %462 = arith.mulf %460, %461 : vector<8x384xf32>
    %463 = math.tanh %462 : vector<8x384xf32>
    %cst_89 = arith.constant 5.000000e-01 : f32
    %464 = vector.broadcast %cst_89 : f32 to vector<8x384xf32>
    %465 = arith.mulf %463, %464 : vector<8x384xf32>
    %cst_90 = arith.constant 5.000000e-01 : f32
    %466 = vector.broadcast %cst_90 : f32 to vector<8x384xf32>
    %467 = arith.addf %465, %466 : vector<8x384xf32>
    %468 = vector.extract_strided_slice %467 {offsets = [0, 0], sizes = [8, 128], strides = [1, 1]} : vector<8x384xf32> to vector<8x128xf32>
    %469 = vector.extract_strided_slice %467 {offsets = [0, 128], sizes = [8, 128], strides = [1, 1]} : vector<8x384xf32> to vector<8x128xf32>
    %470 = vector.extract_strided_slice %467 {offsets = [0, 256], sizes = [8, 128], strides = [1, 1]} : vector<8x384xf32> to vector<8x128xf32>
    %471 = vector.extract_strided_slice %459 {offsets = [0, 384], sizes = [8, 128], strides = [1, 1]} : vector<8x512xf32> to vector<8x128xf32>
    %472 = math.tanh %471 : vector<8x128xf32>
    %473 = arith.mulf %469, %395 : vector<8x128xf32>
    %474 = arith.mulf %468, %472 : vector<8x128xf32>
    %475 = arith.addf %473, %474 : vector<8x128xf32>
    %476 = math.tanh %475 : vector<8x128xf32>
    %477 = arith.mulf %470, %476 : vector<8x128xf32>
    %478 = vector.shape_cast %455 : vector<8x1xi1> to vector<8x1xi1>
    %479 = vector.broadcast %478 : vector<8x1xi1> to vector<8x128xi1>
    %480 = arith.select %479, %477, %392 : vector<8x128xi1>, vector<8x128xf32>
    %481 = vector.shape_cast %455 : vector<8x1xi1> to vector<8x1xi1>
    %482 = vector.broadcast %481 : vector<8x1xi1> to vector<8x128xi1>
    %483 = arith.select %482, %475, %395 : vector<8x128xi1>, vector<8x128xf32>
    %484 = tpu.concatenate %480, %421 in 1 : vector<8x128xf32>, vector<8x128xf32> -> vector<8x256xf32>
    %485 = arith.truncf %484 : vector<8x256xf32> to vector<8x256xbf16>
    %cst_91 = arith.constant dense<0.000000e+00> : vector<8x512xf32>
    %486 = tpu.matmul %485, %9, %cst_91 {dimension_numbers = #tpu.dot_dimension_numbers<[1], [0], [0], [1], [0, 0, 1, 1], [], []>} : vector<8x256xbf16>, vector<256x512xbf16>, vector<8x512xf32> -> vector<8x512xf32>
    %487 = vector.broadcast %11 : vector<1x512xf32> to vector<8x512xf32>
    %488 = arith.addf %486, %487 : vector<8x512xf32>
    %489 = vector.extract_strided_slice %488 {offsets = [0, 0], sizes = [8, 384], strides = [1, 1]} : vector<8x512xf32> to vector<8x384xf32>
    %cst_92 = arith.constant 5.000000e-01 : f32
    %490 = vector.broadcast %cst_92 : f32 to vector<8x384xf32>
    %491 = arith.mulf %489, %490 : vector<8x384xf32>
    %492 = math.tanh %491 : vector<8x384xf32>
    %cst_93 = arith.constant 5.000000e-01 : f32
    %493 = vector.broadcast %cst_93 : f32 to vector<8x384xf32>
    %494 = arith.mulf %492, %493 : vector<8x384xf32>
    %cst_94 = arith.constant 5.000000e-01 : f32
    %495 = vector.broadcast %cst_94 : f32 to vector<8x384xf32>
    %496 = arith.addf %494, %495 : vector<8x384xf32>
    %497 = vector.extract_strided_slice %496 {offsets = [0, 0], sizes = [8, 128], strides = [1, 1]} : vector<8x384xf32> to vector<8x128xf32>
    %498 = vector.extract_strided_slice %496 {offsets = [0, 128], sizes = [8, 128], strides = [1, 1]} : vector<8x384xf32> to vector<8x128xf32>
    %499 = vector.extract_strided_slice %496 {offsets = [0, 256], sizes = [8, 128], strides = [1, 1]} : vector<8x384xf32> to vector<8x128xf32>
    %500 = vector.extract_strided_slice %488 {offsets = [0, 384], sizes = [8, 128], strides = [1, 1]} : vector<8x512xf32> to vector<8x128xf32>
    %501 = math.tanh %500 : vector<8x128xf32>
    %502 = arith.mulf %498, %424 : vector<8x128xf32>
    %503 = arith.mulf %497, %501 : vector<8x128xf32>
    %504 = arith.addf %502, %503 : vector<8x128xf32>
    %505 = math.tanh %504 : vector<8x128xf32>
    %506 = arith.mulf %499, %505 : vector<8x128xf32>
    %507 = vector.shape_cast %455 : vector<8x1xi1> to vector<8x1xi1>
    %508 = vector.broadcast %507 : vector<8x1xi1> to vector<8x128xi1>
    %509 = arith.select %508, %506, %421 : vector<8x128xi1>, vector<8x128xf32>
    %510 = vector.shape_cast %455 : vector<8x1xi1> to vector<8x1xi1>
    %511 = vector.broadcast %510 : vector<8x1xi1> to vector<8x128xi1>
    %512 = arith.select %511, %504, %424 : vector<8x128xi1>, vector<8x128xf32>
    %513 = tpu.concatenate %509, %450 in 1 : vector<8x128xf32>, vector<8x128xf32> -> vector<8x256xf32>
    %514 = arith.truncf %513 : vector<8x256xf32> to vector<8x256xbf16>
    %cst_95 = arith.constant dense<0.000000e+00> : vector<8x512xf32>
    %515 = tpu.matmul %514, %10, %cst_95 {dimension_numbers = #tpu.dot_dimension_numbers<[1], [0], [0], [1], [0, 0, 1, 1], [], []>} : vector<8x256xbf16>, vector<256x512xbf16>, vector<8x512xf32> -> vector<8x512xf32>
    %516 = vector.broadcast %12 : vector<1x512xf32> to vector<8x512xf32>
    %517 = arith.addf %515, %516 : vector<8x512xf32>
    %518 = vector.extract_strided_slice %517 {offsets = [0, 0], sizes = [8, 384], strides = [1, 1]} : vector<8x512xf32> to vector<8x384xf32>
    %cst_96 = arith.constant 5.000000e-01 : f32
    %519 = vector.broadcast %cst_96 : f32 to vector<8x384xf32>
    %520 = arith.mulf %518, %519 : vector<8x384xf32>
    %521 = math.tanh %520 : vector<8x384xf32>
    %cst_97 = arith.constant 5.000000e-01 : f32
    %522 = vector.broadcast %cst_97 : f32 to vector<8x384xf32>
    %523 = arith.mulf %521, %522 : vector<8x384xf32>
    %cst_98 = arith.constant 5.000000e-01 : f32
    %524 = vector.broadcast %cst_98 : f32 to vector<8x384xf32>
    %525 = arith.addf %523, %524 : vector<8x384xf32>
    %526 = vector.extract_strided_slice %525 {offsets = [0, 0], sizes = [8, 128], strides = [1, 1]} : vector<8x384xf32> to vector<8x128xf32>
    %527 = vector.extract_strided_slice %525 {offsets = [0, 128], sizes = [8, 128], strides = [1, 1]} : vector<8x384xf32> to vector<8x128xf32>
    %528 = vector.extract_strided_slice %525 {offsets = [0, 256], sizes = [8, 128], strides = [1, 1]} : vector<8x384xf32> to vector<8x128xf32>
    %529 = vector.extract_strided_slice %517 {offsets = [0, 384], sizes = [8, 128], strides = [1, 1]} : vector<8x512xf32> to vector<8x128xf32>
    %530 = math.tanh %529 : vector<8x128xf32>
    %531 = arith.mulf %527, %453 : vector<8x128xf32>
    %532 = arith.mulf %526, %530 : vector<8x128xf32>
    %533 = arith.addf %531, %532 : vector<8x128xf32>
    %534 = math.tanh %533 : vector<8x128xf32>
    %535 = arith.mulf %528, %534 : vector<8x128xf32>
    %536 = vector.shape_cast %455 : vector<8x1xi1> to vector<8x1xi1>
    %537 = vector.broadcast %536 : vector<8x1xi1> to vector<8x128xi1>
    %538 = arith.select %537, %535, %450 : vector<8x128xi1>, vector<8x128xf32>
    %539 = vector.shape_cast %455 : vector<8x1xi1> to vector<8x1xi1>
    %540 = vector.broadcast %539 : vector<8x1xi1> to vector<8x128xi1>
    %541 = arith.select %540, %533, %453 : vector<8x128xi1>, vector<8x128xf32>
    %c6_i32 = arith.constant 6 : i32
    %542 = vector.broadcast %c6_i32 : i32 to vector<8x1xi32>
    %543 = arith.cmpi sgt, %0, %542 : vector<8x1xi32>
    %c48 = arith.constant 48 : index
    %c0_99 = arith.constant 0 : index
    %544 = vector.load %arg14[%c48, %c0_99] : memref<64x512xf32, #tpu.memory_space<vmem>>, vector<8x512xf32>
    %545 = arith.truncf %480 : vector<8x128xf32> to vector<8x128xbf16>
    %cst_100 = arith.constant dense<0.000000e+00> : vector<8x512xf32>
    %546 = tpu.matmul %545, %8, %cst_100 {dimension_numbers = #tpu.dot_dimension_numbers<[1], [0], [0], [1], [0, 0, 1, 1], [], []>} : vector<8x128xbf16>, vector<128x512xbf16>, vector<8x512xf32> -> vector<8x512xf32>
    %547 = arith.addf %544, %546 : vector<8x512xf32>
    %548 = vector.extract_strided_slice %547 {offsets = [0, 0], sizes = [8, 384], strides = [1, 1]} : vector<8x512xf32> to vector<8x384xf32>
    %cst_101 = arith.constant 5.000000e-01 : f32
    %549 = vector.broadcast %cst_101 : f32 to vector<8x384xf32>
    %550 = arith.mulf %548, %549 : vector<8x384xf32>
    %551 = math.tanh %550 : vector<8x384xf32>
    %cst_102 = arith.constant 5.000000e-01 : f32
    %552 = vector.broadcast %cst_102 : f32 to vector<8x384xf32>
    %553 = arith.mulf %551, %552 : vector<8x384xf32>
    %cst_103 = arith.constant 5.000000e-01 : f32
    %554 = vector.broadcast %cst_103 : f32 to vector<8x384xf32>
    %555 = arith.addf %553, %554 : vector<8x384xf32>
    %556 = vector.extract_strided_slice %555 {offsets = [0, 0], sizes = [8, 128], strides = [1, 1]} : vector<8x384xf32> to vector<8x128xf32>
    %557 = vector.extract_strided_slice %555 {offsets = [0, 128], sizes = [8, 128], strides = [1, 1]} : vector<8x384xf32> to vector<8x128xf32>
    %558 = vector.extract_strided_slice %555 {offsets = [0, 256], sizes = [8, 128], strides = [1, 1]} : vector<8x384xf32> to vector<8x128xf32>
    %559 = vector.extract_strided_slice %547 {offsets = [0, 384], sizes = [8, 128], strides = [1, 1]} : vector<8x512xf32> to vector<8x128xf32>
    %560 = math.tanh %559 : vector<8x128xf32>
    %561 = arith.mulf %557, %483 : vector<8x128xf32>
    %562 = arith.mulf %556, %560 : vector<8x128xf32>
    %563 = arith.addf %561, %562 : vector<8x128xf32>
    %564 = math.tanh %563 : vector<8x128xf32>
    %565 = arith.mulf %558, %564 : vector<8x128xf32>
    %566 = vector.shape_cast %543 : vector<8x1xi1> to vector<8x1xi1>
    %567 = vector.broadcast %566 : vector<8x1xi1> to vector<8x128xi1>
    %568 = arith.select %567, %565, %480 : vector<8x128xi1>, vector<8x128xf32>
    %569 = vector.shape_cast %543 : vector<8x1xi1> to vector<8x1xi1>
    %570 = vector.broadcast %569 : vector<8x1xi1> to vector<8x128xi1>
    %571 = arith.select %570, %563, %483 : vector<8x128xi1>, vector<8x128xf32>
    %572 = tpu.concatenate %568, %509 in 1 : vector<8x128xf32>, vector<8x128xf32> -> vector<8x256xf32>
    %573 = arith.truncf %572 : vector<8x256xf32> to vector<8x256xbf16>
    %cst_104 = arith.constant dense<0.000000e+00> : vector<8x512xf32>
    %574 = tpu.matmul %573, %9, %cst_104 {dimension_numbers = #tpu.dot_dimension_numbers<[1], [0], [0], [1], [0, 0, 1, 1], [], []>} : vector<8x256xbf16>, vector<256x512xbf16>, vector<8x512xf32> -> vector<8x512xf32>
    %575 = vector.broadcast %11 : vector<1x512xf32> to vector<8x512xf32>
    %576 = arith.addf %574, %575 : vector<8x512xf32>
    %577 = vector.extract_strided_slice %576 {offsets = [0, 0], sizes = [8, 384], strides = [1, 1]} : vector<8x512xf32> to vector<8x384xf32>
    %cst_105 = arith.constant 5.000000e-01 : f32
    %578 = vector.broadcast %cst_105 : f32 to vector<8x384xf32>
    %579 = arith.mulf %577, %578 : vector<8x384xf32>
    %580 = math.tanh %579 : vector<8x384xf32>
    %cst_106 = arith.constant 5.000000e-01 : f32
    %581 = vector.broadcast %cst_106 : f32 to vector<8x384xf32>
    %582 = arith.mulf %580, %581 : vector<8x384xf32>
    %cst_107 = arith.constant 5.000000e-01 : f32
    %583 = vector.broadcast %cst_107 : f32 to vector<8x384xf32>
    %584 = arith.addf %582, %583 : vector<8x384xf32>
    %585 = vector.extract_strided_slice %584 {offsets = [0, 0], sizes = [8, 128], strides = [1, 1]} : vector<8x384xf32> to vector<8x128xf32>
    %586 = vector.extract_strided_slice %584 {offsets = [0, 128], sizes = [8, 128], strides = [1, 1]} : vector<8x384xf32> to vector<8x128xf32>
    %587 = vector.extract_strided_slice %584 {offsets = [0, 256], sizes = [8, 128], strides = [1, 1]} : vector<8x384xf32> to vector<8x128xf32>
    %588 = vector.extract_strided_slice %576 {offsets = [0, 384], sizes = [8, 128], strides = [1, 1]} : vector<8x512xf32> to vector<8x128xf32>
    %589 = math.tanh %588 : vector<8x128xf32>
    %590 = arith.mulf %586, %512 : vector<8x128xf32>
    %591 = arith.mulf %585, %589 : vector<8x128xf32>
    %592 = arith.addf %590, %591 : vector<8x128xf32>
    %593 = math.tanh %592 : vector<8x128xf32>
    %594 = arith.mulf %587, %593 : vector<8x128xf32>
    %595 = vector.shape_cast %543 : vector<8x1xi1> to vector<8x1xi1>
    %596 = vector.broadcast %595 : vector<8x1xi1> to vector<8x128xi1>
    %597 = arith.select %596, %594, %509 : vector<8x128xi1>, vector<8x128xf32>
    %598 = vector.shape_cast %543 : vector<8x1xi1> to vector<8x1xi1>
    %599 = vector.broadcast %598 : vector<8x1xi1> to vector<8x128xi1>
    %600 = arith.select %599, %592, %512 : vector<8x128xi1>, vector<8x128xf32>
    %601 = tpu.concatenate %597, %538 in 1 : vector<8x128xf32>, vector<8x128xf32> -> vector<8x256xf32>
    %602 = arith.truncf %601 : vector<8x256xf32> to vector<8x256xbf16>
    %cst_108 = arith.constant dense<0.000000e+00> : vector<8x512xf32>
    %603 = tpu.matmul %602, %10, %cst_108 {dimension_numbers = #tpu.dot_dimension_numbers<[1], [0], [0], [1], [0, 0, 1, 1], [], []>} : vector<8x256xbf16>, vector<256x512xbf16>, vector<8x512xf32> -> vector<8x512xf32>
    %604 = vector.broadcast %12 : vector<1x512xf32> to vector<8x512xf32>
    %605 = arith.addf %603, %604 : vector<8x512xf32>
    %606 = vector.extract_strided_slice %605 {offsets = [0, 0], sizes = [8, 384], strides = [1, 1]} : vector<8x512xf32> to vector<8x384xf32>
    %cst_109 = arith.constant 5.000000e-01 : f32
    %607 = vector.broadcast %cst_109 : f32 to vector<8x384xf32>
    %608 = arith.mulf %606, %607 : vector<8x384xf32>
    %609 = math.tanh %608 : vector<8x384xf32>
    %cst_110 = arith.constant 5.000000e-01 : f32
    %610 = vector.broadcast %cst_110 : f32 to vector<8x384xf32>
    %611 = arith.mulf %609, %610 : vector<8x384xf32>
    %cst_111 = arith.constant 5.000000e-01 : f32
    %612 = vector.broadcast %cst_111 : f32 to vector<8x384xf32>
    %613 = arith.addf %611, %612 : vector<8x384xf32>
    %614 = vector.extract_strided_slice %613 {offsets = [0, 0], sizes = [8, 128], strides = [1, 1]} : vector<8x384xf32> to vector<8x128xf32>
    %615 = vector.extract_strided_slice %613 {offsets = [0, 128], sizes = [8, 128], strides = [1, 1]} : vector<8x384xf32> to vector<8x128xf32>
    %616 = vector.extract_strided_slice %613 {offsets = [0, 256], sizes = [8, 128], strides = [1, 1]} : vector<8x384xf32> to vector<8x128xf32>
    %617 = vector.extract_strided_slice %605 {offsets = [0, 384], sizes = [8, 128], strides = [1, 1]} : vector<8x512xf32> to vector<8x128xf32>
    %618 = math.tanh %617 : vector<8x128xf32>
    %619 = arith.mulf %615, %541 : vector<8x128xf32>
    %620 = arith.mulf %614, %618 : vector<8x128xf32>
    %621 = arith.addf %619, %620 : vector<8x128xf32>
    %622 = math.tanh %621 : vector<8x128xf32>
    %623 = arith.mulf %616, %622 : vector<8x128xf32>
    %624 = vector.shape_cast %543 : vector<8x1xi1> to vector<8x1xi1>
    %625 = vector.broadcast %624 : vector<8x1xi1> to vector<8x128xi1>
    %626 = arith.select %625, %623, %538 : vector<8x128xi1>, vector<8x128xf32>
    %627 = vector.shape_cast %543 : vector<8x1xi1> to vector<8x1xi1>
    %628 = vector.broadcast %627 : vector<8x1xi1> to vector<8x128xi1>
    %629 = arith.select %628, %621, %541 : vector<8x128xi1>, vector<8x128xf32>
    %c7_i32 = arith.constant 7 : i32
    %630 = vector.broadcast %c7_i32 : i32 to vector<8x1xi32>
    %631 = arith.cmpi sgt, %0, %630 : vector<8x1xi32>
    %c56 = arith.constant 56 : index
    %c0_112 = arith.constant 0 : index
    %632 = vector.load %arg14[%c56, %c0_112] : memref<64x512xf32, #tpu.memory_space<vmem>>, vector<8x512xf32>
    %633 = arith.truncf %568 : vector<8x128xf32> to vector<8x128xbf16>
    %cst_113 = arith.constant dense<0.000000e+00> : vector<8x512xf32>
    %634 = tpu.matmul %633, %8, %cst_113 {dimension_numbers = #tpu.dot_dimension_numbers<[1], [0], [0], [1], [0, 0, 1, 1], [], []>} : vector<8x128xbf16>, vector<128x512xbf16>, vector<8x512xf32> -> vector<8x512xf32>
    %635 = arith.addf %632, %634 : vector<8x512xf32>
    %636 = vector.extract_strided_slice %635 {offsets = [0, 0], sizes = [8, 384], strides = [1, 1]} : vector<8x512xf32> to vector<8x384xf32>
    %cst_114 = arith.constant 5.000000e-01 : f32
    %637 = vector.broadcast %cst_114 : f32 to vector<8x384xf32>
    %638 = arith.mulf %636, %637 : vector<8x384xf32>
    %639 = math.tanh %638 : vector<8x384xf32>
    %cst_115 = arith.constant 5.000000e-01 : f32
    %640 = vector.broadcast %cst_115 : f32 to vector<8x384xf32>
    %641 = arith.mulf %639, %640 : vector<8x384xf32>
    %cst_116 = arith.constant 5.000000e-01 : f32
    %642 = vector.broadcast %cst_116 : f32 to vector<8x384xf32>
    %643 = arith.addf %641, %642 : vector<8x384xf32>
    %644 = vector.extract_strided_slice %643 {offsets = [0, 0], sizes = [8, 128], strides = [1, 1]} : vector<8x384xf32> to vector<8x128xf32>
    %645 = vector.extract_strided_slice %643 {offsets = [0, 128], sizes = [8, 128], strides = [1, 1]} : vector<8x384xf32> to vector<8x128xf32>
    %646 = vector.extract_strided_slice %643 {offsets = [0, 256], sizes = [8, 128], strides = [1, 1]} : vector<8x384xf32> to vector<8x128xf32>
    %647 = vector.extract_strided_slice %635 {offsets = [0, 384], sizes = [8, 128], strides = [1, 1]} : vector<8x512xf32> to vector<8x128xf32>
    %648 = math.tanh %647 : vector<8x128xf32>
    %649 = arith.mulf %645, %571 : vector<8x128xf32>
    %650 = arith.mulf %644, %648 : vector<8x128xf32>
    %651 = arith.addf %649, %650 : vector<8x128xf32>
    %652 = math.tanh %651 : vector<8x128xf32>
    %653 = arith.mulf %646, %652 : vector<8x128xf32>
    %654 = vector.shape_cast %631 : vector<8x1xi1> to vector<8x1xi1>
    %655 = vector.broadcast %654 : vector<8x1xi1> to vector<8x128xi1>
    %656 = arith.select %655, %653, %568 : vector<8x128xi1>, vector<8x128xf32>
    %657 = tpu.concatenate %656, %597 in 1 : vector<8x128xf32>, vector<8x128xf32> -> vector<8x256xf32>
    %658 = arith.truncf %657 : vector<8x256xf32> to vector<8x256xbf16>
    %cst_117 = arith.constant dense<0.000000e+00> : vector<8x512xf32>
    %659 = tpu.matmul %658, %9, %cst_117 {dimension_numbers = #tpu.dot_dimension_numbers<[1], [0], [0], [1], [0, 0, 1, 1], [], []>} : vector<8x256xbf16>, vector<256x512xbf16>, vector<8x512xf32> -> vector<8x512xf32>
    %660 = vector.broadcast %11 : vector<1x512xf32> to vector<8x512xf32>
    %661 = arith.addf %659, %660 : vector<8x512xf32>
    %662 = vector.extract_strided_slice %661 {offsets = [0, 0], sizes = [8, 384], strides = [1, 1]} : vector<8x512xf32> to vector<8x384xf32>
    %cst_118 = arith.constant 5.000000e-01 : f32
    %663 = vector.broadcast %cst_118 : f32 to vector<8x384xf32>
    %664 = arith.mulf %662, %663 : vector<8x384xf32>
    %665 = math.tanh %664 : vector<8x384xf32>
    %cst_119 = arith.constant 5.000000e-01 : f32
    %666 = vector.broadcast %cst_119 : f32 to vector<8x384xf32>
    %667 = arith.mulf %665, %666 : vector<8x384xf32>
    %cst_120 = arith.constant 5.000000e-01 : f32
    %668 = vector.broadcast %cst_120 : f32 to vector<8x384xf32>
    %669 = arith.addf %667, %668 : vector<8x384xf32>
    %670 = vector.extract_strided_slice %669 {offsets = [0, 0], sizes = [8, 128], strides = [1, 1]} : vector<8x384xf32> to vector<8x128xf32>
    %671 = vector.extract_strided_slice %669 {offsets = [0, 128], sizes = [8, 128], strides = [1, 1]} : vector<8x384xf32> to vector<8x128xf32>
    %672 = vector.extract_strided_slice %669 {offsets = [0, 256], sizes = [8, 128], strides = [1, 1]} : vector<8x384xf32> to vector<8x128xf32>
    %673 = vector.extract_strided_slice %661 {offsets = [0, 384], sizes = [8, 128], strides = [1, 1]} : vector<8x512xf32> to vector<8x128xf32>
    %674 = math.tanh %673 : vector<8x128xf32>
    %675 = arith.mulf %671, %600 : vector<8x128xf32>
    %676 = arith.mulf %670, %674 : vector<8x128xf32>
    %677 = arith.addf %675, %676 : vector<8x128xf32>
    %678 = math.tanh %677 : vector<8x128xf32>
    %679 = arith.mulf %672, %678 : vector<8x128xf32>
    %680 = vector.shape_cast %631 : vector<8x1xi1> to vector<8x1xi1>
    %681 = vector.broadcast %680 : vector<8x1xi1> to vector<8x128xi1>
    %682 = arith.select %681, %679, %597 : vector<8x128xi1>, vector<8x128xf32>
    %683 = tpu.concatenate %682, %626 in 1 : vector<8x128xf32>, vector<8x128xf32> -> vector<8x256xf32>
    %684 = arith.truncf %683 : vector<8x256xf32> to vector<8x256xbf16>
    %cst_121 = arith.constant dense<0.000000e+00> : vector<8x512xf32>
    %685 = tpu.matmul %684, %10, %cst_121 {dimension_numbers = #tpu.dot_dimension_numbers<[1], [0], [0], [1], [0, 0, 1, 1], [], []>} : vector<8x256xbf16>, vector<256x512xbf16>, vector<8x512xf32> -> vector<8x512xf32>
    %686 = vector.broadcast %12 : vector<1x512xf32> to vector<8x512xf32>
    %687 = arith.addf %685, %686 : vector<8x512xf32>
    %688 = vector.extract_strided_slice %687 {offsets = [0, 0], sizes = [8, 384], strides = [1, 1]} : vector<8x512xf32> to vector<8x384xf32>
    %cst_122 = arith.constant 5.000000e-01 : f32
    %689 = vector.broadcast %cst_122 : f32 to vector<8x384xf32>
    %690 = arith.mulf %688, %689 : vector<8x384xf32>
    %691 = math.tanh %690 : vector<8x384xf32>
    %cst_123 = arith.constant 5.000000e-01 : f32
    %692 = vector.broadcast %cst_123 : f32 to vector<8x384xf32>
    %693 = arith.mulf %691, %692 : vector<8x384xf32>
    %cst_124 = arith.constant 5.000000e-01 : f32
    %694 = vector.broadcast %cst_124 : f32 to vector<8x384xf32>
    %695 = arith.addf %693, %694 : vector<8x384xf32>
    %696 = vector.extract_strided_slice %695 {offsets = [0, 0], sizes = [8, 128], strides = [1, 1]} : vector<8x384xf32> to vector<8x128xf32>
    %697 = vector.extract_strided_slice %695 {offsets = [0, 128], sizes = [8, 128], strides = [1, 1]} : vector<8x384xf32> to vector<8x128xf32>
    %698 = vector.extract_strided_slice %695 {offsets = [0, 256], sizes = [8, 128], strides = [1, 1]} : vector<8x384xf32> to vector<8x128xf32>
    %699 = vector.extract_strided_slice %687 {offsets = [0, 384], sizes = [8, 128], strides = [1, 1]} : vector<8x512xf32> to vector<8x128xf32>
    %700 = math.tanh %699 : vector<8x128xf32>
    %701 = arith.mulf %697, %629 : vector<8x128xf32>
    %702 = arith.mulf %696, %700 : vector<8x128xf32>
    %703 = arith.addf %701, %702 : vector<8x128xf32>
    %704 = math.tanh %703 : vector<8x128xf32>
    %705 = arith.mulf %698, %704 : vector<8x128xf32>
    %706 = vector.shape_cast %631 : vector<8x1xi1> to vector<8x1xi1>
    %707 = vector.broadcast %706 : vector<8x1xi1> to vector<8x128xi1>
    %708 = arith.select %707, %705, %626 : vector<8x128xi1>, vector<8x128xf32>
    %709 = vector.shape_cast %0 : vector<8x1xi32> to vector<1x8x1xi32>
    %cst_125 = arith.constant dense<-2147483648> : vector<1xi32>
    %710 = vector.multi_reduction <maxsi>, %709, %cst_125 [1, 2] : vector<1x8x1xi32> to vector<1xi32>
    %711 = vector.shape_cast %710 : vector<1xi32> to vector<1x1x1xi32>
    %712 = vector.extract %711[0, 0, 0] : i32 from vector<1x1x1xi32>
    %713 = vector.broadcast %712 : i32 to vector<8x1xi32>
    %714 = arith.cmpi eq, %0, %713 : vector<8x1xi32>
    %cst_126 = arith.constant 0.000000e+00 : f32
    %715 = vector.shape_cast %714 : vector<8x1xi1> to vector<8x1xi1>
    %716 = vector.broadcast %715 : vector<8x1xi1> to vector<8x128xi1>
    %717 = vector.broadcast %cst_126 : f32 to vector<8x128xf32>
    %718 = arith.select %716, %708, %717 : vector<8x128xi1>, vector<8x128xf32>
    %719 = arith.truncf %718 : vector<8x128xf32> to vector<8x128xbf16>
    %c0_127 = arith.constant 0 : index
    %c0_128 = arith.constant 0 : index
    %720 = vector.load %arg9[%c0_127, %c0_128] : memref<128x128xbf16, #tpu.memory_space<vmem>>, vector<128x128xbf16>
    %cst_129 = arith.constant dense<0.000000e+00> : vector<8x128xf32>
    %721 = tpu.matmul %719, %720, %cst_129 {dimension_numbers = #tpu.dot_dimension_numbers<[1], [0], [0], [1], [0, 0, 1, 1], [], []>} : vector<8x128xbf16>, vector<128x128xbf16>, vector<8x128xf32> -> vector<8x128xf32>
    %c0_130 = arith.constant 0 : index
    %c0_131 = arith.constant 0 : index
    %722 = vector.load %arg10[%c0_130, %c0_131] : memref<1x128xf32, #tpu.memory_space<vmem>>, vector<1x128xf32>
    %723 = vector.broadcast %722 : vector<1x128xf32> to vector<8x128xf32>
    %724 = arith.addf %721, %723 : vector<8x128xf32>
    %cst_132 = arith.constant 0.000000e+00 : f32
    %725 = vector.broadcast %cst_132 : f32 to vector<8x128xf32>
    %726 = arith.maximumf %724, %725 : vector<8x128xf32>
    %727 = arith.truncf %726 : vector<8x128xf32> to vector<8x128xbf16>
    %c0_133 = arith.constant 0 : index
    %c0_134 = arith.constant 0 : index
    %728 = vector.load %arg11[%c0_133, %c0_134] : memref<128x128xbf16, #tpu.memory_space<vmem>>, vector<128x128xbf16>
    %cst_135 = arith.constant dense<0.000000e+00> : vector<8x128xf32>
    %729 = tpu.matmul %727, %728, %cst_135 {dimension_numbers = #tpu.dot_dimension_numbers<[1], [0], [0], [1], [0, 0, 1, 1], [], []>} : vector<8x128xbf16>, vector<128x128xbf16>, vector<8x128xf32> -> vector<8x128xf32>
    %c0_136 = arith.constant 0 : index
    %c0_137 = arith.constant 0 : index
    %730 = vector.load %arg12[%c0_136, %c0_137] : memref<1x128xf32, #tpu.memory_space<vmem>>, vector<1x128xf32>
    %731 = vector.broadcast %730 : vector<1x128xf32> to vector<8x128xf32>
    %732 = arith.addf %729, %731 : vector<8x128xf32>
    %c0_138 = arith.constant 0 : index
    %c0_139 = arith.constant 0 : index
    %733 = vector.load %arg13[%c0_138, %c0_139] : memref<8x128xf32, #tpu.memory_space<vmem>>, vector<8x128xf32>
    tpu.vector_store %arg13[%c0_138, %c0_139], %732 {strides = array<i32>} : memref<8x128xf32, #tpu.memory_space<vmem>>, vector<8x128xf32>,
    return
  }
}

</mosaic_0001>

<llo_original>
// kernel: lstm_forward.1
$region0: #{lstm_forward.1}
  #allocation0 [shape = 'u32[]', space=smem, size = 0x4, offset = 0x4, fixed_abs, tag = 'smem constant byte address 0x4 - core index']
  #allocation1 [shape = 'u32[72,128]{1,0:T(1,128)}', space=vmem, size = 0x9000, scoped, tag = 'internal scratch']
  #allocation2 [shape = 'f32[64,512]{1,0:T(8,128)}', space=vmem, size = 0x20000, scoped, tag = 'scratch operand']
  %s0 = inlined_call_operand.vmem [shape: s32[8,1], index: 0, kind: input, shape index: {}]
  %s1 = inlined_call_operand.vmem [shape: bf16[64,128], index: 1, kind: input, shape index: {}]
  %s2 = inlined_call_operand.hbm [shape: bf16[128,512], index: 2, kind: input, shape index: {}]
  %s3 = inlined_call_operand.hbm [shape: bf16[128,512], index: 3, kind: input, shape index: {}]
  %s4 = inlined_call_operand.vmem [shape: f32[1,512], index: 4, kind: input, shape index: {}]
  %s5 = inlined_call_operand.hbm [shape: bf16[256,512], index: 5, kind: input, shape index: {}]
  %s6 = inlined_call_operand.vmem [shape: f32[1,512], index: 6, kind: input, shape index: {}]
  %s7 = inlined_call_operand.hbm [shape: bf16[256,512], index: 7, kind: input, shape index: {}]
  %s8 = inlined_call_operand.vmem [shape: f32[1,512], index: 8, kind: input, shape index: {}]
  %s9 = inlined_call_operand.vmem [shape: bf16[128,128], index: 9, kind: input, shape index: {}]
  %s10 = inlined_call_operand.vmem [shape: f32[1,128], index: 10, kind: input, shape index: {}]
  %s11 = inlined_call_operand.vmem [shape: bf16[128,128], index: 11, kind: input, shape index: {}]
  %s12 = inlined_call_operand.vmem [shape: f32[1,128], index: 12, kind: input, shape index: {}]
  %s13 = inlined_call_operand.vmem [shape: f32[8,128], index: 13, kind: output, shape index: {}]
  %s14 = sld [smem:[#allocation0]]
  $region78: #{lstm_forward.1} parent=0
    _
  %s16 = ssub.s32 1, %s14
  %s17 = scalar_select 0, %s16, %s14
  $region1: #{lstm_forward.1} parent=0
    #allocation3 [shape = 'u8[131072]{0}', space=vmem, size = 0x20000, scoped, tag = 'input window, operand 2, single buffered']
    #allocation4 [shape = 's32[1]{0}', space=sflag, size = 0x4, scoped, tag = 'scoped memory for lstm_forward.1']
    #allocation5 [shape = 'u8[131072]{0}', space=vmem, size = 0x20000, scoped, tag = 'input window, operand 3, single buffered']
    #allocation6 [shape = 's32[1]{0}', space=sflag, size = 0x4, scoped, tag = 'scoped memory for lstm_forward.1']
    #allocation7 [shape = 'u8[262144]{0}', space=vmem, size = 0x40000, scoped, tag = 'input window, operand 5, single buffered']
    #allocation8 [shape = 'u8[262144]{0}', space=vmem, size = 0x40000, scoped, tag = 'input window, operand 7, single buffered']
    #allocation9 [shape = 's32[1]{0}', space=sflag, size = 0x4, scoped, tag = 'scoped memory for lstm_forward.1']
    %18 = vsyncpa [#allocation4], 0
    %19 = vsyncpa [#allocation6], 0
    %20 = vsyncpa [#allocation9], 0
    // Predicated region
    $region2: #{lstm_forward.1} parent=1 // pred_check
      _
    $region3: #{lstm_forward.1} parent=1 // pred_check_branch
      %22 = sbr.rel (0) target = $region5
    $region4: #{lstm_forward.1} parent=1 // pred_region
      _
    $region5: #{lstm_forward.1} parent=1 // pred_fallthru
      _
    // Predicated region
    $region6: #{lstm_forward.1} parent=1 // pred_check
      _
    $region7: #{lstm_forward.1} parent=1 // pred_check_branch
      %24 = sbr.rel (0) target = $region9
    $region8: #{lstm_forward.1} parent=1 // pred_region
      _
    $region9: #{lstm_forward.1} parent=1 // pred_fallthru
      _
    // Predicated region
    $region10: #{lstm_forward.1} parent=1 // pred_check
      _
    $region11: #{lstm_forward.1} parent=1 // pred_check_branch
      %26 = sbr.rel (0) target = $region13
    $region12: #{lstm_forward.1} parent=1 // pred_region
      %28 = vsyncadd [#allocation4], 0
      %s29 = sshll.u32 %s2, 4
      %s30 = int_to_ptr.hbm [resolvable:$true] %s29
      %s31 = sshll.u32 [#allocation3], 4
      %s32 = int_to_ptr.vmem [resolvable:$true] %s31
      %37 = dma.hbm_to_vmem [thread:$0]  %s30, 4096, %s32, [#allocation4], 256, 256, 16
    $region13: #{lstm_forward.1} parent=1 // pred_fallthru
      _
    // Predicated region
    $region14: #{lstm_forward.1} parent=1 // pred_check
      _
    $region15: #{lstm_forward.1} parent=1 // pred_check_branch
      %39 = sbr.rel (0) target = $region17
    $region16: #{lstm_forward.1} parent=1 // pred_region
      %41 = vsyncadd [#allocation6], 0
      %s42 = sshll.u32 %s3, 4
      %s43 = int_to_ptr.hbm [resolvable:$true] %s42
      %s44 = sshll.u32 [#allocation5], 4
      %s45 = int_to_ptr.vmem [resolvable:$true] %s44
      %50 = dma.hbm_to_vmem [thread:$0]  %s43, 4096, %s45, [#allocation6], 256, 256, 16
    $region17: #{lstm_forward.1} parent=1 // pred_fallthru
      _
    // Predicated region
    $region18: #{lstm_forward.1} parent=1 // pred_check
      _
    $region19: #{lstm_forward.1} parent=1 // pred_check_branch
      %52 = sbr.rel (0) target = $region21
    $region20: #{lstm_forward.1} parent=1 // pred_region
      _
    $region21: #{lstm_forward.1} parent=1 // pred_fallthru
      _
    // Predicated region
    $region22: #{lstm_forward.1} parent=1 // pred_check
      _
    $region23: #{lstm_forward.1} parent=1 // pred_check_branch
      %54 = sbr.rel (0) target = $region25
    $region24: #{lstm_forward.1} parent=1 // pred_region
      %56 = vsyncadd [#allocation6], 0
      %s57 = sshll.u32 %s5, 4
      %s58 = int_to_ptr.hbm [resolvable:$true] %s57
      %s59 = sshll.u32 [#allocation7], 4
      %s60 = int_to_ptr.vmem [resolvable:$true] %s59
      %65 = dma.hbm_to_vmem [thread:$0]  %s58, 8192, %s60, [#allocation6], 256, 256, 16
    $region25: #{lstm_forward.1} parent=1 // pred_fallthru
      _
    // Predicated region
    $region26: #{lstm_forward.1} parent=1 // pred_check
      _
    $region27: #{lstm_forward.1} parent=1 // pred_check_branch
      %67 = sbr.rel (0) target = $region29
    $region28: #{lstm_forward.1} parent=1 // pred_region
      _
    $region29: #{lstm_forward.1} parent=1 // pred_fallthru
      _
    // Predicated region
    $region30: #{lstm_forward.1} parent=1 // pred_check
      _
    $region31: #{lstm_forward.1} parent=1 // pred_check_branch
      %69 = sbr.rel (0) target = $region33
    $region32: #{lstm_forward.1} parent=1 // pred_region
      %71 = vsyncadd [#allocation9], 0
      %s72 = sshll.u32 %s7, 4
      %s73 = int_to_ptr.hbm [resolvable:$true] %s72
      %s74 = sshll.u32 [#allocation8], 4
      %s75 = int_to_ptr.vmem [resolvable:$true] %s74
      %80 = dma.hbm_to_vmem [thread:$0]  %s73, 8192, %s75, [#allocation9], 256, 256, 16
    $region33: #{lstm_forward.1} parent=1 // pred_fallthru
      _
    // Predicated region
    $region34: #{lstm_forward.1} parent=1 // pred_check
      _
    $region35: #{lstm_forward.1} parent=1 // pred_check_branch
      %82 = sbr.rel (0) target = $region37
    $region36: #{lstm_forward.1} parent=1 // pred_region
      _
    $region37: #{lstm_forward.1} parent=1 // pred_fallthru
      _
    // Predicated region
    $region38: #{lstm_forward.1} parent=1 // pred_check
      _
    $region39: #{lstm_forward.1} parent=1 // pred_check_branch
      %84 = sbr.rel (0) target = $region41
    $region40: #{lstm_forward.1} parent=1 // pred_region
      _
    $region41: #{lstm_forward.1} parent=1 // pred_fallthru
      _
    // Predicated region
    $region42: #{lstm_forward.1} parent=1 // pred_check
      _
    $region43: #{lstm_forward.1} parent=1 // pred_check_branch
      %86 = sbr.rel (0) target = $region45
    $region44: #{lstm_forward.1} parent=1 // pred_region
      _
    $region45: #{lstm_forward.1} parent=1 // pred_fallthru
      _
    // Predicated region
    $region46: #{lstm_forward.1} parent=1 // pred_check
      _
    $region47: #{lstm_forward.1} parent=1 // pred_check_branch
      %88 = sbr.rel (0) target = $region49
    $region48: #{lstm_forward.1} parent=1 // pred_region
      _
    $region49: #{lstm_forward.1} parent=1 // pred_fallthru
      _
    // Predicated region
    $region50: #{lstm_forward.1} parent=1 // pred_check
      _
    $region51: #{lstm_forward.1} parent=1 // pred_check_branch
      %90 = sbr.rel (0) target = $region53
    $region52: #{lstm_forward.1} parent=1 // pred_region
      _
    $region53: #{lstm_forward.1} parent=1 // pred_fallthru
      _
    // Predicated region
    $region54: #{lstm_forward.1} parent=1 // pred_check
      _
    $region55: #{lstm_forward.1} parent=1 // pred_check_branch
      %92 = sbr.rel (0) target = $region57
    $region56: #{lstm_forward.1} parent=1 // pred_region
      %94 = dma.done [#allocation4], 4096
    $region57: #{lstm_forward.1} parent=1 // pred_fallthru
      _
    // Predicated region
    $region58: #{lstm_forward.1} parent=1 // pred_check
      _
    $region59: #{lstm_forward.1} parent=1 // pred_check_branch
      %96 = sbr.rel (0) target = $region61
    $region60: #{lstm_forward.1} parent=1 // pred_region
      %98 = dma.done [#allocation6], 4096
    $region61: #{lstm_forward.1} parent=1 // pred_fallthru
      _
    // Predicated region
    $region62: #{lstm_forward.1} parent=1 // pred_check
      _
    $region63: #{lstm_forward.1} parent=1 // pred_check_branch
      %100 = sbr.rel (0) target = $region65
    $region64: #{lstm_forward.1} parent=1 // pred_region
      %102 = dma.done [#allocation6], 8192
    $region65: #{lstm_forward.1} parent=1 // pred_fallthru
      _
    // Predicated region
    $region66: #{lstm_forward.1} parent=1 // pred_check
      _
    $region67: #{lstm_forward.1} parent=1 // pred_check_branch
      %104 = sbr.rel (0) target = $region69
    $region68: #{lstm_forward.1} parent=1 // pred_region
      %106 = dma.done [#allocation9], 8192
    $region69: #{lstm_forward.1} parent=1 // pred_fallthru
      _
    %v108 = vld [vmem:[%s0] sm:$0xff]
    %v109 = vld [vmem:[%s1] sm:$0xf]
    %v110 = vld [vmem:[%s1 + $0x4] sm:$0xf]
    %v111 = vld [vmem:[%s1 + $0x8] sm:$0xf]
    %v112 = vld [vmem:[%s1 + $0xc] sm:$0xf]
    %v113 = vld [vmem:[%s1 + $0x10] sm:$0xf]
    %v114 = vld [vmem:[%s1 + $0x14] sm:$0xf]
    %v115 = vld [vmem:[%s1 + $0x18] sm:$0xf]
    %v116 = vld [vmem:[%s1 + $0x1c] sm:$0xf]
    %v117 = vld [vmem:[#allocation3] sm:$0xff]
    %v118 = vld [vmem:[#allocation3 + $0x8] sm:$0xff]
    %v119 = vld [vmem:[#allocation3 + $0x10] sm:$0xff]
    %v120 = vld [vmem:[#allocation3 + $0x18] sm:$0xff]
    %v121 = vld [vmem:[#allocation3 + $0x20] sm:$0xff]
    %v122 = vld [vmem:[#allocation3 + $0x28] sm:$0xff]
    %v123 = vld [vmem:[#allocation3 + $0x30] sm:$0xff]
    %v124 = vld [vmem:[#allocation3 + $0x38] sm:$0xff]
    %v125 = vld [vmem:[#allocation3 + $0x40] sm:$0xff]
    %v126 = vld [vmem:[#allocation3 + $0x48] sm:$0xff]
    %v127 = vld [vmem:[#allocation3 + $0x50] sm:$0xff]
    %v128 = vld [vmem:[#allocation3 + $0x58] sm:$0xff]
    %v129 = vld [vmem:[#allocation3 + $0x60] sm:$0xff]
    %v130 = vld [vmem:[#allocation3 + $0x68] sm:$0xff]
    %v131 = vld [vmem:[#allocation3 + $0x70] sm:$0xff]
    %v132 = vld [vmem:[#allocation3 + $0x78] sm:$0xff]
    %v133 = vld [vmem:[#allocation3 + $0x80] sm:$0xff]
    %v134 = vld [vmem:[#allocation3 + $0x88] sm:$0xff]
    %v135 = vld [vmem:[#allocation3 + $0x90] sm:$0xff]
    %v136 = vld [vmem:[#allocation3 + $0x98] sm:$0xff]
    %v137 = vld [vmem:[#allocation3 + $0xa0] sm:$0xff]
    %v138 = vld [vmem:[#allocation3 + $0xa8] sm:$0xff]
    %v139 = vld [vmem:[#allocation3 + $0xb0] sm:$0xff]
    %v140 = vld [vmem:[#allocation3 + $0xb8] sm:$0xff]
    %v141 = vld [vmem:[#allocation3 + $0xc0] sm:$0xff]
    %v142 = vld [vmem:[#allocation3 + $0xc8] sm:$0xff]
    %v143 = vld [vmem:[#allocation3 + $0xd0] sm:$0xff]
    %v144 = vld [vmem:[#allocation3 + $0xd8] sm:$0xff]
    %v145 = vld [vmem:[#allocation3 + $0xe0] sm:$0xff]
    %v146 = vld [vmem:[#allocation3 + $0xe8] sm:$0xff]
    %v147 = vld [vmem:[#allocation3 + $0xf0] sm:$0xff]
    %v148 = vld [vmem:[#allocation3 + $0xf8] sm:$0xff]
    %v149 = vld [vmem:[%s4] sm:$0xf]
    %v151 = vperm.slane %v149, 0
    %v152 = vperm.slane %v149, 1
    %v153 = vperm.slane %v149, 2
    %v154 = vperm.slane %v149, 3
    %v167 = vunpack.c.l.b16 %v109
    %v168 = vunpack.c.l.b16 %v110
    %v169 = vunpack.c.l.b16 %v111
    %v170 = vunpack.c.l.b16 %v112
    %v171 = vunpack.c.l.b16 %v113
    %v172 = vunpack.c.l.b16 %v114
    %v173 = vunpack.c.l.b16 %v115
    %v174 = vunpack.c.l.b16 %v116
    %v175 = vpack.c.b16 %v168, %v167
    %v176 = vpack.c.b16 %v170, %v169
    %v177 = vpack.c.b16 %v172, %v171
    %v178 = vpack.c.b16 %v174, %v173
    %v215 = vunpack.c.l.b16 %v117
    %v216 = vunpack.c.h.b16 %v117
    %v217 = vunpack.c.l.b16 %v118
    %v218 = vunpack.c.h.b16 %v118
    %v219 = vunpack.c.l.b16 %v119
    %v220 = vunpack.c.h.b16 %v119
    %v221 = vunpack.c.l.b16 %v120
    %v222 = vunpack.c.h.b16 %v120
    %v223 = vunpack.c.l.b16 %v121
    %v224 = vunpack.c.h.b16 %v121
    %v225 = vunpack.c.l.b16 %v122
    %v226 = vunpack.c.h.b16 %v122
    %v227 = vunpack.c.l.b16 %v123
    %v228 = vunpack.c.h.b16 %v123
    %v229 = vunpack.c.l.b16 %v124
    %v230 = vunpack.c.h.b16 %v124
    %v231 = vunpack.c.l.b16 %v125
    %v232 = vunpack.c.h.b16 %v125
    %v233 = vunpack.c.l.b16 %v126
    %v234 = vunpack.c.h.b16 %v126
    %v235 = vunpack.c.l.b16 %v127
    %v236 = vunpack.c.h.b16 %v127
    %v237 = vunpack.c.l.b16 %v128
    %v238 = vunpack.c.h.b16 %v128
    %v239 = vunpack.c.l.b16 %v129
    %v240 = vunpack.c.h.b16 %v129
    %v241 = vunpack.c.l.b16 %v130
    %v242 = vunpack.c.h.b16 %v130
    %v243 = vunpack.c.l.b16 %v131
    %v244 = vunpack.c.h.b16 %v131
    %v245 = vunpack.c.l.b16 %v132
    %v246 = vunpack.c.h.b16 %v132
    %v247 = vunpack.c.l.b16 %v133
    %v248 = vunpack.c.h.b16 %v133
    %v249 = vunpack.c.l.b16 %v134
    %v250 = vunpack.c.h.b16 %v134
    %v251 = vunpack.c.l.b16 %v135
    %v252 = vunpack.c.h.b16 %v135
    %v253 = vunpack.c.l.b16 %v136
    %v254 = vunpack.c.h.b16 %v136
    %v255 = vunpack.c.l.b16 %v137
    %v256 = vunpack.c.h.b16 %v137
    %v257 = vunpack.c.l.b16 %v138
    %v258 = vunpack.c.h.b16 %v138
    %v259 = vunpack.c.l.b16 %v139
    %v260 = vunpack.c.h.b16 %v139
    %v261 = vunpack.c.l.b16 %v140
    %v262 = vunpack.c.h.b16 %v140
    %v263 = vunpack.c.l.b16 %v141
    %v264 = vunpack.c.h.b16 %v141
    %v265 = vunpack.c.l.b16 %v142
    %v266 = vunpack.c.h.b16 %v142
    %v267 = vunpack.c.l.b16 %v143
    %v268 = vunpack.c.h.b16 %v143
    %v269 = vunpack.c.l.b16 %v144
    %v270 = vunpack.c.h.b16 %v144
    %v271 = vunpack.c.l.b16 %v145
    %v272 = vunpack.c.h.b16 %v145
    %v273 = vunpack.c.l.b16 %v146
    %v274 = vunpack.c.h.b16 %v146
    %v275 = vunpack.c.l.b16 %v147
    %v276 = vunpack.c.h.b16 %v147
    %v277 = vunpack.c.l.b16 %v148
    %v278 = vunpack.c.h.b16 %v148
    %v279 = vpack.c.b16 %v219, %v215
    %v280 = vpack.c.b16 %v220, %v216
    %v281 = vpack.c.b16 %v221, %v217
    %v282 = vpack.c.b16 %v222, %v218
    %v283 = vpack.c.b16 %v227, %v223
    %v284 = vpack.c.b16 %v228, %v224
    %v285 = vpack.c.b16 %v229, %v225
    %v286 = vpack.c.b16 %v230, %v226
    %v287 = vpack.c.b16 %v235, %v231
    %v288 = vpack.c.b16 %v236, %v232
    %v289 = vpack.c.b16 %v237, %v233
    %v290 = vpack.c.b16 %v238, %v234
    %v291 = vpack.c.b16 %v243, %v239
    %v292 = vpack.c.b16 %v244, %v240
    %v293 = vpack.c.b16 %v245, %v241
    %v294 = vpack.c.b16 %v246, %v242
    %v295 = vpack.c.b16 %v251, %v247
    %v296 = vpack.c.b16 %v252, %v248
    %v297 = vpack.c.b16 %v253, %v249
    %v298 = vpack.c.b16 %v254, %v250
    %v299 = vpack.c.b16 %v259, %v255
    %v300 = vpack.c.b16 %v260, %v256
    %v301 = vpack.c.b16 %v261, %v257
    %v302 = vpack.c.b16 %v262, %v258
    %v303 = vpack.c.b16 %v267, %v263
    %v304 = vpack.c.b16 %v268, %v264
    %v305 = vpack.c.b16 %v269, %v265
    %v306 = vpack.c.b16 %v270, %v266
    %v307 = vpack.c.b16 %v275, %v271
    %v308 = vpack.c.b16 %v276, %v272
    %v309 = vpack.c.b16 %v277, %v273
    %v310 = vpack.c.b16 %v278, %v274
    %343 = vmatpush.bf16.msra.mxu0 %v307
    %344 = vmatpush.bf16.msra.mxu0 %v303
    %345 = vmatpush.bf16.msra.mxu0 %v299
    %346 = vmatpush.bf16.msra.mxu0 %v295
    %347 = vmatpush.bf16.msra.mxu0 %v291
    %348 = vmatpush.bf16.msra.mxu0 %v287
    %349 = vmatpush.bf16.msra.mxu0 %v283
    %350 = vmatpush.bf16.msra.mxu0 %v279
    %351 = vmatmul.bf16.gmra.mxu0 %v175
    %v352 = vpop.f32.mrf.mxu0
    %v353 = vadd.f32 %v151, %v352
    %v354 = vpop.f32.mrf.mxu0
    %v355 = vadd.f32 %v151, %v354
    %356 = vmatmul.bf16.gmra.mxu0 %v176
    %v357 = vpop.f32.mrf.mxu0
    %v358 = vadd.f32 %v151, %v357
    %v359 = vpop.f32.mrf.mxu0
    %v360 = vadd.f32 %v151, %v359
    %361 = vmatmul.bf16.gmra.mxu0 %v177
    %v362 = vpop.f32.mrf.mxu0
    %v363 = vadd.f32 %v151, %v362
    %v364 = vpop.f32.mrf.mxu0
    %v365 = vadd.f32 %v151, %v364
    %366 = vmatmul.bf16.gmra.mxu0 %v178
    %v367 = vpop.f32.mrf.mxu0
    %v368 = vadd.f32 %v151, %v367
    %v369 = vpop.f32.mrf.mxu0
    %v370 = vadd.f32 %v151, %v369
    %371 = vdwg.mxu0
    %372 = vmatpush.bf16.msra.mxu0 %v308
    %373 = vmatpush.bf16.msra.mxu0 %v304
    %374 = vmatpush.bf16.msra.mxu0 %v300
    %375 = vmatpush.bf16.msra.mxu0 %v296
    %376 = vmatpush.bf16.msra.mxu0 %v292
    %377 = vmatpush.bf16.msra.mxu0 %v288
    %378 = vmatpush.bf16.msra.mxu0 %v284
    %379 = vmatpush.bf16.msra.mxu0 %v280
    %380 = vmatmul.bf16.gmra.mxu0 %v175
    %v381 = vpop.f32.mrf.mxu0
    %v382 = vadd.f32 %v152, %v381
    %v383 = vpop.f32.mrf.mxu0
    %v384 = vadd.f32 %v152, %v383
    %385 = vmatmul.bf16.gmra.mxu0 %v176
    %v386 = vpop.f32.mrf.mxu0
    %v387 = vadd.f32 %v152, %v386
    %v388 = vpop.f32.mrf.mxu0
    %v389 = vadd.f32 %v152, %v388
    %390 = vmatmul.bf16.gmra.mxu0 %v177
    %v391 = vpop.f32.mrf.mxu0
    %v392 = vadd.f32 %v152, %v391
    %v393 = vpop.f32.mrf.mxu0
    %v394 = vadd.f32 %v152, %v393
    %395 = vmatmul.bf16.gmra.mxu0 %v178
    %v396 = vpop.f32.mrf.mxu0
    %v397 = vadd.f32 %v152, %v396
    %v398 = vpop.f32.mrf.mxu0
    %v399 = vadd.f32 %v152, %v398
    %400 = vdwg.mxu0
    %401 = vmatpush.bf16.msra.mxu0 %v309
    %402 = vmatpush.bf16.msra.mxu0 %v305
    %403 = vmatpush.bf16.msra.mxu0 %v301
    %404 = vmatpush.bf16.msra.mxu0 %v297
    %405 = vmatpush.bf16.msra.mxu0 %v293
    %406 = vmatpush.bf16.msra.mxu0 %v289
    %407 = vmatpush.bf16.msra.mxu0 %v285
    %408 = vmatpush.bf16.msra.mxu0 %v281
    %409 = vmatmul.bf16.gmra.mxu0 %v175
    %v410 = vpop.f32.mrf.mxu0
    %v411 = vadd.f32 %v153, %v410
    %v412 = vpop.f32.mrf.mxu0
    %v413 = vadd.f32 %v153, %v412
    %414 = vmatmul.bf16.gmra.mxu0 %v176
    %v415 = vpop.f32.mrf.mxu0
    %v416 = vadd.f32 %v153, %v415
    %v417 = vpop.f32.mrf.mxu0
    %v418 = vadd.f32 %v153, %v417
    %419 = vmatmul.bf16.gmra.mxu0 %v177
    %v420 = vpop.f32.mrf.mxu0
    %v421 = vadd.f32 %v153, %v420
    %v422 = vpop.f32.mrf.mxu0
    %v423 = vadd.f32 %v153, %v422
    %424 = vmatmul.bf16.gmra.mxu0 %v178
    %v425 = vpop.f32.mrf.mxu0
    %v426 = vadd.f32 %v153, %v425
    %v427 = vpop.f32.mrf.mxu0
    %v428 = vadd.f32 %v153, %v427
    %429 = vdwg.mxu0
    %430 = vmatpush.bf16.msra.mxu0 %v310
    %431 = vmatpush.bf16.msra.mxu0 %v306
    %432 = vmatpush.bf16.msra.mxu0 %v302
    %433 = vmatpush.bf16.msra.mxu0 %v298
    %434 = vmatpush.bf16.msra.mxu0 %v294
    %435 = vmatpush.bf16.msra.mxu0 %v290
    %436 = vmatpush.bf16.msra.mxu0 %v286
    %437 = vmatpush.bf16.msra.mxu0 %v282
    %438 = vmatmul.bf16.gmra.mxu0 %v175
    %v439 = vpop.f32.mrf.mxu0
    %v440 = vadd.f32 %v154, %v439
    %v441 = vpop.f32.mrf.mxu0
    %v442 = vadd.f32 %v154, %v441
    %443 = vmatmul.bf16.gmra.mxu0 %v176
    %v444 = vpop.f32.mrf.mxu0
    %v445 = vadd.f32 %v154, %v444
    %v446 = vpop.f32.mrf.mxu0
    %v447 = vadd.f32 %v154, %v446
    %448 = vmatmul.bf16.gmra.mxu0 %v177
    %v449 = vpop.f32.mrf.mxu0
    %v450 = vadd.f32 %v154, %v449
    %v451 = vpop.f32.mrf.mxu0
    %v452 = vadd.f32 %v154, %v451
    %453 = vmatmul.bf16.gmra.mxu0 %v178
    %v454 = vpop.f32.mrf.mxu0
    %v455 = vadd.f32 %v154, %v454
    %v456 = vpop.f32.mrf.mxu0
    %v457 = vadd.f32 %v154, %v456
    %458 = vdwg.mxu0
    %459 = vst [vmem:[#allocation2] sm:$0xff] %v353
    %460 = vst [vmem:[#allocation2 + $0x8] sm:$0xff] %v382
    %461 = vst [vmem:[#allocation2 + $0x10] sm:$0xff] %v411
    %462 = vst [vmem:[#allocation2 + $0x18] sm:$0xff] %v440
    %463 = vst [vmem:[#allocation2 + $0x20] sm:$0xff] %v355
    %464 = vst [vmem:[#allocation2 + $0x28] sm:$0xff] %v384
    %465 = vst [vmem:[#allocation2 + $0x30] sm:$0xff] %v413
    %466 = vst [vmem:[#allocation2 + $0x38] sm:$0xff] %v442
    %467 = vst [vmem:[#allocation2 + $0x40] sm:$0xff] %v358
    %468 = vst [vmem:[#allocation2 + $0x48] sm:$0xff] %v387
    %469 = vst [vmem:[#allocation2 + $0x50] sm:$0xff] %v416
    %470 = vst [vmem:[#allocation2 + $0x58] sm:$0xff] %v445
    %471 = vst [vmem:[#allocation2 + $0x60] sm:$0xff] %v360
    %472 = vst [vmem:[#allocation2 + $0x68] sm:$0xff] %v389
    %473 = vst [vmem:[#allocation2 + $0x70] sm:$0xff] %v418
    %474 = vst [vmem:[#allocation2 + $0x78] sm:$0xff] %v447
    %475 = vst [vmem:[#allocation2 + $0x80] sm:$0xff] %v363
    %476 = vst [vmem:[#allocation2 + $0x88] sm:$0xff] %v392
    %477 = vst [vmem:[#allocation2 + $0x90] sm:$0xff] %v421
    %478 = vst [vmem:[#allocation2 + $0x98] sm:$0xff] %v450
    %479 = vst [vmem:[#allocation2 + $0xa0] sm:$0xff] %v365
    %480 = vst [vmem:[#allocation2 + $0xa8] sm:$0xff] %v394
    %481 = vst [vmem:[#allocation2 + $0xb0] sm:$0xff] %v423
    %482 = vst [vmem:[#allocation2 + $0xb8] sm:$0xff] %v452
    %483 = vst [vmem:[#allocation2 + $0xc0] sm:$0xff] %v368
    %484 = vst [vmem:[#allocation2 + $0xc8] sm:$0xff] %v397
    %485 = vst [vmem:[#allocation2 + $0xd0] sm:$0xff] %v426
    %486 = vst [vmem:[#allocation2 + $0xd8] sm:$0xff] %v455
    %487 = vst [vmem:[#allocation2 + $0xe0] sm:$0xff] %v370
    %488 = vst [vmem:[#allocation2 + $0xe8] sm:$0xff] %v399
    %489 = vst [vmem:[#allocation2 + $0xf0] sm:$0xff] %v428
    %490 = vst [vmem:[#allocation2 + $0xf8] sm:$0xff] %v457
    %v491 = vld [vmem:[#allocation5] sm:$0xff]
    %v492 = vld [vmem:[#allocation5 + $0x8] sm:$0xff]
    %v493 = vld [vmem:[#allocation5 + $0x10] sm:$0xff]
    %v494 = vld [vmem:[#allocation5 + $0x18] sm:$0xff]
    %v495 = vld [vmem:[#allocation5 + $0x20] sm:$0xff]
    %v496 = vld [vmem:[#allocation5 + $0x28] sm:$0xff]
    %v497 = vld [vmem:[#allocation5 + $0x30] sm:$0xff]
    %v498 = vld [vmem:[#allocation5 + $0x38] sm:$0xff]
    %v499 = vld [vmem:[#allocation5 + $0x40] sm:$0xff]
    %v500 = vld [vmem:[#allocation5 + $0x48] sm:$0xff]
    %v501 = vld [vmem:[#allocation5 + $0x50] sm:$0xff]
    %v502 = vld [vmem:[#allocation5 + $0x58] sm:$0xff]
    %v503 = vld [vmem:[#allocation5 + $0x60] sm:$0xff]
    %v504 = vld [vmem:[#allocation5 + $0x68] sm:$0xff]
    %v505 = vld [vmem:[#allocation5 + $0x70] sm:$0xff]
    %v506 = vld [vmem:[#allocation5 + $0x78] sm:$0xff]
    %v507 = vld [vmem:[#allocation5 + $0x80] sm:$0xff]
    %v508 = vld [vmem:[#allocation5 + $0x88] sm:$0xff]
    %v509 = vld [vmem:[#allocation5 + $0x90] sm:$0xff]
    %v510 = vld [vmem:[#allocation5 + $0x98] sm:$0xff]
    %v511 = vld [vmem:[#allocation5 + $0xa0] sm:$0xff]
    %v512 = vld [vmem:[#allocation5 + $0xa8] sm:$0xff]
    %v513 = vld [vmem:[#allocation5 + $0xb0] sm:$0xff]
    %v514 = vld [vmem:[#allocation5 + $0xb8] sm:$0xff]
    %v515 = vld [vmem:[#allocation5 + $0xc0] sm:$0xff]
    %v516 = vld [vmem:[#allocation5 + $0xc8] sm:$0xff]
    %v517 = vld [vmem:[#allocation5 + $0xd0] sm:$0xff]
    %v518 = vld [vmem:[#allocation5 + $0xd8] sm:$0xff]
    %v519 = vld [vmem:[#allocation5 + $0xe0] sm:$0xff]
    %v520 = vld [vmem:[#allocation5 + $0xe8] sm:$0xff]
    %v521 = vld [vmem:[#allocation5 + $0xf0] sm:$0xff]
    %v522 = vld [vmem:[#allocation5 + $0xf8] sm:$0xff]
    %v523 = vld [vmem:[#allocation7] sm:$0xff]
    %v524 = vld [vmem:[#allocation7 + $0x8] sm:$0xff]
    %v525 = vld [vmem:[#allocation7 + $0x10] sm:$0xff]
    %v526 = vld [vmem:[#allocation7 + $0x18] sm:$0xff]
    %v527 = vld [vmem:[#allocation7 + $0x20] sm:$0xff]
    %v528 = vld [vmem:[#allocation7 + $0x28] sm:$0xff]
    %v529 = vld [vmem:[#allocation7 + $0x30] sm:$0xff]
    %v530 = vld [vmem:[#allocation7 + $0x38] sm:$0xff]
    %v531 = vld [vmem:[#allocation7 + $0x40] sm:$0xff]
    %v532 = vld [vmem:[#allocation7 + $0x48] sm:$0xff]
    %v533 = vld [vmem:[#allocation7 + $0x50] sm:$0xff]
    %v534 = vld [vmem:[#allocation7 + $0x58] sm:$0xff]
    %v535 = vld [vmem:[#allocation7 + $0x60] sm:$0xff]
    %v536 = vld [vmem:[#allocation7 + $0x68] sm:$0xff]
    %v537 = vld [vmem:[#allocation7 + $0x70] sm:$0xff]
    %v538 = vld [vmem:[#allocation7 + $0x78] sm:$0xff]
    %v539 = vld [vmem:[#allocation7 + $0x80] sm:$0xff]
    %v540 = vld [vmem:[#allocation7 + $0x88] sm:$0xff]
    %v541 = vld [vmem:[#allocation7 + $0x90] sm:$0xff]
    %v542 = vld [vmem:[#allocation7 + $0x98] sm:$0xff]
    %v543 = vld [vmem:[#allocation7 + $0xa0] sm:$0xff]
    %v544 = vld [vmem:[#allocation7 + $0xa8] sm:$0xff]
    %v545 = vld [vmem:[#allocation7 + $0xb0] sm:$0xff]
    %v546 = vld [vmem:[#allocation7 + $0xb8] sm:$0xff]
    %v547 = vld [vmem:[#allocation7 + $0xc0] sm:$0xff]
    %v548 = vld [vmem:[#allocation7 + $0xc8] sm:$0xff]
    %v549 = vld [vmem:[#allocation7 + $0xd0] sm:$0xff]
    %v550 = vld [vmem:[#allocation7 + $0xd8] sm:$0xff]
    %v551 = vld [vmem:[#allocation7 + $0xe0] sm:$0xff]
    %v552 = vld [vmem:[#allocation7 + $0xe8] sm:$0xff]
    %v553 = vld [vmem:[#allocation7 + $0xf0] sm:$0xff]
    %v554 = vld [vmem:[#allocation7 + $0xf8] sm:$0xff]
    %v555 = vld [vmem:[#allocation7 + $0x100] sm:$0xff]
    %v556 = vld [vmem:[#allocation7 + $0x108] sm:$0xff]
    %v557 = vld [vmem:[#allocation7 + $0x110] sm:$0xff]
    %v558 = vld [vmem:[#allocation7 + $0x118] sm:$0xff]
    %v559 = vld [vmem:[#allocation7 + $0x120] sm:$0xff]
    %v560 = vld [vmem:[#allocation7 + $0x128] sm:$0xff]
    %v561 = vld [vmem:[#allocation7 + $0x130] sm:$0xff]
    %v562 = vld [vmem:[#allocation7 + $0x138] sm:$0xff]
    %v563 = vld [vmem:[#allocation7 + $0x140] sm:$0xff]
    %v564 = vld [vmem:[#allocation7 + $0x148] sm:$0xff]
    %v565 = vld [vmem:[#allocation7 + $0x150] sm:$0xff]
    %v566 = vld [vmem:[#allocation7 + $0x158] sm:$0xff]
    %v567 = vld [vmem:[#allocation7 + $0x160] sm:$0xff]
    %v568 = vld [vmem:[#allocation7 + $0x168] sm:$0xff]
    %v569 = vld [vmem:[#allocation7 + $0x170] sm:$0xff]
    %v570 = vld [vmem:[#allocation7 + $0x178] sm:$0xff]
    %v571 = vld [vmem:[#allocation7 + $0x180] sm:$0xff]
    %v572 = vld [vmem:[#allocation7 + $0x188] sm:$0xff]
    %v573 = vld [vmem:[#allocation7 + $0x190] sm:$0xff]
    %v574 = vld [vmem:[#allocation7 + $0x198] sm:$0xff]
    %v575 = vld [vmem:[#allocation7 + $0x1a0] sm:$0xff]
    %v576 = vld [vmem:[#allocation7 + $0x1a8] sm:$0xff]
    %v577 = vld [vmem:[#allocation7 + $0x1b0] sm:$0xff]
    %v578 = vld [vmem:[#allocation7 + $0x1b8] sm:$0xff]
    %v579 = vld [vmem:[#allocation7 + $0x1c0] sm:$0xff]
    %v580 = vld [vmem:[#allocation7 + $0x1c8] sm:$0xff]
    %v581 = vld [vmem:[#allocation7 + $0x1d0] sm:$0xff]
    %v582 = vld [vmem:[#allocation7 + $0x1d8] sm:$0xff]
    %v583 = vld [vmem:[#allocation7 + $0x1e0] sm:$0xff]
    %v584 = vld [vmem:[#allocation7 + $0x1e8] sm:$0xff]
    %v585 = vld [vmem:[#allocation7 + $0x1f0] sm:$0xff]
    %v586 = vld [vmem:[#allocation7 + $0x1f8] sm:$0xff]
    %v587 = vld [vmem:[#allocation8] sm:$0xff]
    %v588 = vld [vmem:[#allocation8 + $0x8] sm:$0xff]
    %v589 = vld [vmem:[#allocation8 + $0x10] sm:$0xff]
    %v590 = vld [vmem:[#allocation8 + $0x18] sm:$0xff]
    %v591 = vld [vmem:[#allocation8 + $0x20] sm:$0xff]
    %v592 = vld [vmem:[#allocation8 + $0x28] sm:$0xff]
    %v593 = vld [vmem:[#allocation8 + $0x30] sm:$0xff]
    %v594 = vld [vmem:[#allocation8 + $0x38] sm:$0xff]
    %v595 = vld [vmem:[#allocation8 + $0x40] sm:$0xff]
    %v596 = vld [vmem:[#allocation8 + $0x48] sm:$0xff]
    %v597 = vld [vmem:[#allocation8 + $0x50] sm:$0xff]
    %v598 = vld [vmem:[#allocation8 + $0x58] sm:$0xff]
    %v599 = vld [vmem:[#allocation8 + $0x60] sm:$0xff]
    %v600 = vld [vmem:[#allocation8 + $0x68] sm:$0xff]
    %v601 = vld [vmem:[#allocation8 + $0x70] sm:$0xff]
    %v602 = vld [vmem:[#allocation8 + $0x78] sm:$0xff]
    %v603 = vld [vmem:[#allocation8 + $0x80] sm:$0xff]
    %v604 = vld [vmem:[#allocation8 + $0x88] sm:$0xff]
    %v605 = vld [vmem:[#allocation8 + $0x90] sm:$0xff]
    %v606 = vld [vmem:[#allocation8 + $0x98] sm:$0xff]
    %v607 = vld [vmem:[#allocation8 + $0xa0] sm:$0xff]
    %v608 = vld [vmem:[#allocation8 + $0xa8] sm:$0xff]
    %v609 = vld [vmem:[#allocation8 + $0xb0] sm:$0xff]
    %v610 = vld [vmem:[#allocation8 + $0xb8] sm:$0xff]
    %v611 = vld [vmem:[#allocation8 + $0xc0] sm:$0xff]
    %v612 = vld [vmem:[#allocation8 + $0xc8] sm:$0xff]
    %v613 = vld [vmem:[#allocation8 + $0xd0] sm:$0xff]
    %v614 = vld [vmem:[#allocation8 + $0xd8] sm:$0xff]
    %v615 = vld [vmem:[#allocation8 + $0xe0] sm:$0xff]
    %v616 = vld [vmem:[#allocation8 + $0xe8] sm:$0xff]
    %v617 = vld [vmem:[#allocation8 + $0xf0] sm:$0xff]
    %v618 = vld [vmem:[#allocation8 + $0xf8] sm:$0xff]
    %v619 = vld [vmem:[#allocation8 + $0x100] sm:$0xff]
    %v620 = vld [vmem:[#allocation8 + $0x108] sm:$0xff]
    %v621 = vld [vmem:[#allocation8 + $0x110] sm:$0xff]
    %v622 = vld [vmem:[#allocation8 + $0x118] sm:$0xff]
    %v623 = vld [vmem:[#allocation8 + $0x120] sm:$0xff]
    %v624 = vld [vmem:[#allocation8 + $0x128] sm:$0xff]
    %v625 = vld [vmem:[#allocation8 + $0x130] sm:$0xff]
    %v626 = vld [vmem:[#allocation8 + $0x138] sm:$0xff]
    %v627 = vld [vmem:[#allocation8 + $0x140] sm:$0xff]
    %v628 = vld [vmem:[#allocation8 + $0x148] sm:$0xff]
    %v629 = vld [vmem:[#allocation8 + $0x150] sm:$0xff]
    %v630 = vld [vmem:[#allocation8 + $0x158] sm:$0xff]
    %v631 = vld [vmem:[#allocation8 + $0x160] sm:$0xff]
    %v632 = vld [vmem:[#allocation8 + $0x168] sm:$0xff]
    %v633 = vld [vmem:[#allocation8 + $0x170] sm:$0xff]
    %v634 = vld [vmem:[#allocation8 + $0x178] sm:$0xff]
    %v635 = vld [vmem:[#allocation8 + $0x180] sm:$0xff]
    %v636 = vld [vmem:[#allocation8 + $0x188] sm:$0xff]
    %v637 = vld [vmem:[#allocation8 + $0x190] sm:$0xff]
    %v638 = vld [vmem:[#allocation8 + $0x198] sm:$0xff]
    %v639 = vld [vmem:[#allocation8 + $0x1a0] sm:$0xff]
    %v640 = vld [vmem:[#allocation8 + $0x1a8] sm:$0xff]
    %v641 = vld [vmem:[#allocation8 + $0x1b0] sm:$0xff]
    %v642 = vld [vmem:[#allocation8 + $0x1b8] sm:$0xff]
    %v643 = vld [vmem:[#allocation8 + $0x1c0] sm:$0xff]
    %v644 = vld [vmem:[#allocation8 + $0x1c8] sm:$0xff]
    %v645 = vld [vmem:[#allocation8 + $0x1d0] sm:$0xff]
    %v646 = vld [vmem:[#allocation8 + $0x1d8] sm:$0xff]
    %v647 = vld [vmem:[#allocation8 + $0x1e0] sm:$0xff]
    %v648 = vld [vmem:[#allocation8 + $0x1e8] sm:$0xff]
    %v649 = vld [vmem:[#allocation8 + $0x1f0] sm:$0xff]
    %v650 = vld [vmem:[#allocation8 + $0x1f8] sm:$0xff]
    %v651 = vld [vmem:[%s6] sm:$0xf]
    %v652 = vld [vmem:[%s8] sm:$0xf]
    %vm653 = vcmp.gt.s32.totalorder %v108, 0
    %v654 = vld [vmem:[#allocation2] sm:$0xff]
    %v655 = vld [vmem:[#allocation2 + $0x8] sm:$0xff]
    %v656 = vld [vmem:[#allocation2 + $0x10] sm:$0xff]
    %v657 = vld [vmem:[#allocation2 + $0x18] sm:$0xff]
    %v690 = vunpack.c.l.b16 %v491
    %v691 = vunpack.c.h.b16 %v491
    %v692 = vunpack.c.l.b16 %v492
    %v693 = vunpack.c.h.b16 %v492
    %v694 = vunpack.c.l.b16 %v493
    %v695 = vunpack.c.h.b16 %v493
    %v696 = vunpack.c.l.b16 %v494
    %v697 = vunpack.c.h.b16 %v494
    %v698 = vunpack.c.l.b16 %v495
    %v699 = vunpack.c.h.b16 %v495
    %v700 = vunpack.c.l.b16 %v496
    %v701 = vunpack.c.h.b16 %v496
    %v702 = vunpack.c.l.b16 %v497
    %v703 = vunpack.c.h.b16 %v497
    %v704 = vunpack.c.l.b16 %v498
    %v705 = vunpack.c.h.b16 %v498
    %v706 = vunpack.c.l.b16 %v499
    %v707 = vunpack.c.h.b16 %v499
    %v708 = vunpack.c.l.b16 %v500
    %v709 = vunpack.c.h.b16 %v500
    %v710 = vunpack.c.l.b16 %v501
    %v711 = vunpack.c.h.b16 %v501
    %v712 = vunpack.c.l.b16 %v502
    %v713 = vunpack.c.h.b16 %v502
    %v714 = vunpack.c.l.b16 %v503
    %v715 = vunpack.c.h.b16 %v503
    %v716 = vunpack.c.l.b16 %v504
    %v717 = vunpack.c.h.b16 %v504
    %v718 = vunpack.c.l.b16 %v505
    %v719 = vunpack.c.h.b16 %v505
    %v720 = vunpack.c.l.b16 %v506
    %v721 = vunpack.c.h.b16 %v506
    %v722 = vunpack.c.l.b16 %v507
    %v723 = vunpack.c.h.b16 %v507
    %v724 = vunpack.c.l.b16 %v508
    %v725 = vunpack.c.h.b16 %v508
    %v726 = vunpack.c.l.b16 %v509
    %v727 = vunpack.c.h.b16 %v509
    %v728 = vunpack.c.l.b16 %v510
    %v729 = vunpack.c.h.b16 %v510
    %v730 = vunpack.c.l.b16 %v511
    %v731 = vunpack.c.h.b16 %v511
    %v732 = vunpack.c.l.b16 %v512
    %v733 = vunpack.c.h.b16 %v512
    %v734 = vunpack.c.l.b16 %v513
    %v735 = vunpack.c.h.b16 %v513
    %v736 = vunpack.c.l.b16 %v514
    %v737 = vunpack.c.h.b16 %v514
    %v738 = vunpack.c.l.b16 %v515
    %v739 = vunpack.c.h.b16 %v515
    %v740 = vunpack.c.l.b16 %v516
    %v741 = vunpack.c.h.b16 %v516
    %v742 = vunpack.c.l.b16 %v517
    %v743 = vunpack.c.h.b16 %v517
    %v744 = vunpack.c.l.b16 %v518
    %v745 = vunpack.c.h.b16 %v518
    %v746 = vunpack.c.l.b16 %v519
    %v747 = vunpack.c.h.b16 %v519
    %v748 = vunpack.c.l.b16 %v520
    %v749 = vunpack.c.h.b16 %v520
    %v750 = vunpack.c.l.b16 %v521
    %v751 = vunpack.c.h.b16 %v521
    %v752 = vunpack.c.l.b16 %v522
    %v753 = vunpack.c.h.b16 %v522
    %v754 = vpack.c.b16 %v694, %v690
    %v755 = vpack.c.b16 %v695, %v691
    %v756 = vpack.c.b16 %v696, %v692
    %v757 = vpack.c.b16 %v697, %v693
    %v758 = vpack.c.b16 %v702, %v698
    %v759 = vpack.c.b16 %v703, %v699
    %v760 = vpack.c.b16 %v704, %v700
    %v761 = vpack.c.b16 %v705, %v701
    %v762 = vpack.c.b16 %v710, %v706
    %v763 = vpack.c.b16 %v711, %v707
    %v764 = vpack.c.b16 %v712, %v708
    %v765 = vpack.c.b16 %v713, %v709
    %v766 = vpack.c.b16 %v718, %v714
    %v767 = vpack.c.b16 %v719, %v715
    %v768 = vpack.c.b16 %v720, %v716
    %v769 = vpack.c.b16 %v721, %v717
    %v770 = vpack.c.b16 %v726, %v722
    %v771 = vpack.c.b16 %v727, %v723
    %v772 = vpack.c.b16 %v728, %v724
    %v773 = vpack.c.b16 %v729, %v725
    %v774 = vpack.c.b16 %v734, %v730
    %v775 = vpack.c.b16 %v735, %v731
    %v776 = vpack.c.b16 %v736, %v732
    %v777 = vpack.c.b16 %v737, %v733
    %v778 = vpack.c.b16 %v742, %v738
    %v779 = vpack.c.b16 %v743, %v739
    %v780 = vpack.c.b16 %v744, %v740
    %v781 = vpack.c.b16 %v745, %v741
    %v782 = vpack.c.b16 %v750, %v746
    %v783 = vpack.c.b16 %v751, %v747
    %v784 = vpack.c.b16 %v752, %v748
    %v785 = vpack.c.b16 %v753, %v749
    %818 = vmatpush.bf16.msra.mxu0 %v782
    %819 = vmatpush.bf16.msra.mxu0 %v778
    %820 = vmatpush.bf16.msra.mxu0 %v774
    %821 = vmatpush.bf16.msra.mxu0 %v770
    %822 = vmatpush.bf16.msra.mxu0 %v766
    %823 = vmatpush.bf16.msra.mxu0 %v762
    %824 = vmatpush.bf16.msra.mxu0 %v758
    %825 = vmatpush.bf16.msra.mxu0 %v754
    %826 = vmatmul.bf16.gmra.mxu0 0
    %v827 = vpop.f32.mrf.mxu0
    %v828 = vadd.f32 0.0, %v827
    %v829 = vpop.f32.mrf.mxu0
    %830 = vdwg.mxu0
    %831 = vmatpush.bf16.msra.mxu0 %v783
    %832 = vmatpush.bf16.msra.mxu0 %v779
    %833 = vmatpush.bf16.msra.mxu0 %v775
    %834 = vmatpush.bf16.msra.mxu0 %v771
    %835 = vmatpush.bf16.msra.mxu0 %v767
    %836 = vmatpush.bf16.msra.mxu0 %v763
    %837 = vmatpush.bf16.msra.mxu0 %v759
    %838 = vmatpush.bf16.msra.mxu0 %v755
    %839 = vmatmul.bf16.gmra.mxu0 0
    %v840 = vpop.f32.mrf.mxu0
    %v841 = vadd.f32 0.0, %v840
    %v842 = vpop.f32.mrf.mxu0
    %843 = vdwg.mxu0
    %844 = vmatpush.bf16.msra.mxu0 %v784
    %845 = vmatpush.bf16.msra.mxu0 %v780
    %846 = vmatpush.bf16.msra.mxu0 %v776
    %847 = vmatpush.bf16.msra.mxu0 %v772
    %848 = vmatpush.bf16.msra.mxu0 %v768
    %849 = vmatpush.bf16.msra.mxu0 %v764
    %850 = vmatpush.bf16.msra.mxu0 %v760
    %851 = vmatpush.bf16.msra.mxu0 %v756
    %852 = vmatmul.bf16.gmra.mxu0 0
    %v853 = vpop.f32.mrf.mxu0
    %v854 = vadd.f32 0.0, %v853
    %v855 = vpop.f32.mrf.mxu0
    %856 = vdwg.mxu0
    %857 = vmatpush.bf16.msra.mxu0 %v785
    %858 = vmatpush.bf16.msra.mxu0 %v781
    %859 = vmatpush.bf16.msra.mxu0 %v777
    %860 = vmatpush.bf16.msra.mxu0 %v773
    %861 = vmatpush.bf16.msra.mxu0 %v769
    %862 = vmatpush.bf16.msra.mxu0 %v765
    %863 = vmatpush.bf16.msra.mxu0 %v761
    %864 = vmatpush.bf16.msra.mxu0 %v757
    %865 = vmatmul.bf16.gmra.mxu0 0
    %v866 = vpop.f32.mrf.mxu0
    %v867 = vadd.f32 0.0, %v866
    %v868 = vpop.f32.mrf.mxu0
    %869 = vdwg.mxu0
    %v870 = vadd.f32 %v654, %v828
    %v871 = vadd.f32 %v655, %v841
    %v872 = vadd.f32 %v656, %v854
    %v873 = vadd.f32 %v657, %v867
    %v874 = vmul.f32 %v870, 0.5
    %v875 = vmul.f32 %v871, 0.5
    %v876 = vmul.f32 %v872, 0.5
    %v877 = vtanh.pop %v874
    %v878 = vtanh.pop %v875
    %v879 = vtanh.pop %v876
    %v880 = vmul.f32 %v877, 0.5
    %v881 = vmul.f32 %v878, 0.5
    %v882 = vmul.f32 %v879, 0.5
    %v883 = vadd.f32 %v880, 0.5
    %v884 = vadd.f32 %v881, 0.5
    %v885 = vadd.f32 %v882, 0.5
    %v886 = vtanh.pop %v873
    %v887 = vmul.f32 %v884, 0.0
    %v888 = vmul.f32 %v883, %v886
    %v889 = vadd.f32 %v887, %v888
    %v890 = vtanh.pop %v889
    %v891 = vmul.f32 %v885, %v890
    %v892 = vsel %vm653, 1, 0
    %893 = vset.pattern.permute.xlu0 0
    %894 = vperm.xlu0 %893, %v892
    %v895 = vpop.permute.xlu0 %894
    %vm896 = vcmp.eq.s32.totalorder %v895, 1
    %v897 = vsel %vm896, %v891, 0.0
    %v898 = vsel %vm896, %v889, 0.0
    %v899 = vpack.c.bf16 %v897, %v897
    %v900 = vpack.c.bf16 0.0, 0.0
    %v902 = vperm.slane %v651, 0
    %v903 = vperm.slane %v651, 1
    %v904 = vperm.slane %v651, 2
    %v905 = vperm.slane %v651, 3
    %v974 = vunpack.c.l.b16 %v523
    %v975 = vunpack.c.h.b16 %v523
    %v976 = vunpack.c.l.b16 %v524
    %v977 = vunpack.c.h.b16 %v524
    %v978 = vunpack.c.l.b16 %v525
    %v979 = vunpack.c.h.b16 %v525
    %v980 = vunpack.c.l.b16 %v526
    %v981 = vunpack.c.h.b16 %v526
    %v982 = vunpack.c.l.b16 %v527
    %v983 = vunpack.c.h.b16 %v527
    %v984 = vunpack.c.l.b16 %v528
    %v985 = vunpack.c.h.b16 %v528
    %v986 = vunpack.c.l.b16 %v529
    %v987 = vunpack.c.h.b16 %v529
    %v988 = vunpack.c.l.b16 %v530
    %v989 = vunpack.c.h.b16 %v530
    %v990 = vunpack.c.l.b16 %v531
    %v991 = vunpack.c.h.b16 %v531
    %v992 = vunpack.c.l.b16 %v532
    %v993 = vunpack.c.h.b16 %v532
    %v994 = vunpack.c.l.b16 %v533
    %v995 = vunpack.c.h.b16 %v533
    %v996 = vunpack.c.l.b16 %v534
    %v997 = vunpack.c.h.b16 %v534
    %v998 = vunpack.c.l.b16 %v535
    %v999 = vunpack.c.h.b16 %v535
    %v1000 = vunpack.c.l.b16 %v536
    %v1001 = vunpack.c.h.b16 %v536
    %v1002 = vunpack.c.l.b16 %v537
    %v1003 = vunpack.c.h.b16 %v537
    %v1004 = vunpack.c.l.b16 %v538
    %v1005 = vunpack.c.h.b16 %v538
    %v1006 = vunpack.c.l.b16 %v539
    %v1007 = vunpack.c.h.b16 %v539
    %v1008 = vunpack.c.l.b16 %v540
    %v1009 = vunpack.c.h.b16 %v540
    %v1010 = vunpack.c.l.b16 %v541
    %v1011 = vunpack.c.h.b16 %v541
    %v1012 = vunpack.c.l.b16 %v542
    %v1013 = vunpack.c.h.b16 %v542
    %v1014 = vunpack.c.l.b16 %v543
    %v1015 = vunpack.c.h.b16 %v543
    %v1016 = vunpack.c.l.b16 %v544
    %v1017 = vunpack.c.h.b16 %v544
    %v1018 = vunpack.c.l.b16 %v545
    %v1019 = vunpack.c.h.b16 %v545
    %v1020 = vunpack.c.l.b16 %v546
    %v1021 = vunpack.c.h.b16 %v546
    %v1022 = vunpack.c.l.b16 %v547
    %v1023 = vunpack.c.h.b16 %v547
    %v1024 = vunpack.c.l.b16 %v548
    %v1025 = vunpack.c.h.b16 %v548
    %v1026 = vunpack.c.l.b16 %v549
    %v1027 = vunpack.c.h.b16 %v549
    %v1028 = vunpack.c.l.b16 %v550
    %v1029 = vunpack.c.h.b16 %v550
    %v1030 = vunpack.c.l.b16 %v551
    %v1031 = vunpack.c.h.b16 %v551
    %v1032 = vunpack.c.l.b16 %v552
    %v1033 = vunpack.c.h.b16 %v552
    %v1034 = vunpack.c.l.b16 %v553
    %v1035 = vunpack.c.h.b16 %v553
    %v1036 = vunpack.c.l.b16 %v554
    %v1037 = vunpack.c.h.b16 %v554
    %v1038 = vunpack.c.l.b16 %v555
    %v1039 = vunpack.c.h.b16 %v555
    %v1040 = vunpack.c.l.b16 %v556
    %v1041 = vunpack.c.h.b16 %v556
    %v1042 = vunpack.c.l.b16 %v557
    %v1043 = vunpack.c.h.b16 %v557
    %v1044 = vunpack.c.l.b16 %v558
    %v1045 = vunpack.c.h.b16 %v558
    %v1046 = vunpack.c.l.b16 %v559
    %v1047 = vunpack.c.h.b16 %v559
    %v1048 = vunpack.c.l.b16 %v560
    %v1049 = vunpack.c.h.b16 %v560
    %v1050 = vunpack.c.l.b16 %v561
    %v1051 = vunpack.c.h.b16 %v561
    %v1052 = vunpack.c.l.b16 %v562
    %v1053 = vunpack.c.h.b16 %v562
    %v1054 = vunpack.c.l.b16 %v563
    %v1055 = vunpack.c.h.b16 %v563
    %v1056 = vunpack.c.l.b16 %v564
    %v1057 = vunpack.c.h.b16 %v564
    %v1058 = vunpack.c.l.b16 %v565
    %v1059 = vunpack.c.h.b16 %v565
    %v1060 = vunpack.c.l.b16 %v566
    %v1061 = vunpack.c.h.b16 %v566
    %v1062 = vunpack.c.l.b16 %v567
    %v1063 = vunpack.c.h.b16 %v567
    %v1064 = vunpack.c.l.b16 %v568
    %v1065 = vunpack.c.h.b16 %v568
    %v1066 = vunpack.c.l.b16 %v569
    %v1067 = vunpack.c.h.b16 %v569
    %v1068 = vunpack.c.l.b16 %v570
    %v1069 = vunpack.c.h.b16 %v570
    %v1070 = vunpack.c.l.b16 %v571
    %v1071 = vunpack.c.h.b16 %v571
    %v1072 = vunpack.c.l.b16 %v572
    %v1073 = vunpack.c.h.b16 %v572
    %v1074 = vunpack.c.l.b16 %v573
    %v1075 = vunpack.c.h.b16 %v573
    %v1076 = vunpack.c.l.b16 %v574
    %v1077 = vunpack.c.h.b16 %v574
    %v1078 = vunpack.c.l.b16 %v575
    %v1079 = vunpack.c.h.b16 %v575
    %v1080 = vunpack.c.l.b16 %v576
    %v1081 = vunpack.c.h.b16 %v576
    %v1082 = vunpack.c.l.b16 %v577
    %v1083 = vunpack.c.h.b16 %v577
    %v1084 = vunpack.c.l.b16 %v578
    %v1085 = vunpack.c.h.b16 %v578
    %v1086 = vunpack.c.l.b16 %v579
    %v1087 = vunpack.c.h.b16 %v579
    %v1088 = vunpack.c.l.b16 %v580
    %v1089 = vunpack.c.h.b16 %v580
    %v1090 = vunpack.c.l.b16 %v581
    %v1091 = vunpack.c.h.b16 %v581
    %v1092 = vunpack.c.l.b16 %v582
    %v1093 = vunpack.c.h.b16 %v582
    %v1094 = vunpack.c.l.b16 %v583
    %v1095 = vunpack.c.h.b16 %v583
    %v1096 = vunpack.c.l.b16 %v584
    %v1097 = vunpack.c.h.b16 %v584
    %v1098 = vunpack.c.l.b16 %v585
    %v1099 = vunpack.c.h.b16 %v585
    %v1100 = vunpack.c.l.b16 %v586
    %v1101 = vunpack.c.h.b16 %v586
    %v1102 = vpack.c.b16 %v978, %v974
    %v1103 = vpack.c.b16 %v979, %v975
    %v1104 = vpack.c.b16 %v980, %v976
    %v1105 = vpack.c.b16 %v981, %v977
    %v1106 = vpack.c.b16 %v986, %v982
    %v1107 = vpack.c.b16 %v987, %v983
    %v1108 = vpack.c.b16 %v988, %v984
    %v1109 = vpack.c.b16 %v989, %v985
    %v1110 = vpack.c.b16 %v994, %v990
    %v1111 = vpack.c.b16 %v995, %v991
    %v1112 = vpack.c.b16 %v996, %v992
    %v1113 = vpack.c.b16 %v997, %v993
    %v1114 = vpack.c.b16 %v1002, %v998
    %v1115 = vpack.c.b16 %v1003, %v999
    %v1116 = vpack.c.b16 %v1004, %v1000
    %v1117 = vpack.c.b16 %v1005, %v1001
    %v1118 = vpack.c.b16 %v1010, %v1006
    %v1119 = vpack.c.b16 %v1011, %v1007
    %v1120 = vpack.c.b16 %v1012, %v1008
    %v1121 = vpack.c.b16 %v1013, %v1009
    %v1122 = vpack.c.b16 %v1018, %v1014
    %v1123 = vpack.c.b16 %v1019, %v1015
    %v1124 = vpack.c.b16 %v1020, %v1016
    %v1125 = vpack.c.b16 %v1021, %v1017
    %v1126 = vpack.c.b16 %v1026, %v1022
    %v1127 = vpack.c.b16 %v1027, %v1023
    %v1128 = vpack.c.b16 %v1028, %v1024
    %v1129 = vpack.c.b16 %v1029, %v1025
    %v1130 = vpack.c.b16 %v1034, %v1030
    %v1131 = vpack.c.b16 %v1035, %v1031
    %v1132 = vpack.c.b16 %v1036, %v1032
    %v1133 = vpack.c.b16 %v1037, %v1033
    %v1134 = vpack.c.b16 %v1042, %v1038
    %v1135 = vpack.c.b16 %v1043, %v1039
    %v1136 = vpack.c.b16 %v1044, %v1040
    %v1137 = vpack.c.b16 %v1045, %v1041
    %v1138 = vpack.c.b16 %v1050, %v1046
    %v1139 = vpack.c.b16 %v1051, %v1047
    %v1140 = vpack.c.b16 %v1052, %v1048
    %v1141 = vpack.c.b16 %v1053, %v1049
    %v1142 = vpack.c.b16 %v1058, %v1054
    %v1143 = vpack.c.b16 %v1059, %v1055
    %v1144 = vpack.c.b16 %v1060, %v1056
    %v1145 = vpack.c.b16 %v1061, %v1057
    %v1146 = vpack.c.b16 %v1066, %v1062
    %v1147 = vpack.c.b16 %v1067, %v1063
    %v1148 = vpack.c.b16 %v1068, %v1064
    %v1149 = vpack.c.b16 %v1069, %v1065
    %v1150 = vpack.c.b16 %v1074, %v1070
    %v1151 = vpack.c.b16 %v1075, %v1071
    %v1152 = vpack.c.b16 %v1076, %v1072
    %v1153 = vpack.c.b16 %v1077, %v1073
    %v1154 = vpack.c.b16 %v1082, %v1078
    %v1155 = vpack.c.b16 %v1083, %v1079
    %v1156 = vpack.c.b16 %v1084, %v1080
    %v1157 = vpack.c.b16 %v1085, %v1081
    %v1158 = vpack.c.b16 %v1090, %v1086
    %v1159 = vpack.c.b16 %v1091, %v1087
    %v1160 = vpack.c.b16 %v1092, %v1088
    %v1161 = vpack.c.b16 %v1093, %v1089
    %v1162 = vpack.c.b16 %v1098, %v1094
    %v1163 = vpack.c.b16 %v1099, %v1095
    %v1164 = vpack.c.b16 %v1100, %v1096
    %v1165 = vpack.c.b16 %v1101, %v1097
    %1230 = vmatpush.bf16.msra.mxu0 %v1130
    %1231 = vmatpush.bf16.msra.mxu0 %v1126
    %1232 = vmatpush.bf16.msra.mxu0 %v1122
    %1233 = vmatpush.bf16.msra.mxu0 %v1118
    %1234 = vmatpush.bf16.msra.mxu0 %v1114
    %1235 = vmatpush.bf16.msra.mxu0 %v1110
    %1236 = vmatpush.bf16.msra.mxu0 %v1106
    %1237 = vmatpush.bf16.msra.mxu0 %v1102
    %1238 = vmatmul.bf16.gmra.mxu0 %v899
    %v1239 = vpop.f32.mrf.mxu0
    %v1240 = vadd.f32 %v902, %v1239
    %v1241 = vpop.f32.mrf.mxu0
    %1242 = vdwg.mxu0
    %1243 = vmatpush.bf16.msra.mxu0 %v1162
    %1244 = vmatpush.bf16.msra.mxu0 %v1158
    %1245 = vmatpush.bf16.msra.mxu0 %v1154
    %1246 = vmatpush.bf16.msra.mxu0 %v1150
    %1247 = vmatpush.bf16.msra.mxu0 %v1146
    %1248 = vmatpush.bf16.msra.mxu0 %v1142
    %1249 = vmatpush.bf16.msra.mxu0 %v1138
    %1250 = vmatpush.bf16.msra.mxu0 %v1134
    %1251 = vmatmul.bf16.gmra.mxu0 %v900
    %v1252 = vpop.f32.mrf.mxu0
    %v1253 = vadd.f32 %v1240, %v1252
    %v1254 = vpop.f32.mrf.mxu0
    %1255 = vdwg.mxu0
    %1256 = vmatpush.bf16.msra.mxu0 %v1131
    %1257 = vmatpush.bf16.msra.mxu0 %v1127
    %1258 = vmatpush.bf16.msra.mxu0 %v1123
    %1259 = vmatpush.bf16.msra.mxu0 %v1119
    %1260 = vmatpush.bf16.msra.mxu0 %v1115
    %1261 = vmatpush.bf16.msra.mxu0 %v1111
    %1262 = vmatpush.bf16.msra.mxu0 %v1107
    %1263 = vmatpush.bf16.msra.mxu0 %v1103
    %1264 = vmatmul.bf16.gmra.mxu0 %v899
    %v1265 = vpop.f32.mrf.mxu0
    %v1266 = vadd.f32 %v903, %v1265
    %v1267 = vpop.f32.mrf.mxu0
    %1268 = vdwg.mxu0
    %1269 = vmatpush.bf16.msra.mxu0 %v1163
    %1270 = vmatpush.bf16.msra.mxu0 %v1159
    %1271 = vmatpush.bf16.msra.mxu0 %v1155
    %1272 = vmatpush.bf16.msra.mxu0 %v1151
    %1273 = vmatpush.bf16.msra.mxu0 %v1147
    %1274 = vmatpush.bf16.msra.mxu0 %v1143
    %1275 = vmatpush.bf16.msra.mxu0 %v1139
    %1276 = vmatpush.bf16.msra.mxu0 %v1135
    %1277 = vmatmul.bf16.gmra.mxu0 %v900
    %v1278 = vpop.f32.mrf.mxu0
    %v1279 = vadd.f32 %v1266, %v1278
    %v1280 = vpop.f32.mrf.mxu0
    %1281 = vdwg.mxu0
    %1282 = vmatpush.bf16.msra.mxu0 %v1132
    %1283 = vmatpush.bf16.msra.mxu0 %v1128
    %1284 = vmatpush.bf16.msra.mxu0 %v1124
    %1285 = vmatpush.bf16.msra.mxu0 %v1120
    %1286 = vmatpush.bf16.msra.mxu0 %v1116
    %1287 = vmatpush.bf16.msra.mxu0 %v1112
    %1288 = vmatpush.bf16.msra.mxu0 %v1108
    %1289 = vmatpush.bf16.msra.mxu0 %v1104
    %1290 = vmatmul.bf16.gmra.mxu0 %v899
    %v1291 = vpop.f32.mrf.mxu0
    %v1292 = vadd.f32 %v904, %v1291
    %v1293 = vpop.f32.mrf.mxu0
    %1294 = vdwg.mxu0
    %1295 = vmatpush.bf16.msra.mxu0 %v1164
    %1296 = vmatpush.bf16.msra.mxu0 %v1160
    %1297 = vmatpush.bf16.msra.mxu0 %v1156
    %1298 = vmatpush.bf16.msra.mxu0 %v1152
    %1299 = vmatpush.bf16.msra.mxu0 %v1148
    %1300 = vmatpush.bf16.msra.mxu0 %v1144
    %1301 = vmatpush.bf16.msra.mxu0 %v1140
    %1302 = vmatpush.bf16.msra.mxu0 %v1136
    %1303 = vmatmul.bf16.gmra.mxu0 %v900
    %v1304 = vpop.f32.mrf.mxu0
    %v1305 = vadd.f32 %v1292, %v1304
    %v1306 = vpop.f32.mrf.mxu0
    %1307 = vdwg.mxu0
    %1308 = vmatpush.bf16.msra.mxu0 %v1133
    %1309 = vmatpush.bf16.msra.mxu0 %v1129
    %1310 = vmatpush.bf16.msra.mxu0 %v1125
    %1311 = vmatpush.bf16.msra.mxu0 %v1121
    %1312 = vmatpush.bf16.msra.mxu0 %v1117
    %1313 = vmatpush.bf16.msra.mxu0 %v1113
    %1314 = vmatpush.bf16.msra.mxu0 %v1109
    %1315 = vmatpush.bf16.msra.mxu0 %v1105
    %1316 = vmatmul.bf16.gmra.mxu0 %v899
    %v1317 = vpop.f32.mrf.mxu0
    %v1318 = vadd.f32 %v905, %v1317
    %v1319 = vpop.f32.mrf.mxu0
    %1320 = vdwg.mxu0
    %1321 = vmatpush.bf16.msra.mxu0 %v1165
    %1322 = vmatpush.bf16.msra.mxu0 %v1161
    %1323 = vmatpush.bf16.msra.mxu0 %v1157
    %1324 = vmatpush.bf16.msra.mxu0 %v1153
    %1325 = vmatpush.bf16.msra.mxu0 %v1149
    %1326 = vmatpush.bf16.msra.mxu0 %v1145
    %1327 = vmatpush.bf16.msra.mxu0 %v1141
    %1328 = vmatpush.bf16.msra.mxu0 %v1137
    %1329 = vmatmul.bf16.gmra.mxu0 %v900
    %v1330 = vpop.f32.mrf.mxu0
    %v1331 = vadd.f32 %v1318, %v1330
    %v1332 = vpop.f32.mrf.mxu0
    %1333 = vdwg.mxu0
    %v1334 = vmul.f32 %v1253, 0.5
    %v1335 = vmul.f32 %v1279, 0.5
    %v1336 = vmul.f32 %v1305, 0.5
    %v1337 = vtanh.pop %v1334
    %v1338 = vtanh.pop %v1335
    %v1339 = vtanh.pop %v1336
    %v1340 = vmul.f32 %v1337, 0.5
    %v1341 = vmul.f32 %v1338, 0.5
    %v1342 = vmul.f32 %v1339, 0.5
    %v1343 = vadd.f32 %v1340, 0.5
    %v1344 = vadd.f32 %v1341, 0.5
    %v1345 = vadd.f32 %v1342, 0.5
    %v1346 = vtanh.pop %v1331
    %v1347 = vmul.f32 %v1344, 0.0
    %v1348 = vmul.f32 %v1343, %v1346
    %v1349 = vadd.f32 %v1347, %v1348
    %v1350 = vtanh.pop %v1349
    %v1351 = vmul.f32 %v1345, %v1350
    %v1352 = vsel %vm896, %v1351, 0.0
    %v1353 = vsel %vm896, %v1349, 0.0
    %v1354 = vpack.c.bf16 %v1352, %v1352
    %v1356 = vperm.slane %v652, 0
    %v1357 = vperm.slane %v652, 1
    %v1358 = vperm.slane %v652, 2
    %v1359 = vperm.slane %v652, 3
    %v1428 = vunpack.c.l.b16 %v587
    %v1429 = vunpack.c.h.b16 %v587
    %v1430 = vunpack.c.l.b16 %v588
    %v1431 = vunpack.c.h.b16 %v588
    %v1432 = vunpack.c.l.b16 %v589
    %v1433 = vunpack.c.h.b16 %v589
    %v1434 = vunpack.c.l.b16 %v590
    %v1435 = vunpack.c.h.b16 %v590
    %v1436 = vunpack.c.l.b16 %v591
    %v1437 = vunpack.c.h.b16 %v591
    %v1438 = vunpack.c.l.b16 %v592
    %v1439 = vunpack.c.h.b16 %v592
    %v1440 = vunpack.c.l.b16 %v593
    %v1441 = vunpack.c.h.b16 %v593
    %v1442 = vunpack.c.l.b16 %v594
    %v1443 = vunpack.c.h.b16 %v594
    %v1444 = vunpack.c.l.b16 %v595
    %v1445 = vunpack.c.h.b16 %v595
    %v1446 = vunpack.c.l.b16 %v596
    %v1447 = vunpack.c.h.b16 %v596
    %v1448 = vunpack.c.l.b16 %v597
    %v1449 = vunpack.c.h.b16 %v597
    %v1450 = vunpack.c.l.b16 %v598
    %v1451 = vunpack.c.h.b16 %v598
    %v1452 = vunpack.c.l.b16 %v599
    %v1453 = vunpack.c.h.b16 %v599
    %v1454 = vunpack.c.l.b16 %v600
    %v1455 = vunpack.c.h.b16 %v600
    %v1456 = vunpack.c.l.b16 %v601
    %v1457 = vunpack.c.h.b16 %v601
    %v1458 = vunpack.c.l.b16 %v602
    %v1459 = vunpack.c.h.b16 %v602
    %v1460 = vunpack.c.l.b16 %v603
    %v1461 = vunpack.c.h.b16 %v603
    %v1462 = vunpack.c.l.b16 %v604
    %v1463 = vunpack.c.h.b16 %v604
    %v1464 = vunpack.c.l.b16 %v605
    %v1465 = vunpack.c.h.b16 %v605
    %v1466 = vunpack.c.l.b16 %v606
    %v1467 = vunpack.c.h.b16 %v606
    %v1468 = vunpack.c.l.b16 %v607
    %v1469 = vunpack.c.h.b16 %v607
    %v1470 = vunpack.c.l.b16 %v608
    %v1471 = vunpack.c.h.b16 %v608
    %v1472 = vunpack.c.l.b16 %v609
    %v1473 = vunpack.c.h.b16 %v609
    %v1474 = vunpack.c.l.b16 %v610
    %v1475 = vunpack.c.h.b16 %v610
    %v1476 = vunpack.c.l.b16 %v611
    %v1477 = vunpack.c.h.b16 %v611
    %v1478 = vunpack.c.l.b16 %v612
    %v1479 = vunpack.c.h.b16 %v612
    %v1480 = vunpack.c.l.b16 %v613
    %v1481 = vunpack.c.h.b16 %v613
    %v1482 = vunpack.c.l.b16 %v614
    %v1483 = vunpack.c.h.b16 %v614
    %v1484 = vunpack.c.l.b16 %v615
    %v1485 = vunpack.c.h.b16 %v615
    %v1486 = vunpack.c.l.b16 %v616
    %v1487 = vunpack.c.h.b16 %v616
    %v1488 = vunpack.c.l.b16 %v617
    %v1489 = vunpack.c.h.b16 %v617
    %v1490 = vunpack.c.l.b16 %v618
    %v1491 = vunpack.c.h.b16 %v618
    %v1492 = vunpack.c.l.b16 %v619
    %v1493 = vunpack.c.h.b16 %v619
    %v1494 = vunpack.c.l.b16 %v620
    %v1495 = vunpack.c.h.b16 %v620
    %v1496 = vunpack.c.l.b16 %v621
    %v1497 = vunpack.c.h.b16 %v621
    %v1498 = vunpack.c.l.b16 %v622
    %v1499 = vunpack.c.h.b16 %v622
    %v1500 = vunpack.c.l.b16 %v623
    %v1501 = vunpack.c.h.b16 %v623
    %v1502 = vunpack.c.l.b16 %v624
    %v1503 = vunpack.c.h.b16 %v624
    %v1504 = vunpack.c.l.b16 %v625
    %v1505 = vunpack.c.h.b16 %v625
    %v1506 = vunpack.c.l.b16 %v626
    %v1507 = vunpack.c.h.b16 %v626
    %v1508 = vunpack.c.l.b16 %v627
    %v1509 = vunpack.c.h.b16 %v627
    %v1510 = vunpack.c.l.b16 %v628
    %v1511 = vunpack.c.h.b16 %v628
    %v1512 = vunpack.c.l.b16 %v629
    %v1513 = vunpack.c.h.b16 %v629
    %v1514 = vunpack.c.l.b16 %v630
    %v1515 = vunpack.c.h.b16 %v630
    %v1516 = vunpack.c.l.b16 %v631
    %v1517 = vunpack.c.h.b16 %v631
    %v1518 = vunpack.c.l.b16 %v632
    %v1519 = vunpack.c.h.b16 %v632
    %v1520 = vunpack.c.l.b16 %v633
    %v1521 = vunpack.c.h.b16 %v633
    %v1522 = vunpack.c.l.b16 %v634
    %v1523 = vunpack.c.h.b16 %v634
    %v1524 = vunpack.c.l.b16 %v635
    %v1525 = vunpack.c.h.b16 %v635
    %v1526 = vunpack.c.l.b16 %v636
    %v1527 = vunpack.c.h.b16 %v636
    %v1528 = vunpack.c.l.b16 %v637
    %v1529 = vunpack.c.h.b16 %v637
    %v1530 = vunpack.c.l.b16 %v638
    %v1531 = vunpack.c.h.b16 %v638
    %v1532 = vunpack.c.l.b16 %v639
    %v1533 = vunpack.c.h.b16 %v639
    %v1534 = vunpack.c.l.b16 %v640
    %v1535 = vunpack.c.h.b16 %v640
    %v1536 = vunpack.c.l.b16 %v641
    %v1537 = vunpack.c.h.b16 %v641
    %v1538 = vunpack.c.l.b16 %v642
    %v1539 = vunpack.c.h.b16 %v642
    %v1540 = vunpack.c.l.b16 %v643
    %v1541 = vunpack.c.h.b16 %v643
    %v1542 = vunpack.c.l.b16 %v644
    %v1543 = vunpack.c.h.b16 %v644
    %v1544 = vunpack.c.l.b16 %v645
    %v1545 = vunpack.c.h.b16 %v645
    %v1546 = vunpack.c.l.b16 %v646
    %v1547 = vunpack.c.h.b16 %v646
    %v1548 = vunpack.c.l.b16 %v647
    %v1549 = vunpack.c.h.b16 %v647
    %v1550 = vunpack.c.l.b16 %v648
    %v1551 = vunpack.c.h.b16 %v648
    %v1552 = vunpack.c.l.b16 %v649
    %v1553 = vunpack.c.h.b16 %v649
    %v1554 = vunpack.c.l.b16 %v650
    %v1555 = vunpack.c.h.b16 %v650
    %v1556 = vpack.c.b16 %v1432, %v1428
    %v1557 = vpack.c.b16 %v1433, %v1429
    %v1558 = vpack.c.b16 %v1434, %v1430
    %v1559 = vpack.c.b16 %v1435, %v1431
    %v1560 = vpack.c.b16 %v1440, %v1436
    %v1561 = vpack.c.b16 %v1441, %v1437
    %v1562 = vpack.c.b16 %v1442, %v1438
    %v1563 = vpack.c.b16 %v1443, %v1439
    %v1564 = vpack.c.b16 %v1448, %v1444
    %v1565 = vpack.c.b16 %v1449, %v1445
    %v1566 = vpack.c.b16 %v1450, %v1446
    %v1567 = vpack.c.b16 %v1451, %v1447
    %v1568 = vpack.c.b16 %v1456, %v1452
    %v1569 = vpack.c.b16 %v1457, %v1453
    %v1570 = vpack.c.b16 %v1458, %v1454
    %v1571 = vpack.c.b16 %v1459, %v1455
    %v1572 = vpack.c.b16 %v1464, %v1460
    %v1573 = vpack.c.b16 %v1465, %v1461
    %v1574 = vpack.c.b16 %v1466, %v1462
    %v1575 = vpack.c.b16 %v1467, %v1463
    %v1576 = vpack.c.b16 %v1472, %v1468
    %v1577 = vpack.c.b16 %v1473, %v1469
    %v1578 = vpack.c.b16 %v1474, %v1470
    %v1579 = vpack.c.b16 %v1475, %v1471
    %v1580 = vpack.c.b16 %v1480, %v1476
    %v1581 = vpack.c.b16 %v1481, %v1477
    %v1582 = vpack.c.b16 %v1482, %v1478
    %v1583 = vpack.c.b16 %v1483, %v1479
    %v1584 = vpack.c.b16 %v1488, %v1484
    %v1585 = vpack.c.b16 %v1489, %v1485
    %v1586 = vpack.c.b16 %v1490, %v1486
    %v1587 = vpack.c.b16 %v1491, %v1487
    %v1588 = vpack.c.b16 %v1496, %v1492
    %v1589 = vpack.c.b16 %v1497, %v1493
    %v1590 = vpack.c.b16 %v1498, %v1494
    %v1591 = vpack.c.b16 %v1499, %v1495
    %v1592 = vpack.c.b16 %v1504, %v1500
    %v1593 = vpack.c.b16 %v1505, %v1501
    %v1594 = vpack.c.b16 %v1506, %v1502
    %v1595 = vpack.c.b16 %v1507, %v1503
    %v1596 = vpack.c.b16 %v1512, %v1508
    %v1597 = vpack.c.b16 %v1513, %v1509
    %v1598 = vpack.c.b16 %v1514, %v1510
    %v1599 = vpack.c.b16 %v1515, %v1511
    %v1600 = vpack.c.b16 %v1520, %v1516
    %v1601 = vpack.c.b16 %v1521, %v1517
    %v1602 = vpack.c.b16 %v1522, %v1518
    %v1603 = vpack.c.b16 %v1523, %v1519
    %v1604 = vpack.c.b16 %v1528, %v1524
    %v1605 = vpack.c.b16 %v1529, %v1525
    %v1606 = vpack.c.b16 %v1530, %v1526
    %v1607 = vpack.c.b16 %v1531, %v1527
    %v1608 = vpack.c.b16 %v1536, %v1532
    %v1609 = vpack.c.b16 %v1537, %v1533
    %v1610 = vpack.c.b16 %v1538, %v1534
    %v1611 = vpack.c.b16 %v1539, %v1535
    %v1612 = vpack.c.b16 %v1544, %v1540
    %v1613 = vpack.c.b16 %v1545, %v1541
    %v1614 = vpack.c.b16 %v1546, %v1542
    %v1615 = vpack.c.b16 %v1547, %v1543
    %v1616 = vpack.c.b16 %v1552, %v1548
    %v1617 = vpack.c.b16 %v1553, %v1549
    %v1618 = vpack.c.b16 %v1554, %v1550
    %v1619 = vpack.c.b16 %v1555, %v1551
    %1684 = vmatpush.bf16.msra.mxu0 %v1584
    %1685 = vmatpush.bf16.msra.mxu0 %v1580
    %1686 = vmatpush.bf16.msra.mxu0 %v1576
    %1687 = vmatpush.bf16.msra.mxu0 %v1572
    %1688 = vmatpush.bf16.msra.mxu0 %v1568
    %1689 = vmatpush.bf16.msra.mxu0 %v1564
    %1690 = vmatpush.bf16.msra.mxu0 %v1560
    %1691 = vmatpush.bf16.msra.mxu0 %v1556
    %1692 = vmatmul.bf16.gmra.mxu0 %v1354
    %v1693 = vpop.f32.mrf.mxu0
    %v1694 = vadd.f32 %v1356, %v1693
    %v1695 = vpop.f32.mrf.mxu0
    %1696 = vdwg.mxu0
    %1697 = vmatpush.bf16.msra.mxu0 %v1616
    %1698 = vmatpush.bf16.msra.mxu0 %v1612
    %1699 = vmatpush.bf16.msra.mxu0 %v1608
    %1700 = vmatpush.bf16.msra.mxu0 %v1604
    %1701 = vmatpush.bf16.msra.mxu0 %v1600
    %1702 = vmatpush.bf16.msra.mxu0 %v1596
    %1703 = vmatpush.bf16.msra.mxu0 %v1592
    %1704 = vmatpush.bf16.msra.mxu0 %v1588
    %1705 = vmatmul.bf16.gmra.mxu0 %v900
    %v1706 = vpop.f32.mrf.mxu0
    %v1707 = vadd.f32 %v1694, %v1706
    %v1708 = vpop.f32.mrf.mxu0
    %1709 = vdwg.mxu0
    %1710 = vmatpush.bf16.msra.mxu0 %v1585
    %1711 = vmatpush.bf16.msra.mxu0 %v1581
    %1712 = vmatpush.bf16.msra.mxu0 %v1577
    %1713 = vmatpush.bf16.msra.mxu0 %v1573
    %1714 = vmatpush.bf16.msra.mxu0 %v1569
    %1715 = vmatpush.bf16.msra.mxu0 %v1565
    %1716 = vmatpush.bf16.msra.mxu0 %v1561
    %1717 = vmatpush.bf16.msra.mxu0 %v1557
    %1718 = vmatmul.bf16.gmra.mxu0 %v1354
    %v1719 = vpop.f32.mrf.mxu0
    %v1720 = vadd.f32 %v1357, %v1719
    %v1721 = vpop.f32.mrf.mxu0
    %1722 = vdwg.mxu0
    %1723 = vmatpush.bf16.msra.mxu0 %v1617
    %1724 = vmatpush.bf16.msra.mxu0 %v1613
    %1725 = vmatpush.bf16.msra.mxu0 %v1609
    %1726 = vmatpush.bf16.msra.mxu0 %v1605
    %1727 = vmatpush.bf16.msra.mxu0 %v1601
    %1728 = vmatpush.bf16.msra.mxu0 %v1597
    %1729 = vmatpush.bf16.msra.mxu0 %v1593
    %1730 = vmatpush.bf16.msra.mxu0 %v1589
    %1731 = vmatmul.bf16.gmra.mxu0 %v900
    %v1732 = vpop.f32.mrf.mxu0
    %v1733 = vadd.f32 %v1720, %v1732
    %v1734 = vpop.f32.mrf.mxu0
    %1735 = vdwg.mxu0
    %1736 = vmatpush.bf16.msra.mxu0 %v1586
    %1737 = vmatpush.bf16.msra.mxu0 %v1582
    %1738 = vmatpush.bf16.msra.mxu0 %v1578
    %1739 = vmatpush.bf16.msra.mxu0 %v1574
    %1740 = vmatpush.bf16.msra.mxu0 %v1570
    %1741 = vmatpush.bf16.msra.mxu0 %v1566
    %1742 = vmatpush.bf16.msra.mxu0 %v1562
    %1743 = vmatpush.bf16.msra.mxu0 %v1558
    %1744 = vmatmul.bf16.gmra.mxu0 %v1354
    %v1745 = vpop.f32.mrf.mxu0
    %v1746 = vadd.f32 %v1358, %v1745
    %v1747 = vpop.f32.mrf.mxu0
    %1748 = vdwg.mxu0
    %1749 = vmatpush.bf16.msra.mxu0 %v1618
    %1750 = vmatpush.bf16.msra.mxu0 %v1614
    %1751 = vmatpush.bf16.msra.mxu0 %v1610
    %1752 = vmatpush.bf16.msra.mxu0 %v1606
    %1753 = vmatpush.bf16.msra.mxu0 %v1602
    %1754 = vmatpush.bf16.msra.mxu0 %v1598
    %1755 = vmatpush.bf16.msra.mxu0 %v1594
    %1756 = vmatpush.bf16.msra.mxu0 %v1590
    %1757 = vmatmul.bf16.gmra.mxu0 %v900
    %v1758 = vpop.f32.mrf.mxu0
    %v1759 = vadd.f32 %v1746, %v1758
    %v1760 = vpop.f32.mrf.mxu0
    %1761 = vdwg.mxu0
    %1762 = vmatpush.bf16.msra.mxu0 %v1587
    %1763 = vmatpush.bf16.msra.mxu0 %v1583
    %1764 = vmatpush.bf16.msra.mxu0 %v1579
    %1765 = vmatpush.bf16.msra.mxu0 %v1575
    %1766 = vmatpush.bf16.msra.mxu0 %v1571
    %1767 = vmatpush.bf16.msra.mxu0 %v1567
    %1768 = vmatpush.bf16.msra.mxu0 %v1563
    %1769 = vmatpush.bf16.msra.mxu0 %v1559
    %1770 = vmatmul.bf16.gmra.mxu0 %v1354
    %v1771 = vpop.f32.mrf.mxu0
    %v1772 = vadd.f32 %v1359, %v1771
    %v1773 = vpop.f32.mrf.mxu0
    %1774 = vdwg.mxu0
    %1775 = vmatpush.bf16.msra.mxu0 %v1619
    %1776 = vmatpush.bf16.msra.mxu0 %v1615
    %1777 = vmatpush.bf16.msra.mxu0 %v1611
    %1778 = vmatpush.bf16.msra.mxu0 %v1607
    %1779 = vmatpush.bf16.msra.mxu0 %v1603
    %1780 = vmatpush.bf16.msra.mxu0 %v1599
    %1781 = vmatpush.bf16.msra.mxu0 %v1595
    %1782 = vmatpush.bf16.msra.mxu0 %v1591
    %1783 = vmatmul.bf16.gmra.mxu0 %v900
    %v1784 = vpop.f32.mrf.mxu0
    %v1785 = vadd.f32 %v1772, %v1784
    %v1786 = vpop.f32.mrf.mxu0
    %1787 = vdwg.mxu0
    %v1788 = vmul.f32 %v1707, 0.5
    %v1789 = vmul.f32 %v1733, 0.5
    %v1790 = vmul.f32 %v1759, 0.5
    %v1791 = vtanh.pop %v1788
    %v1792 = vtanh.pop %v1789
    %v1793 = vtanh.pop %v1790
    %v1794 = vmul.f32 %v1791, 0.5
    %v1795 = vmul.f32 %v1792, 0.5
    %v1796 = vmul.f32 %v1793, 0.5
    %v1797 = vadd.f32 %v1794, 0.5
    %v1798 = vadd.f32 %v1795, 0.5
    %v1799 = vadd.f32 %v1796, 0.5
    %v1800 = vtanh.pop %v1785
    %v1801 = vmul.f32 %v1798, 0.0
    %v1802 = vmul.f32 %v1797, %v1800
    %v1803 = vadd.f32 %v1801, %v1802
    %v1804 = vtanh.pop %v1803
    %v1805 = vmul.f32 %v1799, %v1804
    %v1806 = vsel %vm896, %v1805, 0.0
    %v1807 = vsel %vm896, %v1803, 0.0
    %vm1808 = vcmp.gt.s32.totalorder %v108, 1
    %v1809 = vld [vmem:[#allocation2 + $0x20] sm:$0xff]
    %v1810 = vld [vmem:[#allocation2 + $0x28] sm:$0xff]
    %v1811 = vld [vmem:[#allocation2 + $0x30] sm:$0xff]
    %v1812 = vld [vmem:[#allocation2 + $0x38] sm:$0xff]
    %1813 = vmatpush.bf16.msra.mxu0 %v782
    %1814 = vmatpush.bf16.msra.mxu0 %v778
    %1815 = vmatpush.bf16.msra.mxu0 %v774
    %1816 = vmatpush.bf16.msra.mxu0 %v770
    %1817 = vmatpush.bf16.msra.mxu0 %v766
    %1818 = vmatpush.bf16.msra.mxu0 %v762
    %1819 = vmatpush.bf16.msra.mxu0 %v758
    %1820 = vmatpush.bf16.msra.mxu0 %v754
    %1821 = vmatmul.bf16.gmra.mxu0 %v899
    %v1822 = vpop.f32.mrf.mxu0
    %v1823 = vadd.f32 0.0, %v1822
    %v1824 = vpop.f32.mrf.mxu0
    %1825 = vdwg.mxu0
    %1826 = vmatpush.bf16.msra.mxu0 %v783
    %1827 = vmatpush.bf16.msra.mxu0 %v779
    %1828 = vmatpush.bf16.msra.mxu0 %v775
    %1829 = vmatpush.bf16.msra.mxu0 %v771
    %1830 = vmatpush.bf16.msra.mxu0 %v767
    %1831 = vmatpush.bf16.msra.mxu0 %v763
    %1832 = vmatpush.bf16.msra.mxu0 %v759
    %1833 = vmatpush.bf16.msra.mxu0 %v755
    %1834 = vmatmul.bf16.gmra.mxu0 %v899
    %v1835 = vpop.f32.mrf.mxu0
    %v1836 = vadd.f32 0.0, %v1835
    %v1837 = vpop.f32.mrf.mxu0
    %1838 = vdwg.mxu0
    %1839 = vmatpush.bf16.msra.mxu0 %v784
    %1840 = vmatpush.bf16.msra.mxu0 %v780
    %1841 = vmatpush.bf16.msra.mxu0 %v776
    %1842 = vmatpush.bf16.msra.mxu0 %v772
    %1843 = vmatpush.bf16.msra.mxu0 %v768
    %1844 = vmatpush.bf16.msra.mxu0 %v764
    %1845 = vmatpush.bf16.msra.mxu0 %v760
    %1846 = vmatpush.bf16.msra.mxu0 %v756
    %1847 = vmatmul.bf16.gmra.mxu0 %v899
    %v1848 = vpop.f32.mrf.mxu0
    %v1849 = vadd.f32 0.0, %v1848
    %v1850 = vpop.f32.mrf.mxu0
    %1851 = vdwg.mxu0
    %1852 = vmatpush.bf16.msra.mxu0 %v785
    %1853 = vmatpush.bf16.msra.mxu0 %v781
    %1854 = vmatpush.bf16.msra.mxu0 %v777
    %1855 = vmatpush.bf16.msra.mxu0 %v773
    %1856 = vmatpush.bf16.msra.mxu0 %v769
    %1857 = vmatpush.bf16.msra.mxu0 %v765
    %1858 = vmatpush.bf16.msra.mxu0 %v761
    %1859 = vmatpush.bf16.msra.mxu0 %v757
    %1860 = vmatmul.bf16.gmra.mxu0 %v899
    %v1861 = vpop.f32.mrf.mxu0
    %v1862 = vadd.f32 0.0, %v1861
    %v1863 = vpop.f32.mrf.mxu0
    %1864 = vdwg.mxu0
    %v1865 = vadd.f32 %v1809, %v1823
    %v1866 = vadd.f32 %v1810, %v1836
    %v1867 = vadd.f32 %v1811, %v1849
    %v1868 = vadd.f32 %v1812, %v1862
    %v1869 = vmul.f32 %v1865, 0.5
    %v1870 = vmul.f32 %v1866, 0.5
    %v1871 = vmul.f32 %v1867, 0.5
    %v1872 = vtanh.pop %v1869
    %v1873 = vtanh.pop %v1870
    %v1874 = vtanh.pop %v1871
    %v1875 = vmul.f32 %v1872, 0.5
    %v1876 = vmul.f32 %v1873, 0.5
    %v1877 = vmul.f32 %v1874, 0.5
    %v1878 = vadd.f32 %v1875, 0.5
    %v1879 = vadd.f32 %v1876, 0.5
    %v1880 = vadd.f32 %v1877, 0.5
    %v1881 = vtanh.pop %v1868
    %v1882 = vmul.f32 %v1879, %v898
    %v1883 = vmul.f32 %v1878, %v1881
    %v1884 = vadd.f32 %v1882, %v1883
    %v1885 = vtanh.pop %v1884
    %v1886 = vmul.f32 %v1880, %v1885
    %v1887 = vsel %vm1808, 1, 0
    %1888 = vset.pattern.permute.xlu0 0
    %1889 = vperm.xlu0 %1888, %v1887
    %v1890 = vpop.permute.xlu0 %1889
    %vm1891 = vcmp.eq.s32.totalorder %v1890, 1
    %v1892 = vsel %vm1891, %v1886, %v897
    %v1893 = vsel %vm1891, %v1884, %v898
    %v1894 = vpack.c.bf16 %v1892, %v1892
    %1895 = vmatpush.bf16.msra.mxu0 %v1130
    %1896 = vmatpush.bf16.msra.mxu0 %v1126
    %1897 = vmatpush.bf16.msra.mxu0 %v1122
    %1898 = vmatpush.bf16.msra.mxu0 %v1118
    %1899 = vmatpush.bf16.msra.mxu0 %v1114
    %1900 = vmatpush.bf16.msra.mxu0 %v1110
    %1901 = vmatpush.bf16.msra.mxu0 %v1106
    %1902 = vmatpush.bf16.msra.mxu0 %v1102
    %1903 = vmatmul.bf16.gmra.mxu0 %v1894
    %v1904 = vpop.f32.mrf.mxu0
    %v1905 = vadd.f32 %v902, %v1904
    %v1906 = vpop.f32.mrf.mxu0
    %1907 = vdwg.mxu0
    %1908 = vmatpush.bf16.msra.mxu0 %v1162
    %1909 = vmatpush.bf16.msra.mxu0 %v1158
    %1910 = vmatpush.bf16.msra.mxu0 %v1154
    %1911 = vmatpush.bf16.msra.mxu0 %v1150
    %1912 = vmatpush.bf16.msra.mxu0 %v1146
    %1913 = vmatpush.bf16.msra.mxu0 %v1142
    %1914 = vmatpush.bf16.msra.mxu0 %v1138
    %1915 = vmatpush.bf16.msra.mxu0 %v1134
    %1916 = vmatmul.bf16.gmra.mxu0 %v1354
    %v1917 = vpop.f32.mrf.mxu0
    %v1918 = vadd.f32 %v1905, %v1917
    %v1919 = vpop.f32.mrf.mxu0
    %1920 = vdwg.mxu0
    %1921 = vmatpush.bf16.msra.mxu0 %v1131
    %1922 = vmatpush.bf16.msra.mxu0 %v1127
    %1923 = vmatpush.bf16.msra.mxu0 %v1123
    %1924 = vmatpush.bf16.msra.mxu0 %v1119
    %1925 = vmatpush.bf16.msra.mxu0 %v1115
    %1926 = vmatpush.bf16.msra.mxu0 %v1111
    %1927 = vmatpush.bf16.msra.mxu0 %v1107
    %1928 = vmatpush.bf16.msra.mxu0 %v1103
    %1929 = vmatmul.bf16.gmra.mxu0 %v1894
    %v1930 = vpop.f32.mrf.mxu0
    %v1931 = vadd.f32 %v903, %v1930
    %v1932 = vpop.f32.mrf.mxu0
    %1933 = vdwg.mxu0
    %1934 = vmatpush.bf16.msra.mxu0 %v1163
    %1935 = vmatpush.bf16.msra.mxu0 %v1159
    %1936 = vmatpush.bf16.msra.mxu0 %v1155
    %1937 = vmatpush.bf16.msra.mxu0 %v1151
    %1938 = vmatpush.bf16.msra.mxu0 %v1147
    %1939 = vmatpush.bf16.msra.mxu0 %v1143
    %1940 = vmatpush.bf16.msra.mxu0 %v1139
    %1941 = vmatpush.bf16.msra.mxu0 %v1135
    %1942 = vmatmul.bf16.gmra.mxu0 %v1354
    %v1943 = vpop.f32.mrf.mxu0
    %v1944 = vadd.f32 %v1931, %v1943
    %v1945 = vpop.f32.mrf.mxu0
    %1946 = vdwg.mxu0
    %1947 = vmatpush.bf16.msra.mxu0 %v1132
    %1948 = vmatpush.bf16.msra.mxu0 %v1128
    %1949 = vmatpush.bf16.msra.mxu0 %v1124
    %1950 = vmatpush.bf16.msra.mxu0 %v1120
    %1951 = vmatpush.bf16.msra.mxu0 %v1116
    %1952 = vmatpush.bf16.msra.mxu0 %v1112
    %1953 = vmatpush.bf16.msra.mxu0 %v1108
    %1954 = vmatpush.bf16.msra.mxu0 %v1104
    %1955 = vmatmul.bf16.gmra.mxu0 %v1894
    %v1956 = vpop.f32.mrf.mxu0
    %v1957 = vadd.f32 %v904, %v1956
    %v1958 = vpop.f32.mrf.mxu0
    %1959 = vdwg.mxu0
    %1960 = vmatpush.bf16.msra.mxu0 %v1164
    %1961 = vmatpush.bf16.msra.mxu0 %v1160
    %1962 = vmatpush.bf16.msra.mxu0 %v1156
    %1963 = vmatpush.bf16.msra.mxu0 %v1152
    %1964 = vmatpush.bf16.msra.mxu0 %v1148
    %1965 = vmatpush.bf16.msra.mxu0 %v1144
    %1966 = vmatpush.bf16.msra.mxu0 %v1140
    %1967 = vmatpush.bf16.msra.mxu0 %v1136
    %1968 = vmatmul.bf16.gmra.mxu0 %v1354
    %v1969 = vpop.f32.mrf.mxu0
    %v1970 = vadd.f32 %v1957, %v1969
    %v1971 = vpop.f32.mrf.mxu0
    %1972 = vdwg.mxu0
    %1973 = vmatpush.bf16.msra.mxu0 %v1133
    %1974 = vmatpush.bf16.msra.mxu0 %v1129
    %1975 = vmatpush.bf16.msra.mxu0 %v1125
    %1976 = vmatpush.bf16.msra.mxu0 %v1121
    %1977 = vmatpush.bf16.msra.mxu0 %v1117
    %1978 = vmatpush.bf16.msra.mxu0 %v1113
    %1979 = vmatpush.bf16.msra.mxu0 %v1109
    %1980 = vmatpush.bf16.msra.mxu0 %v1105
    %1981 = vmatmul.bf16.gmra.mxu0 %v1894
    %v1982 = vpop.f32.mrf.mxu0
    %v1983 = vadd.f32 %v905, %v1982
    %v1984 = vpop.f32.mrf.mxu0
    %1985 = vdwg.mxu0
    %1986 = vmatpush.bf16.msra.mxu0 %v1165
    %1987 = vmatpush.bf16.msra.mxu0 %v1161
    %1988 = vmatpush.bf16.msra.mxu0 %v1157
    %1989 = vmatpush.bf16.msra.mxu0 %v1153
    %1990 = vmatpush.bf16.msra.mxu0 %v1149
    %1991 = vmatpush.bf16.msra.mxu0 %v1145
    %1992 = vmatpush.bf16.msra.mxu0 %v1141
    %1993 = vmatpush.bf16.msra.mxu0 %v1137
    %1994 = vmatmul.bf16.gmra.mxu0 %v1354
    %v1995 = vpop.f32.mrf.mxu0
    %v1996 = vadd.f32 %v1983, %v1995
    %v1997 = vpop.f32.mrf.mxu0
    %1998 = vdwg.mxu0
    %v1999 = vmul.f32 %v1918, 0.5
    %v2000 = vmul.f32 %v1944, 0.5
    %v2001 = vmul.f32 %v1970, 0.5
    %v2002 = vtanh.pop %v1999
    %v2003 = vtanh.pop %v2000
    %v2004 = vtanh.pop %v2001
    %v2005 = vmul.f32 %v2002, 0.5
    %v2006 = vmul.f32 %v2003, 0.5
    %v2007 = vmul.f32 %v2004, 0.5
    %v2008 = vadd.f32 %v2005, 0.5
    %v2009 = vadd.f32 %v2006, 0.5
    %v2010 = vadd.f32 %v2007, 0.5
    %v2011 = vtanh.pop %v1996
    %v2012 = vmul.f32 %v2009, %v1353
    %v2013 = vmul.f32 %v2008, %v2011
    %v2014 = vadd.f32 %v2012, %v2013
    %v2015 = vtanh.pop %v2014
    %v2016 = vmul.f32 %v2010, %v2015
    %v2017 = vsel %vm1891, %v2016, %v1352
    %v2018 = vsel %vm1891, %v2014, %v1353
    %v2019 = vpack.c.bf16 %v2017, %v2017
    %v2020 = vpack.c.bf16 %v1806, %v1806
    %2021 = vmatpush.bf16.msra.mxu0 %v1584
    %2022 = vmatpush.bf16.msra.mxu0 %v1580
    %2023 = vmatpush.bf16.msra.mxu0 %v1576
    %2024 = vmatpush.bf16.msra.mxu0 %v1572
    %2025 = vmatpush.bf16.msra.mxu0 %v1568
    %2026 = vmatpush.bf16.msra.mxu0 %v1564
    %2027 = vmatpush.bf16.msra.mxu0 %v1560
    %2028 = vmatpush.bf16.msra.mxu0 %v1556
    %2029 = vmatmul.bf16.gmra.mxu0 %v2019
    %v2030 = vpop.f32.mrf.mxu0
    %v2031 = vadd.f32 %v1356, %v2030
    %v2032 = vpop.f32.mrf.mxu0
    %2033 = vdwg.mxu0
    %2034 = vmatpush.bf16.msra.mxu0 %v1616
    %2035 = vmatpush.bf16.msra.mxu0 %v1612
    %2036 = vmatpush.bf16.msra.mxu0 %v1608
    %2037 = vmatpush.bf16.msra.mxu0 %v1604
    %2038 = vmatpush.bf16.msra.mxu0 %v1600
    %2039 = vmatpush.bf16.msra.mxu0 %v1596
    %2040 = vmatpush.bf16.msra.mxu0 %v1592
    %2041 = vmatpush.bf16.msra.mxu0 %v1588
    %2042 = vmatmul.bf16.gmra.mxu0 %v2020
    %v2043 = vpop.f32.mrf.mxu0
    %v2044 = vadd.f32 %v2031, %v2043
    %v2045 = vpop.f32.mrf.mxu0
    %2046 = vdwg.mxu0
    %2047 = vmatpush.bf16.msra.mxu0 %v1585
    %2048 = vmatpush.bf16.msra.mxu0 %v1581
    %2049 = vmatpush.bf16.msra.mxu0 %v1577
    %2050 = vmatpush.bf16.msra.mxu0 %v1573
    %2051 = vmatpush.bf16.msra.mxu0 %v1569
    %2052 = vmatpush.bf16.msra.mxu0 %v1565
    %2053 = vmatpush.bf16.msra.mxu0 %v1561
    %2054 = vmatpush.bf16.msra.mxu0 %v1557
    %2055 = vmatmul.bf16.gmra.mxu0 %v2019
    %v2056 = vpop.f32.mrf.mxu0
    %v2057 = vadd.f32 %v1357, %v2056
    %v2058 = vpop.f32.mrf.mxu0
    %2059 = vdwg.mxu0
    %2060 = vmatpush.bf16.msra.mxu0 %v1617
    %2061 = vmatpush.bf16.msra.mxu0 %v1613
    %2062 = vmatpush.bf16.msra.mxu0 %v1609
    %2063 = vmatpush.bf16.msra.mxu0 %v1605
    %2064 = vmatpush.bf16.msra.mxu0 %v1601
    %2065 = vmatpush.bf16.msra.mxu0 %v1597
    %2066 = vmatpush.bf16.msra.mxu0 %v1593
    %2067 = vmatpush.bf16.msra.mxu0 %v1589
    %2068 = vmatmul.bf16.gmra.mxu0 %v2020
    %v2069 = vpop.f32.mrf.mxu0
    %v2070 = vadd.f32 %v2057, %v2069
    %v2071 = vpop.f32.mrf.mxu0
    %2072 = vdwg.mxu0
    %2073 = vmatpush.bf16.msra.mxu0 %v1586
    %2074 = vmatpush.bf16.msra.mxu0 %v1582
    %2075 = vmatpush.bf16.msra.mxu0 %v1578
    %2076 = vmatpush.bf16.msra.mxu0 %v1574
    %2077 = vmatpush.bf16.msra.mxu0 %v1570
    %2078 = vmatpush.bf16.msra.mxu0 %v1566
    %2079 = vmatpush.bf16.msra.mxu0 %v1562
    %2080 = vmatpush.bf16.msra.mxu0 %v1558
    %2081 = vmatmul.bf16.gmra.mxu0 %v2019
    %v2082 = vpop.f32.mrf.mxu0
    %v2083 = vadd.f32 %v1358, %v2082
    %v2084 = vpop.f32.mrf.mxu0
    %2085 = vdwg.mxu0
    %2086 = vmatpush.bf16.msra.mxu0 %v1618
    %2087 = vmatpush.bf16.msra.mxu0 %v1614
    %2088 = vmatpush.bf16.msra.mxu0 %v1610
    %2089 = vmatpush.bf16.msra.mxu0 %v1606
    %2090 = vmatpush.bf16.msra.mxu0 %v1602
    %2091 = vmatpush.bf16.msra.mxu0 %v1598
    %2092 = vmatpush.bf16.msra.mxu0 %v1594
    %2093 = vmatpush.bf16.msra.mxu0 %v1590
    %2094 = vmatmul.bf16.gmra.mxu0 %v2020
    %v2095 = vpop.f32.mrf.mxu0
    %v2096 = vadd.f32 %v2083, %v2095
    %v2097 = vpop.f32.mrf.mxu0
    %2098 = vdwg.mxu0
    %2099 = vmatpush.bf16.msra.mxu0 %v1587
    %2100 = vmatpush.bf16.msra.mxu0 %v1583
    %2101 = vmatpush.bf16.msra.mxu0 %v1579
    %2102 = vmatpush.bf16.msra.mxu0 %v1575
    %2103 = vmatpush.bf16.msra.mxu0 %v1571
    %2104 = vmatpush.bf16.msra.mxu0 %v1567
    %2105 = vmatpush.bf16.msra.mxu0 %v1563
    %2106 = vmatpush.bf16.msra.mxu0 %v1559
    %2107 = vmatmul.bf16.gmra.mxu0 %v2019
    %v2108 = vpop.f32.mrf.mxu0
    %v2109 = vadd.f32 %v1359, %v2108
    %v2110 = vpop.f32.mrf.mxu0
    %2111 = vdwg.mxu0
    %2112 = vmatpush.bf16.msra.mxu0 %v1619
    %2113 = vmatpush.bf16.msra.mxu0 %v1615
    %2114 = vmatpush.bf16.msra.mxu0 %v1611
    %2115 = vmatpush.bf16.msra.mxu0 %v1607
    %2116 = vmatpush.bf16.msra.mxu0 %v1603
    %2117 = vmatpush.bf16.msra.mxu0 %v1599
    %2118 = vmatpush.bf16.msra.mxu0 %v1595
    %2119 = vmatpush.bf16.msra.mxu0 %v1591
    %2120 = vmatmul.bf16.gmra.mxu0 %v2020
    %v2121 = vpop.f32.mrf.mxu0
    %v2122 = vadd.f32 %v2109, %v2121
    %v2123 = vpop.f32.mrf.mxu0
    %2124 = vdwg.mxu0
    %v2125 = vmul.f32 %v2044, 0.5
    %v2126 = vmul.f32 %v2070, 0.5
    %v2127 = vmul.f32 %v2096, 0.5
    %v2128 = vtanh.pop %v2125
    %v2129 = vtanh.pop %v2126
    %v2130 = vtanh.pop %v2127
    %v2131 = vmul.f32 %v2128, 0.5
    %v2132 = vmul.f32 %v2129, 0.5
    %v2133 = vmul.f32 %v2130, 0.5
    %v2134 = vadd.f32 %v2131, 0.5
    %v2135 = vadd.f32 %v2132, 0.5
    %v2136 = vadd.f32 %v2133, 0.5
    %v2137 = vtanh.pop %v2122
    %v2138 = vmul.f32 %v2135, %v1807
    %v2139 = vmul.f32 %v2134, %v2137
    %v2140 = vadd.f32 %v2138, %v2139
    %v2141 = vtanh.pop %v2140
    %v2142 = vmul.f32 %v2136, %v2141
    %v2143 = vsel %vm1891, %v2142, %v1806
    %v2144 = vsel %vm1891, %v2140, %v1807
    %vm2145 = vcmp.gt.s32.totalorder %v108, 2
    %v2146 = vld [vmem:[#allocation2 + $0x40] sm:$0xff]
    %v2147 = vld [vmem:[#allocation2 + $0x48] sm:$0xff]
    %v2148 = vld [vmem:[#allocation2 + $0x50] sm:$0xff]
    %v2149 = vld [vmem:[#allocation2 + $0x58] sm:$0xff]
    %2150 = vmatpush.bf16.msra.mxu0 %v782
    %2151 = vmatpush.bf16.msra.mxu0 %v778
    %2152 = vmatpush.bf16.msra.mxu0 %v774
    %2153 = vmatpush.bf16.msra.mxu0 %v770
    %2154 = vmatpush.bf16.msra.mxu0 %v766
    %2155 = vmatpush.bf16.msra.mxu0 %v762
    %2156 = vmatpush.bf16.msra.mxu0 %v758
    %2157 = vmatpush.bf16.msra.mxu0 %v754
    %2158 = vmatmul.bf16.gmra.mxu0 %v1894
    %v2159 = vpop.f32.mrf.mxu0
    %v2160 = vadd.f32 0.0, %v2159
    %v2161 = vpop.f32.mrf.mxu0
    %2162 = vdwg.mxu0
    %2163 = vmatpush.bf16.msra.mxu0 %v783
    %2164 = vmatpush.bf16.msra.mxu0 %v779
    %2165 = vmatpush.bf16.msra.mxu0 %v775
    %2166 = vmatpush.bf16.msra.mxu0 %v771
    %2167 = vmatpush.bf16.msra.mxu0 %v767
    %2168 = vmatpush.bf16.msra.mxu0 %v763
    %2169 = vmatpush.bf16.msra.mxu0 %v759
    %2170 = vmatpush.bf16.msra.mxu0 %v755
    %2171 = vmatmul.bf16.gmra.mxu0 %v1894
    %v2172 = vpop.f32.mrf.mxu0
    %v2173 = vadd.f32 0.0, %v2172
    %v2174 = vpop.f32.mrf.mxu0
    %2175 = vdwg.mxu0
    %2176 = vmatpush.bf16.msra.mxu0 %v784
    %2177 = vmatpush.bf16.msra.mxu0 %v780
    %2178 = vmatpush.bf16.msra.mxu0 %v776
    %2179 = vmatpush.bf16.msra.mxu0 %v772
    %2180 = vmatpush.bf16.msra.mxu0 %v768
    %2181 = vmatpush.bf16.msra.mxu0 %v764
    %2182 = vmatpush.bf16.msra.mxu0 %v760
    %2183 = vmatpush.bf16.msra.mxu0 %v756
    %2184 = vmatmul.bf16.gmra.mxu0 %v1894
    %v2185 = vpop.f32.mrf.mxu0
    %v2186 = vadd.f32 0.0, %v2185
    %v2187 = vpop.f32.mrf.mxu0
    %2188 = vdwg.mxu0
    %2189 = vmatpush.bf16.msra.mxu0 %v785
    %2190 = vmatpush.bf16.msra.mxu0 %v781
    %2191 = vmatpush.bf16.msra.mxu0 %v777
    %2192 = vmatpush.bf16.msra.mxu0 %v773
    %2193 = vmatpush.bf16.msra.mxu0 %v769
    %2194 = vmatpush.bf16.msra.mxu0 %v765
    %2195 = vmatpush.bf16.msra.mxu0 %v761
    %2196 = vmatpush.bf16.msra.mxu0 %v757
    %2197 = vmatmul.bf16.gmra.mxu0 %v1894
    %v2198 = vpop.f32.mrf.mxu0
    %v2199 = vadd.f32 0.0, %v2198
    %v2200 = vpop.f32.mrf.mxu0
    %2201 = vdwg.mxu0
    %v2202 = vadd.f32 %v2146, %v2160
    %v2203 = vadd.f32 %v2147, %v2173
    %v2204 = vadd.f32 %v2148, %v2186
    %v2205 = vadd.f32 %v2149, %v2199
    %v2206 = vmul.f32 %v2202, 0.5
    %v2207 = vmul.f32 %v2203, 0.5
    %v2208 = vmul.f32 %v2204, 0.5
    %v2209 = vtanh.pop %v2206
    %v2210 = vtanh.pop %v2207
    %v2211 = vtanh.pop %v2208
    %v2212 = vmul.f32 %v2209, 0.5
    %v2213 = vmul.f32 %v2210, 0.5
    %v2214 = vmul.f32 %v2211, 0.5
    %v2215 = vadd.f32 %v2212, 0.5
    %v2216 = vadd.f32 %v2213, 0.5
    %v2217 = vadd.f32 %v2214, 0.5
    %v2218 = vtanh.pop %v2205
    %v2219 = vmul.f32 %v2216, %v1893
    %v2220 = vmul.f32 %v2215, %v2218
    %v2221 = vadd.f32 %v2219, %v2220
    %v2222 = vtanh.pop %v2221
    %v2223 = vmul.f32 %v2217, %v2222
    %v2224 = vsel %vm2145, 1, 0
    %2225 = vset.pattern.permute.xlu0 0
    %2226 = vperm.xlu0 %2225, %v2224
    %v2227 = vpop.permute.xlu0 %2226
    %vm2228 = vcmp.eq.s32.totalorder %v2227, 1
    %v2229 = vsel %vm2228, %v2223, %v1892
    %v2230 = vsel %vm2228, %v2221, %v1893
    %v2231 = vpack.c.bf16 %v2229, %v2229
    %2232 = vmatpush.bf16.msra.mxu0 %v1130
    %2233 = vmatpush.bf16.msra.mxu0 %v1126
    %2234 = vmatpush.bf16.msra.mxu0 %v1122
    %2235 = vmatpush.bf16.msra.mxu0 %v1118
    %2236 = vmatpush.bf16.msra.mxu0 %v1114
    %2237 = vmatpush.bf16.msra.mxu0 %v1110
    %2238 = vmatpush.bf16.msra.mxu0 %v1106
    %2239 = vmatpush.bf16.msra.mxu0 %v1102
    %2240 = vmatmul.bf16.gmra.mxu0 %v2231
    %v2241 = vpop.f32.mrf.mxu0
    %v2242 = vadd.f32 %v902, %v2241
    %v2243 = vpop.f32.mrf.mxu0
    %2244 = vdwg.mxu0
    %2245 = vmatpush.bf16.msra.mxu0 %v1162
    %2246 = vmatpush.bf16.msra.mxu0 %v1158
    %2247 = vmatpush.bf16.msra.mxu0 %v1154
    %2248 = vmatpush.bf16.msra.mxu0 %v1150
    %2249 = vmatpush.bf16.msra.mxu0 %v1146
    %2250 = vmatpush.bf16.msra.mxu0 %v1142
    %2251 = vmatpush.bf16.msra.mxu0 %v1138
    %2252 = vmatpush.bf16.msra.mxu0 %v1134
    %2253 = vmatmul.bf16.gmra.mxu0 %v2019
    %v2254 = vpop.f32.mrf.mxu0
    %v2255 = vadd.f32 %v2242, %v2254
    %v2256 = vpop.f32.mrf.mxu0
    %2257 = vdwg.mxu0
    %2258 = vmatpush.bf16.msra.mxu0 %v1131
    %2259 = vmatpush.bf16.msra.mxu0 %v1127
    %2260 = vmatpush.bf16.msra.mxu0 %v1123
    %2261 = vmatpush.bf16.msra.mxu0 %v1119
    %2262 = vmatpush.bf16.msra.mxu0 %v1115
    %2263 = vmatpush.bf16.msra.mxu0 %v1111
    %2264 = vmatpush.bf16.msra.mxu0 %v1107
    %2265 = vmatpush.bf16.msra.mxu0 %v1103
    %2266 = vmatmul.bf16.gmra.mxu0 %v2231
    %v2267 = vpop.f32.mrf.mxu0
    %v2268 = vadd.f32 %v903, %v2267
    %v2269 = vpop.f32.mrf.mxu0
    %2270 = vdwg.mxu0
    %2271 = vmatpush.bf16.msra.mxu0 %v1163
    %2272 = vmatpush.bf16.msra.mxu0 %v1159
    %2273 = vmatpush.bf16.msra.mxu0 %v1155
    %2274 = vmatpush.bf16.msra.mxu0 %v1151
    %2275 = vmatpush.bf16.msra.mxu0 %v1147
    %2276 = vmatpush.bf16.msra.mxu0 %v1143
    %2277 = vmatpush.bf16.msra.mxu0 %v1139
    %2278 = vmatpush.bf16.msra.mxu0 %v1135
    %2279 = vmatmul.bf16.gmra.mxu0 %v2019
    %v2280 = vpop.f32.mrf.mxu0
    %v2281 = vadd.f32 %v2268, %v2280
    %v2282 = vpop.f32.mrf.mxu0
    %2283 = vdwg.mxu0
    %2284 = vmatpush.bf16.msra.mxu0 %v1132
    %2285 = vmatpush.bf16.msra.mxu0 %v1128
    %2286 = vmatpush.bf16.msra.mxu0 %v1124
    %2287 = vmatpush.bf16.msra.mxu0 %v1120
    %2288 = vmatpush.bf16.msra.mxu0 %v1116
    %2289 = vmatpush.bf16.msra.mxu0 %v1112
    %2290 = vmatpush.bf16.msra.mxu0 %v1108
    %2291 = vmatpush.bf16.msra.mxu0 %v1104
    %2292 = vmatmul.bf16.gmra.mxu0 %v2231
    %v2293 = vpop.f32.mrf.mxu0
    %v2294 = vadd.f32 %v904, %v2293
    %v2295 = vpop.f32.mrf.mxu0
    %2296 = vdwg.mxu0
    %2297 = vmatpush.bf16.msra.mxu0 %v1164
    %2298 = vmatpush.bf16.msra.mxu0 %v1160
    %2299 = vmatpush.bf16.msra.mxu0 %v1156
    %2300 = vmatpush.bf16.msra.mxu0 %v1152
    %2301 = vmatpush.bf16.msra.mxu0 %v1148
    %2302 = vmatpush.bf16.msra.mxu0 %v1144
    %2303 = vmatpush.bf16.msra.mxu0 %v1140
    %2304 = vmatpush.bf16.msra.mxu0 %v1136
    %2305 = vmatmul.bf16.gmra.mxu0 %v2019
    %v2306 = vpop.f32.mrf.mxu0
    %v2307 = vadd.f32 %v2294, %v2306
    %v2308 = vpop.f32.mrf.mxu0
    %2309 = vdwg.mxu0
    %2310 = vmatpush.bf16.msra.mxu0 %v1133
    %2311 = vmatpush.bf16.msra.mxu0 %v1129
    %2312 = vmatpush.bf16.msra.mxu0 %v1125
    %2313 = vmatpush.bf16.msra.mxu0 %v1121
    %2314 = vmatpush.bf16.msra.mxu0 %v1117
    %2315 = vmatpush.bf16.msra.mxu0 %v1113
    %2316 = vmatpush.bf16.msra.mxu0 %v1109
    %2317 = vmatpush.bf16.msra.mxu0 %v1105
    %2318 = vmatmul.bf16.gmra.mxu0 %v2231
    %v2319 = vpop.f32.mrf.mxu0
    %v2320 = vadd.f32 %v905, %v2319
    %v2321 = vpop.f32.mrf.mxu0
    %2322 = vdwg.mxu0
    %2323 = vmatpush.bf16.msra.mxu0 %v1165
    %2324 = vmatpush.bf16.msra.mxu0 %v1161
    %2325 = vmatpush.bf16.msra.mxu0 %v1157
    %2326 = vmatpush.bf16.msra.mxu0 %v1153
    %2327 = vmatpush.bf16.msra.mxu0 %v1149
    %2328 = vmatpush.bf16.msra.mxu0 %v1145
    %2329 = vmatpush.bf16.msra.mxu0 %v1141
    %2330 = vmatpush.bf16.msra.mxu0 %v1137
    %2331 = vmatmul.bf16.gmra.mxu0 %v2019
    %v2332 = vpop.f32.mrf.mxu0
    %v2333 = vadd.f32 %v2320, %v2332
    %v2334 = vpop.f32.mrf.mxu0
    %2335 = vdwg.mxu0
    %v2336 = vmul.f32 %v2255, 0.5
    %v2337 = vmul.f32 %v2281, 0.5
    %v2338 = vmul.f32 %v2307, 0.5
    %v2339 = vtanh.pop %v2336
    %v2340 = vtanh.pop %v2337
    %v2341 = vtanh.pop %v2338
    %v2342 = vmul.f32 %v2339, 0.5
    %v2343 = vmul.f32 %v2340, 0.5
    %v2344 = vmul.f32 %v2341, 0.5
    %v2345 = vadd.f32 %v2342, 0.5
    %v2346 = vadd.f32 %v2343, 0.5
    %v2347 = vadd.f32 %v2344, 0.5
    %v2348 = vtanh.pop %v2333
    %v2349 = vmul.f32 %v2346, %v2018
    %v2350 = vmul.f32 %v2345, %v2348
    %v2351 = vadd.f32 %v2349, %v2350
    %v2352 = vtanh.pop %v2351
    %v2353 = vmul.f32 %v2347, %v2352
    %v2354 = vsel %vm2228, %v2353, %v2017
    %v2355 = vsel %vm2228, %v2351, %v2018
    %v2356 = vpack.c.bf16 %v2354, %v2354
    %v2357 = vpack.c.bf16 %v2143, %v2143
    %2358 = vmatpush.bf16.msra.mxu0 %v1584
    %2359 = vmatpush.bf16.msra.mxu0 %v1580
    %2360 = vmatpush.bf16.msra.mxu0 %v1576
    %2361 = vmatpush.bf16.msra.mxu0 %v1572
    %2362 = vmatpush.bf16.msra.mxu0 %v1568
    %2363 = vmatpush.bf16.msra.mxu0 %v1564
    %2364 = vmatpush.bf16.msra.mxu0 %v1560
    %2365 = vmatpush.bf16.msra.mxu0 %v1556
    %2366 = vmatmul.bf16.gmra.mxu0 %v2356
    %v2367 = vpop.f32.mrf.mxu0
    %v2368 = vadd.f32 %v1356, %v2367
    %v2369 = vpop.f32.mrf.mxu0
    %2370 = vdwg.mxu0
    %2371 = vmatpush.bf16.msra.mxu0 %v1616
    %2372 = vmatpush.bf16.msra.mxu0 %v1612
    %2373 = vmatpush.bf16.msra.mxu0 %v1608
    %2374 = vmatpush.bf16.msra.mxu0 %v1604
    %2375 = vmatpush.bf16.msra.mxu0 %v1600
    %2376 = vmatpush.bf16.msra.mxu0 %v1596
    %2377 = vmatpush.bf16.msra.mxu0 %v1592
    %2378 = vmatpush.bf16.msra.mxu0 %v1588
    %2379 = vmatmul.bf16.gmra.mxu0 %v2357
    %v2380 = vpop.f32.mrf.mxu0
    %v2381 = vadd.f32 %v2368, %v2380
    %v2382 = vpop.f32.mrf.mxu0
    %2383 = vdwg.mxu0
    %2384 = vmatpush.bf16.msra.mxu0 %v1585
    %2385 = vmatpush.bf16.msra.mxu0 %v1581
    %2386 = vmatpush.bf16.msra.mxu0 %v1577
    %2387 = vmatpush.bf16.msra.mxu0 %v1573
    %2388 = vmatpush.bf16.msra.mxu0 %v1569
    %2389 = vmatpush.bf16.msra.mxu0 %v1565
    %2390 = vmatpush.bf16.msra.mxu0 %v1561
    %2391 = vmatpush.bf16.msra.mxu0 %v1557
    %2392 = vmatmul.bf16.gmra.mxu0 %v2356
    %v2393 = vpop.f32.mrf.mxu0
    %v2394 = vadd.f32 %v1357, %v2393
    %v2395 = vpop.f32.mrf.mxu0
    %2396 = vdwg.mxu0
    %2397 = vmatpush.bf16.msra.mxu0 %v1617
    %2398 = vmatpush.bf16.msra.mxu0 %v1613
    %2399 = vmatpush.bf16.msra.mxu0 %v1609
    %2400 = vmatpush.bf16.msra.mxu0 %v1605
    %2401 = vmatpush.bf16.msra.mxu0 %v1601
    %2402 = vmatpush.bf16.msra.mxu0 %v1597
    %2403 = vmatpush.bf16.msra.mxu0 %v1593
    %2404 = vmatpush.bf16.msra.mxu0 %v1589
    %2405 = vmatmul.bf16.gmra.mxu0 %v2357
    %v2406 = vpop.f32.mrf.mxu0
    %v2407 = vadd.f32 %v2394, %v2406
    %v2408 = vpop.f32.mrf.mxu0
    %2409 = vdwg.mxu0
    %2410 = vmatpush.bf16.msra.mxu0 %v1586
    %2411 = vmatpush.bf16.msra.mxu0 %v1582
    %2412 = vmatpush.bf16.msra.mxu0 %v1578
    %2413 = vmatpush.bf16.msra.mxu0 %v1574
    %2414 = vmatpush.bf16.msra.mxu0 %v1570
    %2415 = vmatpush.bf16.msra.mxu0 %v1566
    %2416 = vmatpush.bf16.msra.mxu0 %v1562
    %2417 = vmatpush.bf16.msra.mxu0 %v1558
    %2418 = vmatmul.bf16.gmra.mxu0 %v2356
    %v2419 = vpop.f32.mrf.mxu0
    %v2420 = vadd.f32 %v1358, %v2419
    %v2421 = vpop.f32.mrf.mxu0
    %2422 = vdwg.mxu0
    %2423 = vmatpush.bf16.msra.mxu0 %v1618
    %2424 = vmatpush.bf16.msra.mxu0 %v1614
    %2425 = vmatpush.bf16.msra.mxu0 %v1610
    %2426 = vmatpush.bf16.msra.mxu0 %v1606
    %2427 = vmatpush.bf16.msra.mxu0 %v1602
    %2428 = vmatpush.bf16.msra.mxu0 %v1598
    %2429 = vmatpush.bf16.msra.mxu0 %v1594
    %2430 = vmatpush.bf16.msra.mxu0 %v1590
    %2431 = vmatmul.bf16.gmra.mxu0 %v2357
    %v2432 = vpop.f32.mrf.mxu0
    %v2433 = vadd.f32 %v2420, %v2432
    %v2434 = vpop.f32.mrf.mxu0
    %2435 = vdwg.mxu0
    %2436 = vmatpush.bf16.msra.mxu0 %v1587
    %2437 = vmatpush.bf16.msra.mxu0 %v1583
    %2438 = vmatpush.bf16.msra.mxu0 %v1579
    %2439 = vmatpush.bf16.msra.mxu0 %v1575
    %2440 = vmatpush.bf16.msra.mxu0 %v1571
    %2441 = vmatpush.bf16.msra.mxu0 %v1567
    %2442 = vmatpush.bf16.msra.mxu0 %v1563
    %2443 = vmatpush.bf16.msra.mxu0 %v1559
    %2444 = vmatmul.bf16.gmra.mxu0 %v2356
    %v2445 = vpop.f32.mrf.mxu0
    %v2446 = vadd.f32 %v1359, %v2445
    %v2447 = vpop.f32.mrf.mxu0
    %2448 = vdwg.mxu0
    %2449 = vmatpush.bf16.msra.mxu0 %v1619
    %2450 = vmatpush.bf16.msra.mxu0 %v1615
    %2451 = vmatpush.bf16.msra.mxu0 %v1611
    %2452 = vmatpush.bf16.msra.mxu0 %v1607
    %2453 = vmatpush.bf16.msra.mxu0 %v1603
    %2454 = vmatpush.bf16.msra.mxu0 %v1599
    %2455 = vmatpush.bf16.msra.mxu0 %v1595
    %2456 = vmatpush.bf16.msra.mxu0 %v1591
    %2457 = vmatmul.bf16.gmra.mxu0 %v2357
    %v2458 = vpop.f32.mrf.mxu0
    %v2459 = vadd.f32 %v2446, %v2458
    %v2460 = vpop.f32.mrf.mxu0
    %2461 = vdwg.mxu0
    %v2462 = vmul.f32 %v2381, 0.5
    %v2463 = vmul.f32 %v2407, 0.5
    %v2464 = vmul.f32 %v2433, 0.5
    %v2465 = vtanh.pop %v2462
    %v2466 = vtanh.pop %v2463
    %v2467 = vtanh.pop %v2464
    %v2468 = vmul.f32 %v2465, 0.5
    %v2469 = vmul.f32 %v2466, 0.5
    %v2470 = vmul.f32 %v2467, 0.5
    %v2471 = vadd.f32 %v2468, 0.5
    %v2472 = vadd.f32 %v2469, 0.5
    %v2473 = vadd.f32 %v2470, 0.5
    %v2474 = vtanh.pop %v2459
    %v2475 = vmul.f32 %v2472, %v2144
    %v2476 = vmul.f32 %v2471, %v2474
    %v2477 = vadd.f32 %v2475, %v2476
    %v2478 = vtanh.pop %v2477
    %v2479 = vmul.f32 %v2473, %v2478
    %v2480 = vsel %vm2228, %v2479, %v2143
    %v2481 = vsel %vm2228, %v2477, %v2144
    %vm2482 = vcmp.gt.s32.totalorder %v108, 3
    %v2483 = vld [vmem:[#allocation2 + $0x60] sm:$0xff]
    %v2484 = vld [vmem:[#allocation2 + $0x68] sm:$0xff]
    %v2485 = vld [vmem:[#allocation2 + $0x70] sm:$0xff]
    %v2486 = vld [vmem:[#allocation2 + $0x78] sm:$0xff]
    %2487 = vmatpush.bf16.msra.mxu0 %v782
    %2488 = vmatpush.bf16.msra.mxu0 %v778
    %2489 = vmatpush.bf16.msra.mxu0 %v774
    %2490 = vmatpush.bf16.msra.mxu0 %v770
    %2491 = vmatpush.bf16.msra.mxu0 %v766
    %2492 = vmatpush.bf16.msra.mxu0 %v762
    %2493 = vmatpush.bf16.msra.mxu0 %v758
    %2494 = vmatpush.bf16.msra.mxu0 %v754
    %2495 = vmatmul.bf16.gmra.mxu0 %v2231
    %v2496 = vpop.f32.mrf.mxu0
    %v2497 = vadd.f32 0.0, %v2496
    %v2498 = vpop.f32.mrf.mxu0
    %2499 = vdwg.mxu0
    %2500 = vmatpush.bf16.msra.mxu0 %v783
    %2501 = vmatpush.bf16.msra.mxu0 %v779
    %2502 = vmatpush.bf16.msra.mxu0 %v775
    %2503 = vmatpush.bf16.msra.mxu0 %v771
    %2504 = vmatpush.bf16.msra.mxu0 %v767
    %2505 = vmatpush.bf16.msra.mxu0 %v763
    %2506 = vmatpush.bf16.msra.mxu0 %v759
    %2507 = vmatpush.bf16.msra.mxu0 %v755
    %2508 = vmatmul.bf16.gmra.mxu0 %v2231
    %v2509 = vpop.f32.mrf.mxu0
    %v2510 = vadd.f32 0.0, %v2509
    %v2511 = vpop.f32.mrf.mxu0
    %2512 = vdwg.mxu0
    %2513 = vmatpush.bf16.msra.mxu0 %v784
    %2514 = vmatpush.bf16.msra.mxu0 %v780
    %2515 = vmatpush.bf16.msra.mxu0 %v776
    %2516 = vmatpush.bf16.msra.mxu0 %v772
    %2517 = vmatpush.bf16.msra.mxu0 %v768
    %2518 = vmatpush.bf16.msra.mxu0 %v764
    %2519 = vmatpush.bf16.msra.mxu0 %v760
    %2520 = vmatpush.bf16.msra.mxu0 %v756
    %2521 = vmatmul.bf16.gmra.mxu0 %v2231
    %v2522 = vpop.f32.mrf.mxu0
    %v2523 = vadd.f32 0.0, %v2522
    %v2524 = vpop.f32.mrf.mxu0
    %2525 = vdwg.mxu0
    %2526 = vmatpush.bf16.msra.mxu0 %v785
    %2527 = vmatpush.bf16.msra.mxu0 %v781
    %2528 = vmatpush.bf16.msra.mxu0 %v777
    %2529 = vmatpush.bf16.msra.mxu0 %v773
    %2530 = vmatpush.bf16.msra.mxu0 %v769
    %2531 = vmatpush.bf16.msra.mxu0 %v765
    %2532 = vmatpush.bf16.msra.mxu0 %v761
    %2533 = vmatpush.bf16.msra.mxu0 %v757
    %2534 = vmatmul.bf16.gmra.mxu0 %v2231
    %v2535 = vpop.f32.mrf.mxu0
    %v2536 = vadd.f32 0.0, %v2535
    %v2537 = vpop.f32.mrf.mxu0
    %2538 = vdwg.mxu0
    %v2539 = vadd.f32 %v2483, %v2497
    %v2540 = vadd.f32 %v2484, %v2510
    %v2541 = vadd.f32 %v2485, %v2523
    %v2542 = vadd.f32 %v2486, %v2536
    %v2543 = vmul.f32 %v2539, 0.5
    %v2544 = vmul.f32 %v2540, 0.5
    %v2545 = vmul.f32 %v2541, 0.5
    %v2546 = vtanh.pop %v2543
    %v2547 = vtanh.pop %v2544
    %v2548 = vtanh.pop %v2545
    %v2549 = vmul.f32 %v2546, 0.5
    %v2550 = vmul.f32 %v2547, 0.5
    %v2551 = vmul.f32 %v2548, 0.5
    %v2552 = vadd.f32 %v2549, 0.5
    %v2553 = vadd.f32 %v2550, 0.5
    %v2554 = vadd.f32 %v2551, 0.5
    %v2555 = vtanh.pop %v2542
    %v2556 = vmul.f32 %v2553, %v2230
    %v2557 = vmul.f32 %v2552, %v2555
    %v2558 = vadd.f32 %v2556, %v2557
    %v2559 = vtanh.pop %v2558
    %v2560 = vmul.f32 %v2554, %v2559
    %v2561 = vsel %vm2482, 1, 0
    %2562 = vset.pattern.permute.xlu0 0
    %2563 = vperm.xlu0 %2562, %v2561
    %v2564 = vpop.permute.xlu0 %2563
    %vm2565 = vcmp.eq.s32.totalorder %v2564, 1
    %v2566 = vsel %vm2565, %v2560, %v2229
    %v2567 = vsel %vm2565, %v2558, %v2230
    %v2568 = vpack.c.bf16 %v2566, %v2566
    %2569 = vmatpush.bf16.msra.mxu0 %v1130
    %2570 = vmatpush.bf16.msra.mxu0 %v1126
    %2571 = vmatpush.bf16.msra.mxu0 %v1122
    %2572 = vmatpush.bf16.msra.mxu0 %v1118
    %2573 = vmatpush.bf16.msra.mxu0 %v1114
    %2574 = vmatpush.bf16.msra.mxu0 %v1110
    %2575 = vmatpush.bf16.msra.mxu0 %v1106
    %2576 = vmatpush.bf16.msra.mxu0 %v1102
    %2577 = vmatmul.bf16.gmra.mxu0 %v2568
    %v2578 = vpop.f32.mrf.mxu0
    %v2579 = vadd.f32 %v902, %v2578
    %v2580 = vpop.f32.mrf.mxu0
    %2581 = vdwg.mxu0
    %2582 = vmatpush.bf16.msra.mxu0 %v1162
    %2583 = vmatpush.bf16.msra.mxu0 %v1158
    %2584 = vmatpush.bf16.msra.mxu0 %v1154
    %2585 = vmatpush.bf16.msra.mxu0 %v1150
    %2586 = vmatpush.bf16.msra.mxu0 %v1146
    %2587 = vmatpush.bf16.msra.mxu0 %v1142
    %2588 = vmatpush.bf16.msra.mxu0 %v1138
    %2589 = vmatpush.bf16.msra.mxu0 %v1134
    %2590 = vmatmul.bf16.gmra.mxu0 %v2356
    %v2591 = vpop.f32.mrf.mxu0
    %v2592 = vadd.f32 %v2579, %v2591
    %v2593 = vpop.f32.mrf.mxu0
    %2594 = vdwg.mxu0
    %2595 = vmatpush.bf16.msra.mxu0 %v1131
    %2596 = vmatpush.bf16.msra.mxu0 %v1127
    %2597 = vmatpush.bf16.msra.mxu0 %v1123
    %2598 = vmatpush.bf16.msra.mxu0 %v1119
    %2599 = vmatpush.bf16.msra.mxu0 %v1115
    %2600 = vmatpush.bf16.msra.mxu0 %v1111
    %2601 = vmatpush.bf16.msra.mxu0 %v1107
    %2602 = vmatpush.bf16.msra.mxu0 %v1103
    %2603 = vmatmul.bf16.gmra.mxu0 %v2568
    %v2604 = vpop.f32.mrf.mxu0
    %v2605 = vadd.f32 %v903, %v2604
    %v2606 = vpop.f32.mrf.mxu0
    %2607 = vdwg.mxu0
    %2608 = vmatpush.bf16.msra.mxu0 %v1163
    %2609 = vmatpush.bf16.msra.mxu0 %v1159
    %2610 = vmatpush.bf16.msra.mxu0 %v1155
    %2611 = vmatpush.bf16.msra.mxu0 %v1151
    %2612 = vmatpush.bf16.msra.mxu0 %v1147
    %2613 = vmatpush.bf16.msra.mxu0 %v1143
    %2614 = vmatpush.bf16.msra.mxu0 %v1139
    %2615 = vmatpush.bf16.msra.mxu0 %v1135
    %2616 = vmatmul.bf16.gmra.mxu0 %v2356
    %v2617 = vpop.f32.mrf.mxu0
    %v2618 = vadd.f32 %v2605, %v2617
    %v2619 = vpop.f32.mrf.mxu0
    %2620 = vdwg.mxu0
    %2621 = vmatpush.bf16.msra.mxu0 %v1132
    %2622 = vmatpush.bf16.msra.mxu0 %v1128
    %2623 = vmatpush.bf16.msra.mxu0 %v1124
    %2624 = vmatpush.bf16.msra.mxu0 %v1120
    %2625 = vmatpush.bf16.msra.mxu0 %v1116
    %2626 = vmatpush.bf16.msra.mxu0 %v1112
    %2627 = vmatpush.bf16.msra.mxu0 %v1108
    %2628 = vmatpush.bf16.msra.mxu0 %v1104
    %2629 = vmatmul.bf16.gmra.mxu0 %v2568
    %v2630 = vpop.f32.mrf.mxu0
    %v2631 = vadd.f32 %v904, %v2630
    %v2632 = vpop.f32.mrf.mxu0
    %2633 = vdwg.mxu0
    %2634 = vmatpush.bf16.msra.mxu0 %v1164
    %2635 = vmatpush.bf16.msra.mxu0 %v1160
    %2636 = vmatpush.bf16.msra.mxu0 %v1156
    %2637 = vmatpush.bf16.msra.mxu0 %v1152
    %2638 = vmatpush.bf16.msra.mxu0 %v1148
    %2639 = vmatpush.bf16.msra.mxu0 %v1144
    %2640 = vmatpush.bf16.msra.mxu0 %v1140
    %2641 = vmatpush.bf16.msra.mxu0 %v1136
    %2642 = vmatmul.bf16.gmra.mxu0 %v2356
    %v2643 = vpop.f32.mrf.mxu0
    %v2644 = vadd.f32 %v2631, %v2643
    %v2645 = vpop.f32.mrf.mxu0
    %2646 = vdwg.mxu0
    %2647 = vmatpush.bf16.msra.mxu0 %v1133
    %2648 = vmatpush.bf16.msra.mxu0 %v1129
    %2649 = vmatpush.bf16.msra.mxu0 %v1125
    %2650 = vmatpush.bf16.msra.mxu0 %v1121
    %2651 = vmatpush.bf16.msra.mxu0 %v1117
    %2652 = vmatpush.bf16.msra.mxu0 %v1113
    %2653 = vmatpush.bf16.msra.mxu0 %v1109
    %2654 = vmatpush.bf16.msra.mxu0 %v1105
    %2655 = vmatmul.bf16.gmra.mxu0 %v2568
    %v2656 = vpop.f32.mrf.mxu0
    %v2657 = vadd.f32 %v905, %v2656
    %v2658 = vpop.f32.mrf.mxu0
    %2659 = vdwg.mxu0
    %2660 = vmatpush.bf16.msra.mxu0 %v1165
    %2661 = vmatpush.bf16.msra.mxu0 %v1161
    %2662 = vmatpush.bf16.msra.mxu0 %v1157
    %2663 = vmatpush.bf16.msra.mxu0 %v1153
    %2664 = vmatpush.bf16.msra.mxu0 %v1149
    %2665 = vmatpush.bf16.msra.mxu0 %v1145
    %2666 = vmatpush.bf16.msra.mxu0 %v1141
    %2667 = vmatpush.bf16.msra.mxu0 %v1137
    %2668 = vmatmul.bf16.gmra.mxu0 %v2356
    %v2669 = vpop.f32.mrf.mxu0
    %v2670 = vadd.f32 %v2657, %v2669
    %v2671 = vpop.f32.mrf.mxu0
    %2672 = vdwg.mxu0
    %v2673 = vmul.f32 %v2592, 0.5
    %v2674 = vmul.f32 %v2618, 0.5
    %v2675 = vmul.f32 %v2644, 0.5
    %v2676 = vtanh.pop %v2673
    %v2677 = vtanh.pop %v2674
    %v2678 = vtanh.pop %v2675
    %v2679 = vmul.f32 %v2676, 0.5
    %v2680 = vmul.f32 %v2677, 0.5
    %v2681 = vmul.f32 %v2678, 0.5
    %v2682 = vadd.f32 %v2679, 0.5
    %v2683 = vadd.f32 %v2680, 0.5
    %v2684 = vadd.f32 %v2681, 0.5
    %v2685 = vtanh.pop %v2670
    %v2686 = vmul.f32 %v2683, %v2355
    %v2687 = vmul.f32 %v2682, %v2685
    %v2688 = vadd.f32 %v2686, %v2687
    %v2689 = vtanh.pop %v2688
    %v2690 = vmul.f32 %v2684, %v2689
    %v2691 = vsel %vm2565, %v2690, %v2354
    %v2692 = vsel %vm2565, %v2688, %v2355
    %v2693 = vpack.c.bf16 %v2691, %v2691
    %v2694 = vpack.c.bf16 %v2480, %v2480
    %2695 = vmatpush.bf16.msra.mxu0 %v1584
    %2696 = vmatpush.bf16.msra.mxu0 %v1580
    %2697 = vmatpush.bf16.msra.mxu0 %v1576
    %2698 = vmatpush.bf16.msra.mxu0 %v1572
    %2699 = vmatpush.bf16.msra.mxu0 %v1568
    %2700 = vmatpush.bf16.msra.mxu0 %v1564
    %2701 = vmatpush.bf16.msra.mxu0 %v1560
    %2702 = vmatpush.bf16.msra.mxu0 %v1556
    %2703 = vmatmul.bf16.gmra.mxu0 %v2693
    %v2704 = vpop.f32.mrf.mxu0
    %v2705 = vadd.f32 %v1356, %v2704
    %v2706 = vpop.f32.mrf.mxu0
    %2707 = vdwg.mxu0
    %2708 = vmatpush.bf16.msra.mxu0 %v1616
    %2709 = vmatpush.bf16.msra.mxu0 %v1612
    %2710 = vmatpush.bf16.msra.mxu0 %v1608
    %2711 = vmatpush.bf16.msra.mxu0 %v1604
    %2712 = vmatpush.bf16.msra.mxu0 %v1600
    %2713 = vmatpush.bf16.msra.mxu0 %v1596
    %2714 = vmatpush.bf16.msra.mxu0 %v1592
    %2715 = vmatpush.bf16.msra.mxu0 %v1588
    %2716 = vmatmul.bf16.gmra.mxu0 %v2694
    %v2717 = vpop.f32.mrf.mxu0
    %v2718 = vadd.f32 %v2705, %v2717
    %v2719 = vpop.f32.mrf.mxu0
    %2720 = vdwg.mxu0
    %2721 = vmatpush.bf16.msra.mxu0 %v1585
    %2722 = vmatpush.bf16.msra.mxu0 %v1581
    %2723 = vmatpush.bf16.msra.mxu0 %v1577
    %2724 = vmatpush.bf16.msra.mxu0 %v1573
    %2725 = vmatpush.bf16.msra.mxu0 %v1569
    %2726 = vmatpush.bf16.msra.mxu0 %v1565
    %2727 = vmatpush.bf16.msra.mxu0 %v1561
    %2728 = vmatpush.bf16.msra.mxu0 %v1557
    %2729 = vmatmul.bf16.gmra.mxu0 %v2693
    %v2730 = vpop.f32.mrf.mxu0
    %v2731 = vadd.f32 %v1357, %v2730
    %v2732 = vpop.f32.mrf.mxu0
    %2733 = vdwg.mxu0
    %2734 = vmatpush.bf16.msra.mxu0 %v1617
    %2735 = vmatpush.bf16.msra.mxu0 %v1613
    %2736 = vmatpush.bf16.msra.mxu0 %v1609
    %2737 = vmatpush.bf16.msra.mxu0 %v1605
    %2738 = vmatpush.bf16.msra.mxu0 %v1601
    %2739 = vmatpush.bf16.msra.mxu0 %v1597
    %2740 = vmatpush.bf16.msra.mxu0 %v1593
    %2741 = vmatpush.bf16.msra.mxu0 %v1589
    %2742 = vmatmul.bf16.gmra.mxu0 %v2694
    %v2743 = vpop.f32.mrf.mxu0
    %v2744 = vadd.f32 %v2731, %v2743
    %v2745 = vpop.f32.mrf.mxu0
    %2746 = vdwg.mxu0
    %2747 = vmatpush.bf16.msra.mxu0 %v1586
    %2748 = vmatpush.bf16.msra.mxu0 %v1582
    %2749 = vmatpush.bf16.msra.mxu0 %v1578
    %2750 = vmatpush.bf16.msra.mxu0 %v1574
    %2751 = vmatpush.bf16.msra.mxu0 %v1570
    %2752 = vmatpush.bf16.msra.mxu0 %v1566
    %2753 = vmatpush.bf16.msra.mxu0 %v1562
    %2754 = vmatpush.bf16.msra.mxu0 %v1558
    %2755 = vmatmul.bf16.gmra.mxu0 %v2693
    %v2756 = vpop.f32.mrf.mxu0
    %v2757 = vadd.f32 %v1358, %v2756
    %v2758 = vpop.f32.mrf.mxu0
    %2759 = vdwg.mxu0
    %2760 = vmatpush.bf16.msra.mxu0 %v1618
    %2761 = vmatpush.bf16.msra.mxu0 %v1614
    %2762 = vmatpush.bf16.msra.mxu0 %v1610
    %2763 = vmatpush.bf16.msra.mxu0 %v1606
    %2764 = vmatpush.bf16.msra.mxu0 %v1602
    %2765 = vmatpush.bf16.msra.mxu0 %v1598
    %2766 = vmatpush.bf16.msra.mxu0 %v1594
    %2767 = vmatpush.bf16.msra.mxu0 %v1590
    %2768 = vmatmul.bf16.gmra.mxu0 %v2694
    %v2769 = vpop.f32.mrf.mxu0
    %v2770 = vadd.f32 %v2757, %v2769
    %v2771 = vpop.f32.mrf.mxu0
    %2772 = vdwg.mxu0
    %2773 = vmatpush.bf16.msra.mxu0 %v1587
    %2774 = vmatpush.bf16.msra.mxu0 %v1583
    %2775 = vmatpush.bf16.msra.mxu0 %v1579
    %2776 = vmatpush.bf16.msra.mxu0 %v1575
    %2777 = vmatpush.bf16.msra.mxu0 %v1571
    %2778 = vmatpush.bf16.msra.mxu0 %v1567
    %2779 = vmatpush.bf16.msra.mxu0 %v1563
    %2780 = vmatpush.bf16.msra.mxu0 %v1559
    %2781 = vmatmul.bf16.gmra.mxu0 %v2693
    %v2782 = vpop.f32.mrf.mxu0
    %v2783 = vadd.f32 %v1359, %v2782
    %v2784 = vpop.f32.mrf.mxu0
    %2785 = vdwg.mxu0
    %2786 = vmatpush.bf16.msra.mxu0 %v1619
    %2787 = vmatpush.bf16.msra.mxu0 %v1615
    %2788 = vmatpush.bf16.msra.mxu0 %v1611
    %2789 = vmatpush.bf16.msra.mxu0 %v1607
    %2790 = vmatpush.bf16.msra.mxu0 %v1603
    %2791 = vmatpush.bf16.msra.mxu0 %v1599
    %2792 = vmatpush.bf16.msra.mxu0 %v1595
    %2793 = vmatpush.bf16.msra.mxu0 %v1591
    %2794 = vmatmul.bf16.gmra.mxu0 %v2694
    %v2795 = vpop.f32.mrf.mxu0
    %v2796 = vadd.f32 %v2783, %v2795
    %v2797 = vpop.f32.mrf.mxu0
    %2798 = vdwg.mxu0
    %v2799 = vmul.f32 %v2718, 0.5
    %v2800 = vmul.f32 %v2744, 0.5
    %v2801 = vmul.f32 %v2770, 0.5
    %v2802 = vtanh.pop %v2799
    %v2803 = vtanh.pop %v2800
    %v2804 = vtanh.pop %v2801
    %v2805 = vmul.f32 %v2802, 0.5
    %v2806 = vmul.f32 %v2803, 0.5
    %v2807 = vmul.f32 %v2804, 0.5
    %v2808 = vadd.f32 %v2805, 0.5
    %v2809 = vadd.f32 %v2806, 0.5
    %v2810 = vadd.f32 %v2807, 0.5
    %v2811 = vtanh.pop %v2796
    %v2812 = vmul.f32 %v2809, %v2481
    %v2813 = vmul.f32 %v2808, %v2811
    %v2814 = vadd.f32 %v2812, %v2813
    %v2815 = vtanh.pop %v2814
    %v2816 = vmul.f32 %v2810, %v2815
    %v2817 = vsel %vm2565, %v2816, %v2480
    %v2818 = vsel %vm2565, %v2814, %v2481
    %vm2819 = vcmp.gt.s32.totalorder %v108, 4
    %v2820 = vld [vmem:[#allocation2 + $0x80] sm:$0xff]
    %v2821 = vld [vmem:[#allocation2 + $0x88] sm:$0xff]
    %v2822 = vld [vmem:[#allocation2 + $0x90] sm:$0xff]
    %v2823 = vld [vmem:[#allocation2 + $0x98] sm:$0xff]
    %2824 = vmatpush.bf16.msra.mxu0 %v782
    %2825 = vmatpush.bf16.msra.mxu0 %v778
    %2826 = vmatpush.bf16.msra.mxu0 %v774
    %2827 = vmatpush.bf16.msra.mxu0 %v770
    %2828 = vmatpush.bf16.msra.mxu0 %v766
    %2829 = vmatpush.bf16.msra.mxu0 %v762
    %2830 = vmatpush.bf16.msra.mxu0 %v758
    %2831 = vmatpush.bf16.msra.mxu0 %v754
    %2832 = vmatmul.bf16.gmra.mxu0 %v2568
    %v2833 = vpop.f32.mrf.mxu0
    %v2834 = vadd.f32 0.0, %v2833
    %v2835 = vpop.f32.mrf.mxu0
    %2836 = vdwg.mxu0
    %2837 = vmatpush.bf16.msra.mxu0 %v783
    %2838 = vmatpush.bf16.msra.mxu0 %v779
    %2839 = vmatpush.bf16.msra.mxu0 %v775
    %2840 = vmatpush.bf16.msra.mxu0 %v771
    %2841 = vmatpush.bf16.msra.mxu0 %v767
    %2842 = vmatpush.bf16.msra.mxu0 %v763
    %2843 = vmatpush.bf16.msra.mxu0 %v759
    %2844 = vmatpush.bf16.msra.mxu0 %v755
    %2845 = vmatmul.bf16.gmra.mxu0 %v2568
    %v2846 = vpop.f32.mrf.mxu0
    %v2847 = vadd.f32 0.0, %v2846
    %v2848 = vpop.f32.mrf.mxu0
    %2849 = vdwg.mxu0
    %2850 = vmatpush.bf16.msra.mxu0 %v784
    %2851 = vmatpush.bf16.msra.mxu0 %v780
    %2852 = vmatpush.bf16.msra.mxu0 %v776
    %2853 = vmatpush.bf16.msra.mxu0 %v772
    %2854 = vmatpush.bf16.msra.mxu0 %v768
    %2855 = vmatpush.bf16.msra.mxu0 %v764
    %2856 = vmatpush.bf16.msra.mxu0 %v760
    %2857 = vmatpush.bf16.msra.mxu0 %v756
    %2858 = vmatmul.bf16.gmra.mxu0 %v2568
    %v2859 = vpop.f32.mrf.mxu0
    %v2860 = vadd.f32 0.0, %v2859
    %v2861 = vpop.f32.mrf.mxu0
    %2862 = vdwg.mxu0
    %2863 = vmatpush.bf16.msra.mxu0 %v785
    %2864 = vmatpush.bf16.msra.mxu0 %v781
    %2865 = vmatpush.bf16.msra.mxu0 %v777
    %2866 = vmatpush.bf16.msra.mxu0 %v773
    %2867 = vmatpush.bf16.msra.mxu0 %v769
    %2868 = vmatpush.bf16.msra.mxu0 %v765
    %2869 = vmatpush.bf16.msra.mxu0 %v761
    %2870 = vmatpush.bf16.msra.mxu0 %v757
    %2871 = vmatmul.bf16.gmra.mxu0 %v2568
    %v2872 = vpop.f32.mrf.mxu0
    %v2873 = vadd.f32 0.0, %v2872
    %v2874 = vpop.f32.mrf.mxu0
    %2875 = vdwg.mxu0
    %v2876 = vadd.f32 %v2820, %v2834
    %v2877 = vadd.f32 %v2821, %v2847
    %v2878 = vadd.f32 %v2822, %v2860
    %v2879 = vadd.f32 %v2823, %v2873
    %v2880 = vmul.f32 %v2876, 0.5
    %v2881 = vmul.f32 %v2877, 0.5
    %v2882 = vmul.f32 %v2878, 0.5
    %v2883 = vtanh.pop %v2880
    %v2884 = vtanh.pop %v2881
    %v2885 = vtanh.pop %v2882
    %v2886 = vmul.f32 %v2883, 0.5
    %v2887 = vmul.f32 %v2884, 0.5
    %v2888 = vmul.f32 %v2885, 0.5
    %v2889 = vadd.f32 %v2886, 0.5
    %v2890 = vadd.f32 %v2887, 0.5
    %v2891 = vadd.f32 %v2888, 0.5
    %v2892 = vtanh.pop %v2879
    %v2893 = vmul.f32 %v2890, %v2567
    %v2894 = vmul.f32 %v2889, %v2892
    %v2895 = vadd.f32 %v2893, %v2894
    %v2896 = vtanh.pop %v2895
    %v2897 = vmul.f32 %v2891, %v2896
    %v2898 = vsel %vm2819, 1, 0
    %2899 = vset.pattern.permute.xlu0 0
    %2900 = vperm.xlu0 %2899, %v2898
    %v2901 = vpop.permute.xlu0 %2900
    %vm2902 = vcmp.eq.s32.totalorder %v2901, 1
    %v2903 = vsel %vm2902, %v2897, %v2566
    %v2904 = vsel %vm2902, %v2895, %v2567
    %v2905 = vpack.c.bf16 %v2903, %v2903
    %2906 = vmatpush.bf16.msra.mxu0 %v1130
    %2907 = vmatpush.bf16.msra.mxu0 %v1126
    %2908 = vmatpush.bf16.msra.mxu0 %v1122
    %2909 = vmatpush.bf16.msra.mxu0 %v1118
    %2910 = vmatpush.bf16.msra.mxu0 %v1114
    %2911 = vmatpush.bf16.msra.mxu0 %v1110
    %2912 = vmatpush.bf16.msra.mxu0 %v1106
    %2913 = vmatpush.bf16.msra.mxu0 %v1102
    %2914 = vmatmul.bf16.gmra.mxu0 %v2905
    %v2915 = vpop.f32.mrf.mxu0
    %v2916 = vadd.f32 %v902, %v2915
    %v2917 = vpop.f32.mrf.mxu0
    %2918 = vdwg.mxu0
    %2919 = vmatpush.bf16.msra.mxu0 %v1162
    %2920 = vmatpush.bf16.msra.mxu0 %v1158
    %2921 = vmatpush.bf16.msra.mxu0 %v1154
    %2922 = vmatpush.bf16.msra.mxu0 %v1150
    %2923 = vmatpush.bf16.msra.mxu0 %v1146
    %2924 = vmatpush.bf16.msra.mxu0 %v1142
    %2925 = vmatpush.bf16.msra.mxu0 %v1138
    %2926 = vmatpush.bf16.msra.mxu0 %v1134
    %2927 = vmatmul.bf16.gmra.mxu0 %v2693
    %v2928 = vpop.f32.mrf.mxu0
    %v2929 = vadd.f32 %v2916, %v2928
    %v2930 = vpop.f32.mrf.mxu0
    %2931 = vdwg.mxu0
    %2932 = vmatpush.bf16.msra.mxu0 %v1131
    %2933 = vmatpush.bf16.msra.mxu0 %v1127
    %2934 = vmatpush.bf16.msra.mxu0 %v1123
    %2935 = vmatpush.bf16.msra.mxu0 %v1119
    %2936 = vmatpush.bf16.msra.mxu0 %v1115
    %2937 = vmatpush.bf16.msra.mxu0 %v1111
    %2938 = vmatpush.bf16.msra.mxu0 %v1107
    %2939 = vmatpush.bf16.msra.mxu0 %v1103
    %2940 = vmatmul.bf16.gmra.mxu0 %v2905
    %v2941 = vpop.f32.mrf.mxu0
    %v2942 = vadd.f32 %v903, %v2941
    %v2943 = vpop.f32.mrf.mxu0
    %2944 = vdwg.mxu0
    %2945 = vmatpush.bf16.msra.mxu0 %v1163
    %2946 = vmatpush.bf16.msra.mxu0 %v1159
    %2947 = vmatpush.bf16.msra.mxu0 %v1155
    %2948 = vmatpush.bf16.msra.mxu0 %v1151
    %2949 = vmatpush.bf16.msra.mxu0 %v1147
    %2950 = vmatpush.bf16.msra.mxu0 %v1143
    %2951 = vmatpush.bf16.msra.mxu0 %v1139
    %2952 = vmatpush.bf16.msra.mxu0 %v1135
    %2953 = vmatmul.bf16.gmra.mxu0 %v2693
    %v2954 = vpop.f32.mrf.mxu0
    %v2955 = vadd.f32 %v2942, %v2954
    %v2956 = vpop.f32.mrf.mxu0
    %2957 = vdwg.mxu0
    %2958 = vmatpush.bf16.msra.mxu0 %v1132
    %2959 = vmatpush.bf16.msra.mxu0 %v1128
    %2960 = vmatpush.bf16.msra.mxu0 %v1124
    %2961 = vmatpush.bf16.msra.mxu0 %v1120
    %2962 = vmatpush.bf16.msra.mxu0 %v1116
    %2963 = vmatpush.bf16.msra.mxu0 %v1112
    %2964 = vmatpush.bf16.msra.mxu0 %v1108
    %2965 = vmatpush.bf16.msra.mxu0 %v1104
    %2966 = vmatmul.bf16.gmra.mxu0 %v2905
    %v2967 = vpop.f32.mrf.mxu0
    %v2968 = vadd.f32 %v904, %v2967
    %v2969 = vpop.f32.mrf.mxu0
    %2970 = vdwg.mxu0
    %2971 = vmatpush.bf16.msra.mxu0 %v1164
    %2972 = vmatpush.bf16.msra.mxu0 %v1160
    %2973 = vmatpush.bf16.msra.mxu0 %v1156
    %2974 = vmatpush.bf16.msra.mxu0 %v1152
    %2975 = vmatpush.bf16.msra.mxu0 %v1148
    %2976 = vmatpush.bf16.msra.mxu0 %v1144
    %2977 = vmatpush.bf16.msra.mxu0 %v1140
    %2978 = vmatpush.bf16.msra.mxu0 %v1136
    %2979 = vmatmul.bf16.gmra.mxu0 %v2693
    %v2980 = vpop.f32.mrf.mxu0
    %v2981 = vadd.f32 %v2968, %v2980
    %v2982 = vpop.f32.mrf.mxu0
    %2983 = vdwg.mxu0
    %2984 = vmatpush.bf16.msra.mxu0 %v1133
    %2985 = vmatpush.bf16.msra.mxu0 %v1129
    %2986 = vmatpush.bf16.msra.mxu0 %v1125
    %2987 = vmatpush.bf16.msra.mxu0 %v1121
    %2988 = vmatpush.bf16.msra.mxu0 %v1117
    %2989 = vmatpush.bf16.msra.mxu0 %v1113
    %2990 = vmatpush.bf16.msra.mxu0 %v1109
    %2991 = vmatpush.bf16.msra.mxu0 %v1105
    %2992 = vmatmul.bf16.gmra.mxu0 %v2905
    %v2993 = vpop.f32.mrf.mxu0
    %v2994 = vadd.f32 %v905, %v2993
    %v2995 = vpop.f32.mrf.mxu0
    %2996 = vdwg.mxu0
    %2997 = vmatpush.bf16.msra.mxu0 %v1165
    %2998 = vmatpush.bf16.msra.mxu0 %v1161
    %2999 = vmatpush.bf16.msra.mxu0 %v1157
    %3000 = vmatpush.bf16.msra.mxu0 %v1153
    %3001 = vmatpush.bf16.msra.mxu0 %v1149
    %3002 = vmatpush.bf16.msra.mxu0 %v1145
    %3003 = vmatpush.bf16.msra.mxu0 %v1141
    %3004 = vmatpush.bf16.msra.mxu0 %v1137
    %3005 = vmatmul.bf16.gmra.mxu0 %v2693
    %v3006 = vpop.f32.mrf.mxu0
    %v3007 = vadd.f32 %v2994, %v3006
    %v3008 = vpop.f32.mrf.mxu0
    %3009 = vdwg.mxu0
    %v3010 = vmul.f32 %v2929, 0.5
    %v3011 = vmul.f32 %v2955, 0.5
    %v3012 = vmul.f32 %v2981, 0.5
    %v3013 = vtanh.pop %v3010
    %v3014 = vtanh.pop %v3011
    %v3015 = vtanh.pop %v3012
    %v3016 = vmul.f32 %v3013, 0.5
    %v3017 = vmul.f32 %v3014, 0.5
    %v3018 = vmul.f32 %v3015, 0.5
    %v3019 = vadd.f32 %v3016, 0.5
    %v3020 = vadd.f32 %v3017, 0.5
    %v3021 = vadd.f32 %v3018, 0.5
    %v3022 = vtanh.pop %v3007
    %v3023 = vmul.f32 %v3020, %v2692
    %v3024 = vmul.f32 %v3019, %v3022
    %v3025 = vadd.f32 %v3023, %v3024
    %v3026 = vtanh.pop %v3025
    %v3027 = vmul.f32 %v3021, %v3026
    %v3028 = vsel %vm2902, %v3027, %v2691
    %v3029 = vsel %vm2902, %v3025, %v2692
    %v3030 = vpack.c.bf16 %v3028, %v3028
    %v3031 = vpack.c.bf16 %v2817, %v2817
    %3032 = vmatpush.bf16.msra.mxu0 %v1584
    %3033 = vmatpush.bf16.msra.mxu0 %v1580
    %3034 = vmatpush.bf16.msra.mxu0 %v1576
    %3035 = vmatpush.bf16.msra.mxu0 %v1572
    %3036 = vmatpush.bf16.msra.mxu0 %v1568
    %3037 = vmatpush.bf16.msra.mxu0 %v1564
    %3038 = vmatpush.bf16.msra.mxu0 %v1560
    %3039 = vmatpush.bf16.msra.mxu0 %v1556
    %3040 = vmatmul.bf16.gmra.mxu0 %v3030
    %v3041 = vpop.f32.mrf.mxu0
    %v3042 = vadd.f32 %v1356, %v3041
    %v3043 = vpop.f32.mrf.mxu0
    %3044 = vdwg.mxu0
    %3045 = vmatpush.bf16.msra.mxu0 %v1616
    %3046 = vmatpush.bf16.msra.mxu0 %v1612
    %3047 = vmatpush.bf16.msra.mxu0 %v1608
    %3048 = vmatpush.bf16.msra.mxu0 %v1604
    %3049 = vmatpush.bf16.msra.mxu0 %v1600
    %3050 = vmatpush.bf16.msra.mxu0 %v1596
    %3051 = vmatpush.bf16.msra.mxu0 %v1592
    %3052 = vmatpush.bf16.msra.mxu0 %v1588
    %3053 = vmatmul.bf16.gmra.mxu0 %v3031
    %v3054 = vpop.f32.mrf.mxu0
    %v3055 = vadd.f32 %v3042, %v3054
    %v3056 = vpop.f32.mrf.mxu0
    %3057 = vdwg.mxu0
    %3058 = vmatpush.bf16.msra.mxu0 %v1585
    %3059 = vmatpush.bf16.msra.mxu0 %v1581
    %3060 = vmatpush.bf16.msra.mxu0 %v1577
    %3061 = vmatpush.bf16.msra.mxu0 %v1573
    %3062 = vmatpush.bf16.msra.mxu0 %v1569
    %3063 = vmatpush.bf16.msra.mxu0 %v1565
    %3064 = vmatpush.bf16.msra.mxu0 %v1561
    %3065 = vmatpush.bf16.msra.mxu0 %v1557
    %3066 = vmatmul.bf16.gmra.mxu0 %v3030
    %v3067 = vpop.f32.mrf.mxu0
    %v3068 = vadd.f32 %v1357, %v3067
    %v3069 = vpop.f32.mrf.mxu0
    %3070 = vdwg.mxu0
    %3071 = vmatpush.bf16.msra.mxu0 %v1617
    %3072 = vmatpush.bf16.msra.mxu0 %v1613
    %3073 = vmatpush.bf16.msra.mxu0 %v1609
    %3074 = vmatpush.bf16.msra.mxu0 %v1605
    %3075 = vmatpush.bf16.msra.mxu0 %v1601
    %3076 = vmatpush.bf16.msra.mxu0 %v1597
    %3077 = vmatpush.bf16.msra.mxu0 %v1593
    %3078 = vmatpush.bf16.msra.mxu0 %v1589
    %3079 = vmatmul.bf16.gmra.mxu0 %v3031
    %v3080 = vpop.f32.mrf.mxu0
    %v3081 = vadd.f32 %v3068, %v3080
    %v3082 = vpop.f32.mrf.mxu0
    %3083 = vdwg.mxu0
    %3084 = vmatpush.bf16.msra.mxu0 %v1586
    %3085 = vmatpush.bf16.msra.mxu0 %v1582
    %3086 = vmatpush.bf16.msra.mxu0 %v1578
    %3087 = vmatpush.bf16.msra.mxu0 %v1574
    %3088 = vmatpush.bf16.msra.mxu0 %v1570
    %3089 = vmatpush.bf16.msra.mxu0 %v1566
    %3090 = vmatpush.bf16.msra.mxu0 %v1562
    %3091 = vmatpush.bf16.msra.mxu0 %v1558
    %3092 = vmatmul.bf16.gmra.mxu0 %v3030
    %v3093 = vpop.f32.mrf.mxu0
    %v3094 = vadd.f32 %v1358, %v3093
    %v3095 = vpop.f32.mrf.mxu0
    %3096 = vdwg.mxu0
    %3097 = vmatpush.bf16.msra.mxu0 %v1618
    %3098 = vmatpush.bf16.msra.mxu0 %v1614
    %3099 = vmatpush.bf16.msra.mxu0 %v1610
    %3100 = vmatpush.bf16.msra.mxu0 %v1606
    %3101 = vmatpush.bf16.msra.mxu0 %v1602
    %3102 = vmatpush.bf16.msra.mxu0 %v1598
    %3103 = vmatpush.bf16.msra.mxu0 %v1594
    %3104 = vmatpush.bf16.msra.mxu0 %v1590
    %3105 = vmatmul.bf16.gmra.mxu0 %v3031
    %v3106 = vpop.f32.mrf.mxu0
    %v3107 = vadd.f32 %v3094, %v3106
    %v3108 = vpop.f32.mrf.mxu0
    %3109 = vdwg.mxu0
    %3110 = vmatpush.bf16.msra.mxu0 %v1587
    %3111 = vmatpush.bf16.msra.mxu0 %v1583
    %3112 = vmatpush.bf16.msra.mxu0 %v1579
    %3113 = vmatpush.bf16.msra.mxu0 %v1575
    %3114 = vmatpush.bf16.msra.mxu0 %v1571
    %3115 = vmatpush.bf16.msra.mxu0 %v1567
    %3116 = vmatpush.bf16.msra.mxu0 %v1563
    %3117 = vmatpush.bf16.msra.mxu0 %v1559
    %3118 = vmatmul.bf16.gmra.mxu0 %v3030
    %v3119 = vpop.f32.mrf.mxu0
    %v3120 = vadd.f32 %v1359, %v3119
    %v3121 = vpop.f32.mrf.mxu0
    %3122 = vdwg.mxu0
    %3123 = vmatpush.bf16.msra.mxu0 %v1619
    %3124 = vmatpush.bf16.msra.mxu0 %v1615
    %3125 = vmatpush.bf16.msra.mxu0 %v1611
    %3126 = vmatpush.bf16.msra.mxu0 %v1607
    %3127 = vmatpush.bf16.msra.mxu0 %v1603
    %3128 = vmatpush.bf16.msra.mxu0 %v1599
    %3129 = vmatpush.bf16.msra.mxu0 %v1595
    %3130 = vmatpush.bf16.msra.mxu0 %v1591
    %3131 = vmatmul.bf16.gmra.mxu0 %v3031
    %v3132 = vpop.f32.mrf.mxu0
    %v3133 = vadd.f32 %v3120, %v3132
    %v3134 = vpop.f32.mrf.mxu0
    %3135 = vdwg.mxu0
    %v3136 = vmul.f32 %v3055, 0.5
    %v3137 = vmul.f32 %v3081, 0.5
    %v3138 = vmul.f32 %v3107, 0.5
    %v3139 = vtanh.pop %v3136
    %v3140 = vtanh.pop %v3137
    %v3141 = vtanh.pop %v3138
    %v3142 = vmul.f32 %v3139, 0.5
    %v3143 = vmul.f32 %v3140, 0.5
    %v3144 = vmul.f32 %v3141, 0.5
    %v3145 = vadd.f32 %v3142, 0.5
    %v3146 = vadd.f32 %v3143, 0.5
    %v3147 = vadd.f32 %v3144, 0.5
    %v3148 = vtanh.pop %v3133
    %v3149 = vmul.f32 %v3146, %v2818
    %v3150 = vmul.f32 %v3145, %v3148
    %v3151 = vadd.f32 %v3149, %v3150
    %v3152 = vtanh.pop %v3151
    %v3153 = vmul.f32 %v3147, %v3152
    %v3154 = vsel %vm2902, %v3153, %v2817
    %v3155 = vsel %vm2902, %v3151, %v2818
    %vm3156 = vcmp.gt.s32.totalorder %v108, 5
    %v3157 = vld [vmem:[#allocation2 + $0xa0] sm:$0xff]
    %v3158 = vld [vmem:[#allocation2 + $0xa8] sm:$0xff]
    %v3159 = vld [vmem:[#allocation2 + $0xb0] sm:$0xff]
    %v3160 = vld [vmem:[#allocation2 + $0xb8] sm:$0xff]
    %3161 = vmatpush.bf16.msra.mxu0 %v782
    %3162 = vmatpush.bf16.msra.mxu0 %v778
    %3163 = vmatpush.bf16.msra.mxu0 %v774
    %3164 = vmatpush.bf16.msra.mxu0 %v770
    %3165 = vmatpush.bf16.msra.mxu0 %v766
    %3166 = vmatpush.bf16.msra.mxu0 %v762
    %3167 = vmatpush.bf16.msra.mxu0 %v758
    %3168 = vmatpush.bf16.msra.mxu0 %v754
    %3169 = vmatmul.bf16.gmra.mxu0 %v2905
    %v3170 = vpop.f32.mrf.mxu0
    %v3171 = vadd.f32 0.0, %v3170
    %v3172 = vpop.f32.mrf.mxu0
    %3173 = vdwg.mxu0
    %3174 = vmatpush.bf16.msra.mxu0 %v783
    %3175 = vmatpush.bf16.msra.mxu0 %v779
    %3176 = vmatpush.bf16.msra.mxu0 %v775
    %3177 = vmatpush.bf16.msra.mxu0 %v771
    %3178 = vmatpush.bf16.msra.mxu0 %v767
    %3179 = vmatpush.bf16.msra.mxu0 %v763
    %3180 = vmatpush.bf16.msra.mxu0 %v759
    %3181 = vmatpush.bf16.msra.mxu0 %v755
    %3182 = vmatmul.bf16.gmra.mxu0 %v2905
    %v3183 = vpop.f32.mrf.mxu0
    %v3184 = vadd.f32 0.0, %v3183
    %v3185 = vpop.f32.mrf.mxu0
    %3186 = vdwg.mxu0
    %3187 = vmatpush.bf16.msra.mxu0 %v784
    %3188 = vmatpush.bf16.msra.mxu0 %v780
    %3189 = vmatpush.bf16.msra.mxu0 %v776
    %3190 = vmatpush.bf16.msra.mxu0 %v772
    %3191 = vmatpush.bf16.msra.mxu0 %v768
    %3192 = vmatpush.bf16.msra.mxu0 %v764
    %3193 = vmatpush.bf16.msra.mxu0 %v760
    %3194 = vmatpush.bf16.msra.mxu0 %v756
    %3195 = vmatmul.bf16.gmra.mxu0 %v2905
    %v3196 = vpop.f32.mrf.mxu0
    %v3197 = vadd.f32 0.0, %v3196
    %v3198 = vpop.f32.mrf.mxu0
    %3199 = vdwg.mxu0
    %3200 = vmatpush.bf16.msra.mxu0 %v785
    %3201 = vmatpush.bf16.msra.mxu0 %v781
    %3202 = vmatpush.bf16.msra.mxu0 %v777
    %3203 = vmatpush.bf16.msra.mxu0 %v773
    %3204 = vmatpush.bf16.msra.mxu0 %v769
    %3205 = vmatpush.bf16.msra.mxu0 %v765
    %3206 = vmatpush.bf16.msra.mxu0 %v761
    %3207 = vmatpush.bf16.msra.mxu0 %v757
    %3208 = vmatmul.bf16.gmra.mxu0 %v2905
    %v3209 = vpop.f32.mrf.mxu0
    %v3210 = vadd.f32 0.0, %v3209
    %v3211 = vpop.f32.mrf.mxu0
    %3212 = vdwg.mxu0
    %v3213 = vadd.f32 %v3157, %v3171
    %v3214 = vadd.f32 %v3158, %v3184
    %v3215 = vadd.f32 %v3159, %v3197
    %v3216 = vadd.f32 %v3160, %v3210
    %v3217 = vmul.f32 %v3213, 0.5
    %v3218 = vmul.f32 %v3214, 0.5
    %v3219 = vmul.f32 %v3215, 0.5
    %v3220 = vtanh.pop %v3217
    %v3221 = vtanh.pop %v3218
    %v3222 = vtanh.pop %v3219
    %v3223 = vmul.f32 %v3220, 0.5
    %v3224 = vmul.f32 %v3221, 0.5
    %v3225 = vmul.f32 %v3222, 0.5
    %v3226 = vadd.f32 %v3223, 0.5
    %v3227 = vadd.f32 %v3224, 0.5
    %v3228 = vadd.f32 %v3225, 0.5
    %v3229 = vtanh.pop %v3216
    %v3230 = vmul.f32 %v3227, %v2904
    %v3231 = vmul.f32 %v3226, %v3229
    %v3232 = vadd.f32 %v3230, %v3231
    %v3233 = vtanh.pop %v3232
    %v3234 = vmul.f32 %v3228, %v3233
    %v3235 = vsel %vm3156, 1, 0
    %3236 = vset.pattern.permute.xlu0 0
    %3237 = vperm.xlu0 %3236, %v3235
    %v3238 = vpop.permute.xlu0 %3237
    %vm3239 = vcmp.eq.s32.totalorder %v3238, 1
    %v3240 = vsel %vm3239, %v3234, %v2903
    %v3241 = vsel %vm3239, %v3232, %v2904
    %v3242 = vpack.c.bf16 %v3240, %v3240
    %3243 = vmatpush.bf16.msra.mxu0 %v1130
    %3244 = vmatpush.bf16.msra.mxu0 %v1126
    %3245 = vmatpush.bf16.msra.mxu0 %v1122
    %3246 = vmatpush.bf16.msra.mxu0 %v1118
    %3247 = vmatpush.bf16.msra.mxu0 %v1114
    %3248 = vmatpush.bf16.msra.mxu0 %v1110
    %3249 = vmatpush.bf16.msra.mxu0 %v1106
    %3250 = vmatpush.bf16.msra.mxu0 %v1102
    %3251 = vmatmul.bf16.gmra.mxu0 %v3242
    %v3252 = vpop.f32.mrf.mxu0
    %v3253 = vadd.f32 %v902, %v3252
    %v3254 = vpop.f32.mrf.mxu0
    %3255 = vdwg.mxu0
    %3256 = vmatpush.bf16.msra.mxu0 %v1162
    %3257 = vmatpush.bf16.msra.mxu0 %v1158
    %3258 = vmatpush.bf16.msra.mxu0 %v1154
    %3259 = vmatpush.bf16.msra.mxu0 %v1150
    %3260 = vmatpush.bf16.msra.mxu0 %v1146
    %3261 = vmatpush.bf16.msra.mxu0 %v1142
    %3262 = vmatpush.bf16.msra.mxu0 %v1138
    %3263 = vmatpush.bf16.msra.mxu0 %v1134
    %3264 = vmatmul.bf16.gmra.mxu0 %v3030
    %v3265 = vpop.f32.mrf.mxu0
    %v3266 = vadd.f32 %v3253, %v3265
    %v3267 = vpop.f32.mrf.mxu0
    %3268 = vdwg.mxu0
    %3269 = vmatpush.bf16.msra.mxu0 %v1131
    %3270 = vmatpush.bf16.msra.mxu0 %v1127
    %3271 = vmatpush.bf16.msra.mxu0 %v1123
    %3272 = vmatpush.bf16.msra.mxu0 %v1119
    %3273 = vmatpush.bf16.msra.mxu0 %v1115
    %3274 = vmatpush.bf16.msra.mxu0 %v1111
    %3275 = vmatpush.bf16.msra.mxu0 %v1107
    %3276 = vmatpush.bf16.msra.mxu0 %v1103
    %3277 = vmatmul.bf16.gmra.mxu0 %v3242
    %v3278 = vpop.f32.mrf.mxu0
    %v3279 = vadd.f32 %v903, %v3278
    %v3280 = vpop.f32.mrf.mxu0
    %3281 = vdwg.mxu0
    %3282 = vmatpush.bf16.msra.mxu0 %v1163
    %3283 = vmatpush.bf16.msra.mxu0 %v1159
    %3284 = vmatpush.bf16.msra.mxu0 %v1155
    %3285 = vmatpush.bf16.msra.mxu0 %v1151
    %3286 = vmatpush.bf16.msra.mxu0 %v1147
    %3287 = vmatpush.bf16.msra.mxu0 %v1143
    %3288 = vmatpush.bf16.msra.mxu0 %v1139
    %3289 = vmatpush.bf16.msra.mxu0 %v1135
    %3290 = vmatmul.bf16.gmra.mxu0 %v3030
    %v3291 = vpop.f32.mrf.mxu0
    %v3292 = vadd.f32 %v3279, %v3291
    %v3293 = vpop.f32.mrf.mxu0
    %3294 = vdwg.mxu0
    %3295 = vmatpush.bf16.msra.mxu0 %v1132
    %3296 = vmatpush.bf16.msra.mxu0 %v1128
    %3297 = vmatpush.bf16.msra.mxu0 %v1124
    %3298 = vmatpush.bf16.msra.mxu0 %v1120
    %3299 = vmatpush.bf16.msra.mxu0 %v1116
    %3300 = vmatpush.bf16.msra.mxu0 %v1112
    %3301 = vmatpush.bf16.msra.mxu0 %v1108
    %3302 = vmatpush.bf16.msra.mxu0 %v1104
    %3303 = vmatmul.bf16.gmra.mxu0 %v3242
    %v3304 = vpop.f32.mrf.mxu0
    %v3305 = vadd.f32 %v904, %v3304
    %v3306 = vpop.f32.mrf.mxu0
    %3307 = vdwg.mxu0
    %3308 = vmatpush.bf16.msra.mxu0 %v1164
    %3309 = vmatpush.bf16.msra.mxu0 %v1160
    %3310 = vmatpush.bf16.msra.mxu0 %v1156
    %3311 = vmatpush.bf16.msra.mxu0 %v1152
    %3312 = vmatpush.bf16.msra.mxu0 %v1148
    %3313 = vmatpush.bf16.msra.mxu0 %v1144
    %3314 = vmatpush.bf16.msra.mxu0 %v1140
    %3315 = vmatpush.bf16.msra.mxu0 %v1136
    %3316 = vmatmul.bf16.gmra.mxu0 %v3030
    %v3317 = vpop.f32.mrf.mxu0
    %v3318 = vadd.f32 %v3305, %v3317
    %v3319 = vpop.f32.mrf.mxu0
    %3320 = vdwg.mxu0
    %3321 = vmatpush.bf16.msra.mxu0 %v1133
    %3322 = vmatpush.bf16.msra.mxu0 %v1129
    %3323 = vmatpush.bf16.msra.mxu0 %v1125
    %3324 = vmatpush.bf16.msra.mxu0 %v1121
    %3325 = vmatpush.bf16.msra.mxu0 %v1117
    %3326 = vmatpush.bf16.msra.mxu0 %v1113
    %3327 = vmatpush.bf16.msra.mxu0 %v1109
    %3328 = vmatpush.bf16.msra.mxu0 %v1105
    %3329 = vmatmul.bf16.gmra.mxu0 %v3242
    %v3330 = vpop.f32.mrf.mxu0
    %v3331 = vadd.f32 %v905, %v3330
    %v3332 = vpop.f32.mrf.mxu0
    %3333 = vdwg.mxu0
    %3334 = vmatpush.bf16.msra.mxu0 %v1165
    %3335 = vmatpush.bf16.msra.mxu0 %v1161
    %3336 = vmatpush.bf16.msra.mxu0 %v1157
    %3337 = vmatpush.bf16.msra.mxu0 %v1153
    %3338 = vmatpush.bf16.msra.mxu0 %v1149
    %3339 = vmatpush.bf16.msra.mxu0 %v1145
    %3340 = vmatpush.bf16.msra.mxu0 %v1141
    %3341 = vmatpush.bf16.msra.mxu0 %v1137
    %3342 = vmatmul.bf16.gmra.mxu0 %v3030
    %v3343 = vpop.f32.mrf.mxu0
    %v3344 = vadd.f32 %v3331, %v3343
    %v3345 = vpop.f32.mrf.mxu0
    %3346 = vdwg.mxu0
    %v3347 = vmul.f32 %v3266, 0.5
    %v3348 = vmul.f32 %v3292, 0.5
    %v3349 = vmul.f32 %v3318, 0.5
    %v3350 = vtanh.pop %v3347
    %v3351 = vtanh.pop %v3348
    %v3352 = vtanh.pop %v3349
    %v3353 = vmul.f32 %v3350, 0.5
    %v3354 = vmul.f32 %v3351, 0.5
    %v3355 = vmul.f32 %v3352, 0.5
    %v3356 = vadd.f32 %v3353, 0.5
    %v3357 = vadd.f32 %v3354, 0.5
    %v3358 = vadd.f32 %v3355, 0.5
    %v3359 = vtanh.pop %v3344
    %v3360 = vmul.f32 %v3357, %v3029
    %v3361 = vmul.f32 %v3356, %v3359
    %v3362 = vadd.f32 %v3360, %v3361
    %v3363 = vtanh.pop %v3362
    %v3364 = vmul.f32 %v3358, %v3363
    %v3365 = vsel %vm3239, %v3364, %v3028
    %v3366 = vsel %vm3239, %v3362, %v3029
    %v3367 = vpack.c.bf16 %v3365, %v3365
    %v3368 = vpack.c.bf16 %v3154, %v3154
    %3369 = vmatpush.bf16.msra.mxu0 %v1584
    %3370 = vmatpush.bf16.msra.mxu0 %v1580
    %3371 = vmatpush.bf16.msra.mxu0 %v1576
    %3372 = vmatpush.bf16.msra.mxu0 %v1572
    %3373 = vmatpush.bf16.msra.mxu0 %v1568
    %3374 = vmatpush.bf16.msra.mxu0 %v1564
    %3375 = vmatpush.bf16.msra.mxu0 %v1560
    %3376 = vmatpush.bf16.msra.mxu0 %v1556
    %3377 = vmatmul.bf16.gmra.mxu0 %v3367
    %v3378 = vpop.f32.mrf.mxu0
    %v3379 = vadd.f32 %v1356, %v3378
    %v3380 = vpop.f32.mrf.mxu0
    %3381 = vdwg.mxu0
    %3382 = vmatpush.bf16.msra.mxu0 %v1616
    %3383 = vmatpush.bf16.msra.mxu0 %v1612
    %3384 = vmatpush.bf16.msra.mxu0 %v1608
    %3385 = vmatpush.bf16.msra.mxu0 %v1604
    %3386 = vmatpush.bf16.msra.mxu0 %v1600
    %3387 = vmatpush.bf16.msra.mxu0 %v1596
    %3388 = vmatpush.bf16.msra.mxu0 %v1592
    %3389 = vmatpush.bf16.msra.mxu0 %v1588
    %3390 = vmatmul.bf16.gmra.mxu0 %v3368
    %v3391 = vpop.f32.mrf.mxu0
    %v3392 = vadd.f32 %v3379, %v3391
    %v3393 = vpop.f32.mrf.mxu0
    %3394 = vdwg.mxu0
    %3395 = vmatpush.bf16.msra.mxu0 %v1585
    %3396 = vmatpush.bf16.msra.mxu0 %v1581
    %3397 = vmatpush.bf16.msra.mxu0 %v1577
    %3398 = vmatpush.bf16.msra.mxu0 %v1573
    %3399 = vmatpush.bf16.msra.mxu0 %v1569
    %3400 = vmatpush.bf16.msra.mxu0 %v1565
    %3401 = vmatpush.bf16.msra.mxu0 %v1561
    %3402 = vmatpush.bf16.msra.mxu0 %v1557
    %3403 = vmatmul.bf16.gmra.mxu0 %v3367
    %v3404 = vpop.f32.mrf.mxu0
    %v3405 = vadd.f32 %v1357, %v3404
    %v3406 = vpop.f32.mrf.mxu0
    %3407 = vdwg.mxu0
    %3408 = vmatpush.bf16.msra.mxu0 %v1617
    %3409 = vmatpush.bf16.msra.mxu0 %v1613
    %3410 = vmatpush.bf16.msra.mxu0 %v1609
    %3411 = vmatpush.bf16.msra.mxu0 %v1605
    %3412 = vmatpush.bf16.msra.mxu0 %v1601
    %3413 = vmatpush.bf16.msra.mxu0 %v1597
    %3414 = vmatpush.bf16.msra.mxu0 %v1593
    %3415 = vmatpush.bf16.msra.mxu0 %v1589
    %3416 = vmatmul.bf16.gmra.mxu0 %v3368
    %v3417 = vpop.f32.mrf.mxu0
    %v3418 = vadd.f32 %v3405, %v3417
    %v3419 = vpop.f32.mrf.mxu0
    %3420 = vdwg.mxu0
    %3421 = vmatpush.bf16.msra.mxu0 %v1586
    %3422 = vmatpush.bf16.msra.mxu0 %v1582
    %3423 = vmatpush.bf16.msra.mxu0 %v1578
    %3424 = vmatpush.bf16.msra.mxu0 %v1574
    %3425 = vmatpush.bf16.msra.mxu0 %v1570
    %3426 = vmatpush.bf16.msra.mxu0 %v1566
    %3427 = vmatpush.bf16.msra.mxu0 %v1562
    %3428 = vmatpush.bf16.msra.mxu0 %v1558
    %3429 = vmatmul.bf16.gmra.mxu0 %v3367
    %v3430 = vpop.f32.mrf.mxu0
    %v3431 = vadd.f32 %v1358, %v3430
    %v3432 = vpop.f32.mrf.mxu0
    %3433 = vdwg.mxu0
    %3434 = vmatpush.bf16.msra.mxu0 %v1618
    %3435 = vmatpush.bf16.msra.mxu0 %v1614
    %3436 = vmatpush.bf16.msra.mxu0 %v1610
    %3437 = vmatpush.bf16.msra.mxu0 %v1606
    %3438 = vmatpush.bf16.msra.mxu0 %v1602
    %3439 = vmatpush.bf16.msra.mxu0 %v1598
    %3440 = vmatpush.bf16.msra.mxu0 %v1594
    %3441 = vmatpush.bf16.msra.mxu0 %v1590
    %3442 = vmatmul.bf16.gmra.mxu0 %v3368
    %v3443 = vpop.f32.mrf.mxu0
    %v3444 = vadd.f32 %v3431, %v3443
    %v3445 = vpop.f32.mrf.mxu0
    %3446 = vdwg.mxu0
    %3447 = vmatpush.bf16.msra.mxu0 %v1587
    %3448 = vmatpush.bf16.msra.mxu0 %v1583
    %3449 = vmatpush.bf16.msra.mxu0 %v1579
    %3450 = vmatpush.bf16.msra.mxu0 %v1575
    %3451 = vmatpush.bf16.msra.mxu0 %v1571
    %3452 = vmatpush.bf16.msra.mxu0 %v1567
    %3453 = vmatpush.bf16.msra.mxu0 %v1563
    %3454 = vmatpush.bf16.msra.mxu0 %v1559
    %3455 = vmatmul.bf16.gmra.mxu0 %v3367
    %v3456 = vpop.f32.mrf.mxu0
    %v3457 = vadd.f32 %v1359, %v3456
    %v3458 = vpop.f32.mrf.mxu0
    %3459 = vdwg.mxu0
    %3460 = vmatpush.bf16.msra.mxu0 %v1619
    %3461 = vmatpush.bf16.msra.mxu0 %v1615
    %3462 = vmatpush.bf16.msra.mxu0 %v1611
    %3463 = vmatpush.bf16.msra.mxu0 %v1607
    %3464 = vmatpush.bf16.msra.mxu0 %v1603
    %3465 = vmatpush.bf16.msra.mxu0 %v1599
    %3466 = vmatpush.bf16.msra.mxu0 %v1595
    %3467 = vmatpush.bf16.msra.mxu0 %v1591
    %3468 = vmatmul.bf16.gmra.mxu0 %v3368
    %v3469 = vpop.f32.mrf.mxu0
    %v3470 = vadd.f32 %v3457, %v3469
    %v3471 = vpop.f32.mrf.mxu0
    %3472 = vdwg.mxu0
    %v3473 = vmul.f32 %v3392, 0.5
    %v3474 = vmul.f32 %v3418, 0.5
    %v3475 = vmul.f32 %v3444, 0.5
    %v3476 = vtanh.pop %v3473
    %v3477 = vtanh.pop %v3474
    %v3478 = vtanh.pop %v3475
    %v3479 = vmul.f32 %v3476, 0.5
    %v3480 = vmul.f32 %v3477, 0.5
    %v3481 = vmul.f32 %v3478, 0.5
    %v3482 = vadd.f32 %v3479, 0.5
    %v3483 = vadd.f32 %v3480, 0.5
    %v3484 = vadd.f32 %v3481, 0.5
    %v3485 = vtanh.pop %v3470
    %v3486 = vmul.f32 %v3483, %v3155
    %v3487 = vmul.f32 %v3482, %v3485
    %v3488 = vadd.f32 %v3486, %v3487
    %v3489 = vtanh.pop %v3488
    %v3490 = vmul.f32 %v3484, %v3489
    %v3491 = vsel %vm3239, %v3490, %v3154
    %v3492 = vsel %vm3239, %v3488, %v3155
    %vm3493 = vcmp.gt.s32.totalorder %v108, 6
    %v3494 = vld [vmem:[#allocation2 + $0xc0] sm:$0xff]
    %v3495 = vld [vmem:[#allocation2 + $0xc8] sm:$0xff]
    %v3496 = vld [vmem:[#allocation2 + $0xd0] sm:$0xff]
    %v3497 = vld [vmem:[#allocation2 + $0xd8] sm:$0xff]
    %3498 = vmatpush.bf16.msra.mxu0 %v782
    %3499 = vmatpush.bf16.msra.mxu0 %v778
    %3500 = vmatpush.bf16.msra.mxu0 %v774
    %3501 = vmatpush.bf16.msra.mxu0 %v770
    %3502 = vmatpush.bf16.msra.mxu0 %v766
    %3503 = vmatpush.bf16.msra.mxu0 %v762
    %3504 = vmatpush.bf16.msra.mxu0 %v758
    %3505 = vmatpush.bf16.msra.mxu0 %v754
    %3506 = vmatmul.bf16.gmra.mxu0 %v3242
    %v3507 = vpop.f32.mrf.mxu0
    %v3508 = vadd.f32 0.0, %v3507
    %v3509 = vpop.f32.mrf.mxu0
    %3510 = vdwg.mxu0
    %3511 = vmatpush.bf16.msra.mxu0 %v783
    %3512 = vmatpush.bf16.msra.mxu0 %v779
    %3513 = vmatpush.bf16.msra.mxu0 %v775
    %3514 = vmatpush.bf16.msra.mxu0 %v771
    %3515 = vmatpush.bf16.msra.mxu0 %v767
    %3516 = vmatpush.bf16.msra.mxu0 %v763
    %3517 = vmatpush.bf16.msra.mxu0 %v759
    %3518 = vmatpush.bf16.msra.mxu0 %v755
    %3519 = vmatmul.bf16.gmra.mxu0 %v3242
    %v3520 = vpop.f32.mrf.mxu0
    %v3521 = vadd.f32 0.0, %v3520
    %v3522 = vpop.f32.mrf.mxu0
    %3523 = vdwg.mxu0
    %3524 = vmatpush.bf16.msra.mxu0 %v784
    %3525 = vmatpush.bf16.msra.mxu0 %v780
    %3526 = vmatpush.bf16.msra.mxu0 %v776
    %3527 = vmatpush.bf16.msra.mxu0 %v772
    %3528 = vmatpush.bf16.msra.mxu0 %v768
    %3529 = vmatpush.bf16.msra.mxu0 %v764
    %3530 = vmatpush.bf16.msra.mxu0 %v760
    %3531 = vmatpush.bf16.msra.mxu0 %v756
    %3532 = vmatmul.bf16.gmra.mxu0 %v3242
    %v3533 = vpop.f32.mrf.mxu0
    %v3534 = vadd.f32 0.0, %v3533
    %v3535 = vpop.f32.mrf.mxu0
    %3536 = vdwg.mxu0
    %3537 = vmatpush.bf16.msra.mxu0 %v785
    %3538 = vmatpush.bf16.msra.mxu0 %v781
    %3539 = vmatpush.bf16.msra.mxu0 %v777
    %3540 = vmatpush.bf16.msra.mxu0 %v773
    %3541 = vmatpush.bf16.msra.mxu0 %v769
    %3542 = vmatpush.bf16.msra.mxu0 %v765
    %3543 = vmatpush.bf16.msra.mxu0 %v761
    %3544 = vmatpush.bf16.msra.mxu0 %v757
    %3545 = vmatmul.bf16.gmra.mxu0 %v3242
    %v3546 = vpop.f32.mrf.mxu0
    %v3547 = vadd.f32 0.0, %v3546
    %v3548 = vpop.f32.mrf.mxu0
    %3549 = vdwg.mxu0
    %v3550 = vadd.f32 %v3494, %v3508
    %v3551 = vadd.f32 %v3495, %v3521
    %v3552 = vadd.f32 %v3496, %v3534
    %v3553 = vadd.f32 %v3497, %v3547
    %v3554 = vmul.f32 %v3550, 0.5
    %v3555 = vmul.f32 %v3551, 0.5
    %v3556 = vmul.f32 %v3552, 0.5
    %v3557 = vtanh.pop %v3554
    %v3558 = vtanh.pop %v3555
    %v3559 = vtanh.pop %v3556
    %v3560 = vmul.f32 %v3557, 0.5
    %v3561 = vmul.f32 %v3558, 0.5
    %v3562 = vmul.f32 %v3559, 0.5
    %v3563 = vadd.f32 %v3560, 0.5
    %v3564 = vadd.f32 %v3561, 0.5
    %v3565 = vadd.f32 %v3562, 0.5
    %v3566 = vtanh.pop %v3553
    %v3567 = vmul.f32 %v3564, %v3241
    %v3568 = vmul.f32 %v3563, %v3566
    %v3569 = vadd.f32 %v3567, %v3568
    %v3570 = vtanh.pop %v3569
    %v3571 = vmul.f32 %v3565, %v3570
    %v3572 = vsel %vm3493, 1, 0
    %3573 = vset.pattern.permute.xlu0 0
    %3574 = vperm.xlu0 %3573, %v3572
    %v3575 = vpop.permute.xlu0 %3574
    %vm3576 = vcmp.eq.s32.totalorder %v3575, 1
    %v3577 = vsel %vm3576, %v3571, %v3240
    %v3578 = vsel %vm3576, %v3569, %v3241
    %v3579 = vpack.c.bf16 %v3577, %v3577
    %3580 = vmatpush.bf16.msra.mxu0 %v1130
    %3581 = vmatpush.bf16.msra.mxu0 %v1126
    %3582 = vmatpush.bf16.msra.mxu0 %v1122
    %3583 = vmatpush.bf16.msra.mxu0 %v1118
    %3584 = vmatpush.bf16.msra.mxu0 %v1114
    %3585 = vmatpush.bf16.msra.mxu0 %v1110
    %3586 = vmatpush.bf16.msra.mxu0 %v1106
    %3587 = vmatpush.bf16.msra.mxu0 %v1102
    %3588 = vmatmul.bf16.gmra.mxu0 %v3579
    %v3589 = vpop.f32.mrf.mxu0
    %v3590 = vadd.f32 %v902, %v3589
    %v3591 = vpop.f32.mrf.mxu0
    %3592 = vdwg.mxu0
    %3593 = vmatpush.bf16.msra.mxu0 %v1162
    %3594 = vmatpush.bf16.msra.mxu0 %v1158
    %3595 = vmatpush.bf16.msra.mxu0 %v1154
    %3596 = vmatpush.bf16.msra.mxu0 %v1150
    %3597 = vmatpush.bf16.msra.mxu0 %v1146
    %3598 = vmatpush.bf16.msra.mxu0 %v1142
    %3599 = vmatpush.bf16.msra.mxu0 %v1138
    %3600 = vmatpush.bf16.msra.mxu0 %v1134
    %3601 = vmatmul.bf16.gmra.mxu0 %v3367
    %v3602 = vpop.f32.mrf.mxu0
    %v3603 = vadd.f32 %v3590, %v3602
    %v3604 = vpop.f32.mrf.mxu0
    %3605 = vdwg.mxu0
    %3606 = vmatpush.bf16.msra.mxu0 %v1131
    %3607 = vmatpush.bf16.msra.mxu0 %v1127
    %3608 = vmatpush.bf16.msra.mxu0 %v1123
    %3609 = vmatpush.bf16.msra.mxu0 %v1119
    %3610 = vmatpush.bf16.msra.mxu0 %v1115
    %3611 = vmatpush.bf16.msra.mxu0 %v1111
    %3612 = vmatpush.bf16.msra.mxu0 %v1107
    %3613 = vmatpush.bf16.msra.mxu0 %v1103
    %3614 = vmatmul.bf16.gmra.mxu0 %v3579
    %v3615 = vpop.f32.mrf.mxu0
    %v3616 = vadd.f32 %v903, %v3615
    %v3617 = vpop.f32.mrf.mxu0
    %3618 = vdwg.mxu0
    %3619 = vmatpush.bf16.msra.mxu0 %v1163
    %3620 = vmatpush.bf16.msra.mxu0 %v1159
    %3621 = vmatpush.bf16.msra.mxu0 %v1155
    %3622 = vmatpush.bf16.msra.mxu0 %v1151
    %3623 = vmatpush.bf16.msra.mxu0 %v1147
    %3624 = vmatpush.bf16.msra.mxu0 %v1143
    %3625 = vmatpush.bf16.msra.mxu0 %v1139
    %3626 = vmatpush.bf16.msra.mxu0 %v1135
    %3627 = vmatmul.bf16.gmra.mxu0 %v3367
    %v3628 = vpop.f32.mrf.mxu0
    %v3629 = vadd.f32 %v3616, %v3628
    %v3630 = vpop.f32.mrf.mxu0
    %3631 = vdwg.mxu0
    %3632 = vmatpush.bf16.msra.mxu0 %v1132
    %3633 = vmatpush.bf16.msra.mxu0 %v1128
    %3634 = vmatpush.bf16.msra.mxu0 %v1124
    %3635 = vmatpush.bf16.msra.mxu0 %v1120
    %3636 = vmatpush.bf16.msra.mxu0 %v1116
    %3637 = vmatpush.bf16.msra.mxu0 %v1112
    %3638 = vmatpush.bf16.msra.mxu0 %v1108
    %3639 = vmatpush.bf16.msra.mxu0 %v1104
    %3640 = vmatmul.bf16.gmra.mxu0 %v3579
    %v3641 = vpop.f32.mrf.mxu0
    %v3642 = vadd.f32 %v904, %v3641
    %v3643 = vpop.f32.mrf.mxu0
    %3644 = vdwg.mxu0
    %3645 = vmatpush.bf16.msra.mxu0 %v1164
    %3646 = vmatpush.bf16.msra.mxu0 %v1160
    %3647 = vmatpush.bf16.msra.mxu0 %v1156
    %3648 = vmatpush.bf16.msra.mxu0 %v1152
    %3649 = vmatpush.bf16.msra.mxu0 %v1148
    %3650 = vmatpush.bf16.msra.mxu0 %v1144
    %3651 = vmatpush.bf16.msra.mxu0 %v1140
    %3652 = vmatpush.bf16.msra.mxu0 %v1136
    %3653 = vmatmul.bf16.gmra.mxu0 %v3367
    %v3654 = vpop.f32.mrf.mxu0
    %v3655 = vadd.f32 %v3642, %v3654
    %v3656 = vpop.f32.mrf.mxu0
    %3657 = vdwg.mxu0
    %3658 = vmatpush.bf16.msra.mxu0 %v1133
    %3659 = vmatpush.bf16.msra.mxu0 %v1129
    %3660 = vmatpush.bf16.msra.mxu0 %v1125
    %3661 = vmatpush.bf16.msra.mxu0 %v1121
    %3662 = vmatpush.bf16.msra.mxu0 %v1117
    %3663 = vmatpush.bf16.msra.mxu0 %v1113
    %3664 = vmatpush.bf16.msra.mxu0 %v1109
    %3665 = vmatpush.bf16.msra.mxu0 %v1105
    %3666 = vmatmul.bf16.gmra.mxu0 %v3579
    %v3667 = vpop.f32.mrf.mxu0
    %v3668 = vadd.f32 %v905, %v3667
    %v3669 = vpop.f32.mrf.mxu0
    %3670 = vdwg.mxu0
    %3671 = vmatpush.bf16.msra.mxu0 %v1165
    %3672 = vmatpush.bf16.msra.mxu0 %v1161
    %3673 = vmatpush.bf16.msra.mxu0 %v1157
    %3674 = vmatpush.bf16.msra.mxu0 %v1153
    %3675 = vmatpush.bf16.msra.mxu0 %v1149
    %3676 = vmatpush.bf16.msra.mxu0 %v1145
    %3677 = vmatpush.bf16.msra.mxu0 %v1141
    %3678 = vmatpush.bf16.msra.mxu0 %v1137
    %3679 = vmatmul.bf16.gmra.mxu0 %v3367
    %v3680 = vpop.f32.mrf.mxu0
    %v3681 = vadd.f32 %v3668, %v3680
    %v3682 = vpop.f32.mrf.mxu0
    %3683 = vdwg.mxu0
    %v3684 = vmul.f32 %v3603, 0.5
    %v3685 = vmul.f32 %v3629, 0.5
    %v3686 = vmul.f32 %v3655, 0.5
    %v3687 = vtanh.pop %v3684
    %v3688 = vtanh.pop %v3685
    %v3689 = vtanh.pop %v3686
    %v3690 = vmul.f32 %v3687, 0.5
    %v3691 = vmul.f32 %v3688, 0.5
    %v3692 = vmul.f32 %v3689, 0.5
    %v3693 = vadd.f32 %v3690, 0.5
    %v3694 = vadd.f32 %v3691, 0.5
    %v3695 = vadd.f32 %v3692, 0.5
    %v3696 = vtanh.pop %v3681
    %v3697 = vmul.f32 %v3694, %v3366
    %v3698 = vmul.f32 %v3693, %v3696
    %v3699 = vadd.f32 %v3697, %v3698
    %v3700 = vtanh.pop %v3699
    %v3701 = vmul.f32 %v3695, %v3700
    %v3702 = vsel %vm3576, %v3701, %v3365
    %v3703 = vsel %vm3576, %v3699, %v3366
    %v3704 = vpack.c.bf16 %v3702, %v3702
    %v3705 = vpack.c.bf16 %v3491, %v3491
    %3706 = vmatpush.bf16.msra.mxu0 %v1584
    %3707 = vmatpush.bf16.msra.mxu0 %v1580
    %3708 = vmatpush.bf16.msra.mxu0 %v1576
    %3709 = vmatpush.bf16.msra.mxu0 %v1572
    %3710 = vmatpush.bf16.msra.mxu0 %v1568
    %3711 = vmatpush.bf16.msra.mxu0 %v1564
    %3712 = vmatpush.bf16.msra.mxu0 %v1560
    %3713 = vmatpush.bf16.msra.mxu0 %v1556
    %3714 = vmatmul.bf16.gmra.mxu0 %v3704
    %v3715 = vpop.f32.mrf.mxu0
    %v3716 = vadd.f32 %v1356, %v3715
    %v3717 = vpop.f32.mrf.mxu0
    %3718 = vdwg.mxu0
    %3719 = vmatpush.bf16.msra.mxu0 %v1616
    %3720 = vmatpush.bf16.msra.mxu0 %v1612
    %3721 = vmatpush.bf16.msra.mxu0 %v1608
    %3722 = vmatpush.bf16.msra.mxu0 %v1604
    %3723 = vmatpush.bf16.msra.mxu0 %v1600
    %3724 = vmatpush.bf16.msra.mxu0 %v1596
    %3725 = vmatpush.bf16.msra.mxu0 %v1592
    %3726 = vmatpush.bf16.msra.mxu0 %v1588
    %3727 = vmatmul.bf16.gmra.mxu0 %v3705
    %v3728 = vpop.f32.mrf.mxu0
    %v3729 = vadd.f32 %v3716, %v3728
    %v3730 = vpop.f32.mrf.mxu0
    %3731 = vdwg.mxu0
    %3732 = vmatpush.bf16.msra.mxu0 %v1585
    %3733 = vmatpush.bf16.msra.mxu0 %v1581
    %3734 = vmatpush.bf16.msra.mxu0 %v1577
    %3735 = vmatpush.bf16.msra.mxu0 %v1573
    %3736 = vmatpush.bf16.msra.mxu0 %v1569
    %3737 = vmatpush.bf16.msra.mxu0 %v1565
    %3738 = vmatpush.bf16.msra.mxu0 %v1561
    %3739 = vmatpush.bf16.msra.mxu0 %v1557
    %3740 = vmatmul.bf16.gmra.mxu0 %v3704
    %v3741 = vpop.f32.mrf.mxu0
    %v3742 = vadd.f32 %v1357, %v3741
    %v3743 = vpop.f32.mrf.mxu0
    %3744 = vdwg.mxu0
    %3745 = vmatpush.bf16.msra.mxu0 %v1617
    %3746 = vmatpush.bf16.msra.mxu0 %v1613
    %3747 = vmatpush.bf16.msra.mxu0 %v1609
    %3748 = vmatpush.bf16.msra.mxu0 %v1605
    %3749 = vmatpush.bf16.msra.mxu0 %v1601
    %3750 = vmatpush.bf16.msra.mxu0 %v1597
    %3751 = vmatpush.bf16.msra.mxu0 %v1593
    %3752 = vmatpush.bf16.msra.mxu0 %v1589
    %3753 = vmatmul.bf16.gmra.mxu0 %v3705
    %v3754 = vpop.f32.mrf.mxu0
    %v3755 = vadd.f32 %v3742, %v3754
    %v3756 = vpop.f32.mrf.mxu0
    %3757 = vdwg.mxu0
    %3758 = vmatpush.bf16.msra.mxu0 %v1586
    %3759 = vmatpush.bf16.msra.mxu0 %v1582
    %3760 = vmatpush.bf16.msra.mxu0 %v1578
    %3761 = vmatpush.bf16.msra.mxu0 %v1574
    %3762 = vmatpush.bf16.msra.mxu0 %v1570
    %3763 = vmatpush.bf16.msra.mxu0 %v1566
    %3764 = vmatpush.bf16.msra.mxu0 %v1562
    %3765 = vmatpush.bf16.msra.mxu0 %v1558
    %3766 = vmatmul.bf16.gmra.mxu0 %v3704
    %v3767 = vpop.f32.mrf.mxu0
    %v3768 = vadd.f32 %v1358, %v3767
    %v3769 = vpop.f32.mrf.mxu0
    %3770 = vdwg.mxu0
    %3771 = vmatpush.bf16.msra.mxu0 %v1618
    %3772 = vmatpush.bf16.msra.mxu0 %v1614
    %3773 = vmatpush.bf16.msra.mxu0 %v1610
    %3774 = vmatpush.bf16.msra.mxu0 %v1606
    %3775 = vmatpush.bf16.msra.mxu0 %v1602
    %3776 = vmatpush.bf16.msra.mxu0 %v1598
    %3777 = vmatpush.bf16.msra.mxu0 %v1594
    %3778 = vmatpush.bf16.msra.mxu0 %v1590
    %3779 = vmatmul.bf16.gmra.mxu0 %v3705
    %v3780 = vpop.f32.mrf.mxu0
    %v3781 = vadd.f32 %v3768, %v3780
    %v3782 = vpop.f32.mrf.mxu0
    %3783 = vdwg.mxu0
    %3784 = vmatpush.bf16.msra.mxu0 %v1587
    %3785 = vmatpush.bf16.msra.mxu0 %v1583
    %3786 = vmatpush.bf16.msra.mxu0 %v1579
    %3787 = vmatpush.bf16.msra.mxu0 %v1575
    %3788 = vmatpush.bf16.msra.mxu0 %v1571
    %3789 = vmatpush.bf16.msra.mxu0 %v1567
    %3790 = vmatpush.bf16.msra.mxu0 %v1563
    %3791 = vmatpush.bf16.msra.mxu0 %v1559
    %3792 = vmatmul.bf16.gmra.mxu0 %v3704
    %v3793 = vpop.f32.mrf.mxu0
    %v3794 = vadd.f32 %v1359, %v3793
    %v3795 = vpop.f32.mrf.mxu0
    %3796 = vdwg.mxu0
    %3797 = vmatpush.bf16.msra.mxu0 %v1619
    %3798 = vmatpush.bf16.msra.mxu0 %v1615
    %3799 = vmatpush.bf16.msra.mxu0 %v1611
    %3800 = vmatpush.bf16.msra.mxu0 %v1607
    %3801 = vmatpush.bf16.msra.mxu0 %v1603
    %3802 = vmatpush.bf16.msra.mxu0 %v1599
    %3803 = vmatpush.bf16.msra.mxu0 %v1595
    %3804 = vmatpush.bf16.msra.mxu0 %v1591
    %3805 = vmatmul.bf16.gmra.mxu0 %v3705
    %v3806 = vpop.f32.mrf.mxu0
    %v3807 = vadd.f32 %v3794, %v3806
    %v3808 = vpop.f32.mrf.mxu0
    %3809 = vdwg.mxu0
    %v3810 = vmul.f32 %v3729, 0.5
    %v3811 = vmul.f32 %v3755, 0.5
    %v3812 = vmul.f32 %v3781, 0.5
    %v3813 = vtanh.pop %v3810
    %v3814 = vtanh.pop %v3811
    %v3815 = vtanh.pop %v3812
    %v3816 = vmul.f32 %v3813, 0.5
    %v3817 = vmul.f32 %v3814, 0.5
    %v3818 = vmul.f32 %v3815, 0.5
    %v3819 = vadd.f32 %v3816, 0.5
    %v3820 = vadd.f32 %v3817, 0.5
    %v3821 = vadd.f32 %v3818, 0.5
    %v3822 = vtanh.pop %v3807
    %v3823 = vmul.f32 %v3820, %v3492
    %v3824 = vmul.f32 %v3819, %v3822
    %v3825 = vadd.f32 %v3823, %v3824
    %v3826 = vtanh.pop %v3825
    %v3827 = vmul.f32 %v3821, %v3826
    %v3828 = vsel %vm3576, %v3827, %v3491
    %v3829 = vsel %vm3576, %v3825, %v3492
    %vm3830 = vcmp.gt.s32.totalorder %v108, 7
    %v3831 = vld [vmem:[#allocation2 + $0xe0] sm:$0xff]
    %v3832 = vld [vmem:[#allocation2 + $0xe8] sm:$0xff]
    %v3833 = vld [vmem:[#allocation2 + $0xf0] sm:$0xff]
    %v3834 = vld [vmem:[#allocation2 + $0xf8] sm:$0xff]
    %3835 = vmatpush.bf16.msra.mxu0 %v782
    %3836 = vmatpush.bf16.msra.mxu0 %v778
    %3837 = vmatpush.bf16.msra.mxu0 %v774
    %3838 = vmatpush.bf16.msra.mxu0 %v770
    %3839 = vmatpush.bf16.msra.mxu0 %v766
    %3840 = vmatpush.bf16.msra.mxu0 %v762
    %3841 = vmatpush.bf16.msra.mxu0 %v758
    %3842 = vmatpush.bf16.msra.mxu0 %v754
    %3843 = vmatmul.bf16.gmra.mxu0 %v3579
    %v3844 = vpop.f32.mrf.mxu0
    %v3845 = vadd.f32 0.0, %v3844
    %v3846 = vpop.f32.mrf.mxu0
    %3847 = vdwg.mxu0
    %3848 = vmatpush.bf16.msra.mxu0 %v783
    %3849 = vmatpush.bf16.msra.mxu0 %v779
    %3850 = vmatpush.bf16.msra.mxu0 %v775
    %3851 = vmatpush.bf16.msra.mxu0 %v771
    %3852 = vmatpush.bf16.msra.mxu0 %v767
    %3853 = vmatpush.bf16.msra.mxu0 %v763
    %3854 = vmatpush.bf16.msra.mxu0 %v759
    %3855 = vmatpush.bf16.msra.mxu0 %v755
    %3856 = vmatmul.bf16.gmra.mxu0 %v3579
    %v3857 = vpop.f32.mrf.mxu0
    %v3858 = vadd.f32 0.0, %v3857
    %v3859 = vpop.f32.mrf.mxu0
    %3860 = vdwg.mxu0
    %3861 = vmatpush.bf16.msra.mxu0 %v784
    %3862 = vmatpush.bf16.msra.mxu0 %v780
    %3863 = vmatpush.bf16.msra.mxu0 %v776
    %3864 = vmatpush.bf16.msra.mxu0 %v772
    %3865 = vmatpush.bf16.msra.mxu0 %v768
    %3866 = vmatpush.bf16.msra.mxu0 %v764
    %3867 = vmatpush.bf16.msra.mxu0 %v760
    %3868 = vmatpush.bf16.msra.mxu0 %v756
    %3869 = vmatmul.bf16.gmra.mxu0 %v3579
    %v3870 = vpop.f32.mrf.mxu0
    %v3871 = vadd.f32 0.0, %v3870
    %v3872 = vpop.f32.mrf.mxu0
    %3873 = vdwg.mxu0
    %3874 = vmatpush.bf16.msra.mxu0 %v785
    %3875 = vmatpush.bf16.msra.mxu0 %v781
    %3876 = vmatpush.bf16.msra.mxu0 %v777
    %3877 = vmatpush.bf16.msra.mxu0 %v773
    %3878 = vmatpush.bf16.msra.mxu0 %v769
    %3879 = vmatpush.bf16.msra.mxu0 %v765
    %3880 = vmatpush.bf16.msra.mxu0 %v761
    %3881 = vmatpush.bf16.msra.mxu0 %v757
    %3882 = vmatmul.bf16.gmra.mxu0 %v3579
    %v3883 = vpop.f32.mrf.mxu0
    %v3884 = vadd.f32 0.0, %v3883
    %v3885 = vpop.f32.mrf.mxu0
    %3886 = vdwg.mxu0
    %v3887 = vadd.f32 %v3831, %v3845
    %v3888 = vadd.f32 %v3832, %v3858
    %v3889 = vadd.f32 %v3833, %v3871
    %v3890 = vadd.f32 %v3834, %v3884
    %v3891 = vmul.f32 %v3887, 0.5
    %v3892 = vmul.f32 %v3888, 0.5
    %v3893 = vmul.f32 %v3889, 0.5
    %v3894 = vtanh.pop %v3891
    %v3895 = vtanh.pop %v3892
    %v3896 = vtanh.pop %v3893
    %v3897 = vmul.f32 %v3894, 0.5
    %v3898 = vmul.f32 %v3895, 0.5
    %v3899 = vmul.f32 %v3896, 0.5
    %v3900 = vadd.f32 %v3897, 0.5
    %v3901 = vadd.f32 %v3898, 0.5
    %v3902 = vadd.f32 %v3899, 0.5
    %v3903 = vtanh.pop %v3890
    %v3904 = vmul.f32 %v3901, %v3578
    %v3905 = vmul.f32 %v3900, %v3903
    %v3906 = vadd.f32 %v3904, %v3905
    %v3907 = vtanh.pop %v3906
    %v3908 = vmul.f32 %v3902, %v3907
    %v3909 = vsel %vm3830, 1, 0
    %3910 = vset.pattern.permute.xlu0 0
    %3911 = vperm.xlu0 %3910, %v3909
    %v3912 = vpop.permute.xlu0 %3911
    %vm3913 = vcmp.eq.s32.totalorder %v3912, 1
    %v3914 = vsel %vm3913, %v3908, %v3577
    %v3915 = vpack.c.bf16 %v3914, %v3914
    %3916 = vmatpush.bf16.msra.mxu0 %v1130
    %3917 = vmatpush.bf16.msra.mxu0 %v1126
    %3918 = vmatpush.bf16.msra.mxu0 %v1122
    %3919 = vmatpush.bf16.msra.mxu0 %v1118
    %3920 = vmatpush.bf16.msra.mxu0 %v1114
    %3921 = vmatpush.bf16.msra.mxu0 %v1110
    %3922 = vmatpush.bf16.msra.mxu0 %v1106
    %3923 = vmatpush.bf16.msra.mxu0 %v1102
    %3924 = vmatmul.bf16.gmra.mxu0 %v3915
    %v3925 = vpop.f32.mrf.mxu0
    %v3926 = vadd.f32 %v902, %v3925
    %v3927 = vpop.f32.mrf.mxu0
    %3928 = vdwg.mxu0
    %3929 = vmatpush.bf16.msra.mxu0 %v1162
    %3930 = vmatpush.bf16.msra.mxu0 %v1158
    %3931 = vmatpush.bf16.msra.mxu0 %v1154
    %3932 = vmatpush.bf16.msra.mxu0 %v1150
    %3933 = vmatpush.bf16.msra.mxu0 %v1146
    %3934 = vmatpush.bf16.msra.mxu0 %v1142
    %3935 = vmatpush.bf16.msra.mxu0 %v1138
    %3936 = vmatpush.bf16.msra.mxu0 %v1134
    %3937 = vmatmul.bf16.gmra.mxu0 %v3704
    %v3938 = vpop.f32.mrf.mxu0
    %v3939 = vadd.f32 %v3926, %v3938
    %v3940 = vpop.f32.mrf.mxu0
    %3941 = vdwg.mxu0
    %3942 = vmatpush.bf16.msra.mxu0 %v1131
    %3943 = vmatpush.bf16.msra.mxu0 %v1127
    %3944 = vmatpush.bf16.msra.mxu0 %v1123
    %3945 = vmatpush.bf16.msra.mxu0 %v1119
    %3946 = vmatpush.bf16.msra.mxu0 %v1115
    %3947 = vmatpush.bf16.msra.mxu0 %v1111
    %3948 = vmatpush.bf16.msra.mxu0 %v1107
    %3949 = vmatpush.bf16.msra.mxu0 %v1103
    %3950 = vmatmul.bf16.gmra.mxu0 %v3915
    %v3951 = vpop.f32.mrf.mxu0
    %v3952 = vadd.f32 %v903, %v3951
    %v3953 = vpop.f32.mrf.mxu0
    %3954 = vdwg.mxu0
    %3955 = vmatpush.bf16.msra.mxu0 %v1163
    %3956 = vmatpush.bf16.msra.mxu0 %v1159
    %3957 = vmatpush.bf16.msra.mxu0 %v1155
    %3958 = vmatpush.bf16.msra.mxu0 %v1151
    %3959 = vmatpush.bf16.msra.mxu0 %v1147
    %3960 = vmatpush.bf16.msra.mxu0 %v1143
    %3961 = vmatpush.bf16.msra.mxu0 %v1139
    %3962 = vmatpush.bf16.msra.mxu0 %v1135
    %3963 = vmatmul.bf16.gmra.mxu0 %v3704
    %v3964 = vpop.f32.mrf.mxu0
    %v3965 = vadd.f32 %v3952, %v3964
    %v3966 = vpop.f32.mrf.mxu0
    %3967 = vdwg.mxu0
    %3968 = vmatpush.bf16.msra.mxu0 %v1132
    %3969 = vmatpush.bf16.msra.mxu0 %v1128
    %3970 = vmatpush.bf16.msra.mxu0 %v1124
    %3971 = vmatpush.bf16.msra.mxu0 %v1120
    %3972 = vmatpush.bf16.msra.mxu0 %v1116
    %3973 = vmatpush.bf16.msra.mxu0 %v1112
    %3974 = vmatpush.bf16.msra.mxu0 %v1108
    %3975 = vmatpush.bf16.msra.mxu0 %v1104
    %3976 = vmatmul.bf16.gmra.mxu0 %v3915
    %v3977 = vpop.f32.mrf.mxu0
    %v3978 = vadd.f32 %v904, %v3977
    %v3979 = vpop.f32.mrf.mxu0
    %3980 = vdwg.mxu0
    %3981 = vmatpush.bf16.msra.mxu0 %v1164
    %3982 = vmatpush.bf16.msra.mxu0 %v1160
    %3983 = vmatpush.bf16.msra.mxu0 %v1156
    %3984 = vmatpush.bf16.msra.mxu0 %v1152
    %3985 = vmatpush.bf16.msra.mxu0 %v1148
    %3986 = vmatpush.bf16.msra.mxu0 %v1144
    %3987 = vmatpush.bf16.msra.mxu0 %v1140
    %3988 = vmatpush.bf16.msra.mxu0 %v1136
    %3989 = vmatmul.bf16.gmra.mxu0 %v3704
    %v3990 = vpop.f32.mrf.mxu0
    %v3991 = vadd.f32 %v3978, %v3990
    %v3992 = vpop.f32.mrf.mxu0
    %3993 = vdwg.mxu0
    %3994 = vmatpush.bf16.msra.mxu0 %v1133
    %3995 = vmatpush.bf16.msra.mxu0 %v1129
    %3996 = vmatpush.bf16.msra.mxu0 %v1125
    %3997 = vmatpush.bf16.msra.mxu0 %v1121
    %3998 = vmatpush.bf16.msra.mxu0 %v1117
    %3999 = vmatpush.bf16.msra.mxu0 %v1113
    %4000 = vmatpush.bf16.msra.mxu0 %v1109
    %4001 = vmatpush.bf16.msra.mxu0 %v1105
    %4002 = vmatmul.bf16.gmra.mxu0 %v3915
    %v4003 = vpop.f32.mrf.mxu0
    %v4004 = vadd.f32 %v905, %v4003
    %v4005 = vpop.f32.mrf.mxu0
    %4006 = vdwg.mxu0
    %4007 = vmatpush.bf16.msra.mxu0 %v1165
    %4008 = vmatpush.bf16.msra.mxu0 %v1161
    %4009 = vmatpush.bf16.msra.mxu0 %v1157
    %4010 = vmatpush.bf16.msra.mxu0 %v1153
    %4011 = vmatpush.bf16.msra.mxu0 %v1149
    %4012 = vmatpush.bf16.msra.mxu0 %v1145
    %4013 = vmatpush.bf16.msra.mxu0 %v1141
    %4014 = vmatpush.bf16.msra.mxu0 %v1137
    %4015 = vmatmul.bf16.gmra.mxu0 %v3704
    %v4016 = vpop.f32.mrf.mxu0
    %v4017 = vadd.f32 %v4004, %v4016
    %v4018 = vpop.f32.mrf.mxu0
    %4019 = vdwg.mxu0
    %v4020 = vmul.f32 %v3939, 0.5
    %v4021 = vmul.f32 %v3965, 0.5
    %v4022 = vmul.f32 %v3991, 0.5
    %v4023 = vtanh.pop %v4020
    %v4024 = vtanh.pop %v4021
    %v4025 = vtanh.pop %v4022
    %v4026 = vmul.f32 %v4023, 0.5
    %v4027 = vmul.f32 %v4024, 0.5
    %v4028 = vmul.f32 %v4025, 0.5
    %v4029 = vadd.f32 %v4026, 0.5
    %v4030 = vadd.f32 %v4027, 0.5
    %v4031 = vadd.f32 %v4028, 0.5
    %v4032 = vtanh.pop %v4017
    %v4033 = vmul.f32 %v4030, %v3703
    %v4034 = vmul.f32 %v4029, %v4032
    %v4035 = vadd.f32 %v4033, %v4034
    %v4036 = vtanh.pop %v4035
    %v4037 = vmul.f32 %v4031, %v4036
    %v4038 = vsel %vm3913, %v4037, %v3702
    %v4039 = vpack.c.bf16 %v4038, %v4038
    %v4040 = vpack.c.bf16 %v3828, %v3828
    %4041 = vmatpush.bf16.msra.mxu0 %v1584
    %4042 = vmatpush.bf16.msra.mxu0 %v1580
    %4043 = vmatpush.bf16.msra.mxu0 %v1576
    %4044 = vmatpush.bf16.msra.mxu0 %v1572
    %4045 = vmatpush.bf16.msra.mxu0 %v1568
    %4046 = vmatpush.bf16.msra.mxu0 %v1564
    %4047 = vmatpush.bf16.msra.mxu0 %v1560
    %4048 = vmatpush.bf16.msra.mxu0 %v1556
    %4049 = vmatmul.bf16.gmra.mxu0 %v4039
    %v4050 = vpop.f32.mrf.mxu0
    %v4051 = vadd.f32 %v1356, %v4050
    %v4052 = vpop.f32.mrf.mxu0
    %4053 = vdwg.mxu0
    %4054 = vmatpush.bf16.msra.mxu0 %v1616
    %4055 = vmatpush.bf16.msra.mxu0 %v1612
    %4056 = vmatpush.bf16.msra.mxu0 %v1608
    %4057 = vmatpush.bf16.msra.mxu0 %v1604
    %4058 = vmatpush.bf16.msra.mxu0 %v1600
    %4059 = vmatpush.bf16.msra.mxu0 %v1596
    %4060 = vmatpush.bf16.msra.mxu0 %v1592
    %4061 = vmatpush.bf16.msra.mxu0 %v1588
    %4062 = vmatmul.bf16.gmra.mxu0 %v4040
    %v4063 = vpop.f32.mrf.mxu0
    %v4064 = vadd.f32 %v4051, %v4063
    %v4065 = vpop.f32.mrf.mxu0
    %4066 = vdwg.mxu0
    %4067 = vmatpush.bf16.msra.mxu0 %v1585
    %4068 = vmatpush.bf16.msra.mxu0 %v1581
    %4069 = vmatpush.bf16.msra.mxu0 %v1577
    %4070 = vmatpush.bf16.msra.mxu0 %v1573
    %4071 = vmatpush.bf16.msra.mxu0 %v1569
    %4072 = vmatpush.bf16.msra.mxu0 %v1565
    %4073 = vmatpush.bf16.msra.mxu0 %v1561
    %4074 = vmatpush.bf16.msra.mxu0 %v1557
    %4075 = vmatmul.bf16.gmra.mxu0 %v4039
    %v4076 = vpop.f32.mrf.mxu0
    %v4077 = vadd.f32 %v1357, %v4076
    %v4078 = vpop.f32.mrf.mxu0
    %4079 = vdwg.mxu0
    %4080 = vmatpush.bf16.msra.mxu0 %v1617
    %4081 = vmatpush.bf16.msra.mxu0 %v1613
    %4082 = vmatpush.bf16.msra.mxu0 %v1609
    %4083 = vmatpush.bf16.msra.mxu0 %v1605
    %4084 = vmatpush.bf16.msra.mxu0 %v1601
    %4085 = vmatpush.bf16.msra.mxu0 %v1597
    %4086 = vmatpush.bf16.msra.mxu0 %v1593
    %4087 = vmatpush.bf16.msra.mxu0 %v1589
    %4088 = vmatmul.bf16.gmra.mxu0 %v4040
    %v4089 = vpop.f32.mrf.mxu0
    %v4090 = vadd.f32 %v4077, %v4089
    %v4091 = vpop.f32.mrf.mxu0
    %4092 = vdwg.mxu0
    %4093 = vmatpush.bf16.msra.mxu0 %v1586
    %4094 = vmatpush.bf16.msra.mxu0 %v1582
    %4095 = vmatpush.bf16.msra.mxu0 %v1578
    %4096 = vmatpush.bf16.msra.mxu0 %v1574
    %4097 = vmatpush.bf16.msra.mxu0 %v1570
    %4098 = vmatpush.bf16.msra.mxu0 %v1566
    %4099 = vmatpush.bf16.msra.mxu0 %v1562
    %4100 = vmatpush.bf16.msra.mxu0 %v1558
    %4101 = vmatmul.bf16.gmra.mxu0 %v4039
    %v4102 = vpop.f32.mrf.mxu0
    %v4103 = vadd.f32 %v1358, %v4102
    %v4104 = vpop.f32.mrf.mxu0
    %4105 = vdwg.mxu0
    %4106 = vmatpush.bf16.msra.mxu0 %v1618
    %4107 = vmatpush.bf16.msra.mxu0 %v1614
    %4108 = vmatpush.bf16.msra.mxu0 %v1610
    %4109 = vmatpush.bf16.msra.mxu0 %v1606
    %4110 = vmatpush.bf16.msra.mxu0 %v1602
    %4111 = vmatpush.bf16.msra.mxu0 %v1598
    %4112 = vmatpush.bf16.msra.mxu0 %v1594
    %4113 = vmatpush.bf16.msra.mxu0 %v1590
    %4114 = vmatmul.bf16.gmra.mxu0 %v4040
    %v4115 = vpop.f32.mrf.mxu0
    %v4116 = vadd.f32 %v4103, %v4115
    %v4117 = vpop.f32.mrf.mxu0
    %4118 = vdwg.mxu0
    %4119 = vmatpush.bf16.msra.mxu0 %v1587
    %4120 = vmatpush.bf16.msra.mxu0 %v1583
    %4121 = vmatpush.bf16.msra.mxu0 %v1579
    %4122 = vmatpush.bf16.msra.mxu0 %v1575
    %4123 = vmatpush.bf16.msra.mxu0 %v1571
    %4124 = vmatpush.bf16.msra.mxu0 %v1567
    %4125 = vmatpush.bf16.msra.mxu0 %v1563
    %4126 = vmatpush.bf16.msra.mxu0 %v1559
    %4127 = vmatmul.bf16.gmra.mxu0 %v4039
    %v4128 = vpop.f32.mrf.mxu0
    %v4129 = vadd.f32 %v1359, %v4128
    %v4130 = vpop.f32.mrf.mxu0
    %4131 = vdwg.mxu0
    %4132 = vmatpush.bf16.msra.mxu0 %v1619
    %4133 = vmatpush.bf16.msra.mxu0 %v1615
    %4134 = vmatpush.bf16.msra.mxu0 %v1611
    %4135 = vmatpush.bf16.msra.mxu0 %v1607
    %4136 = vmatpush.bf16.msra.mxu0 %v1603
    %4137 = vmatpush.bf16.msra.mxu0 %v1599
    %4138 = vmatpush.bf16.msra.mxu0 %v1595
    %4139 = vmatpush.bf16.msra.mxu0 %v1591
    %4140 = vmatmul.bf16.gmra.mxu0 %v4040
    %v4141 = vpop.f32.mrf.mxu0
    %v4142 = vadd.f32 %v4129, %v4141
    %v4143 = vpop.f32.mrf.mxu0
    %4144 = vdwg.mxu0
    %v4145 = vmul.f32 %v4064, 0.5
    %v4146 = vmul.f32 %v4090, 0.5
    %v4147 = vmul.f32 %v4116, 0.5
    %v4148 = vtanh.pop %v4145
    %v4149 = vtanh.pop %v4146
    %v4150 = vtanh.pop %v4147
    %v4151 = vmul.f32 %v4148, 0.5
    %v4152 = vmul.f32 %v4149, 0.5
    %v4153 = vmul.f32 %v4150, 0.5
    %v4154 = vadd.f32 %v4151, 0.5
    %v4155 = vadd.f32 %v4152, 0.5
    %v4156 = vadd.f32 %v4153, 0.5
    %v4157 = vtanh.pop %v4142
    %v4158 = vmul.f32 %v4155, %v3829
    %v4159 = vmul.f32 %v4154, %v4157
    %v4160 = vadd.f32 %v4158, %v4159
    %v4161 = vtanh.pop %v4160
    %v4162 = vmul.f32 %v4156, %v4161
    %v4163 = vsel %vm3913, %v4162, %v3828
    %vm4164 = vcmask 7168
    %v4165 = vsel %vm4164, %v108, 2147483648
    %v4166 = vand.u32 %v4165, 65535
    %v4167 = vshra.s32 %v4165, 16
    %v4168 = vcvt.s32.f32 %v4166
    %v4169 = vcvt.s32.f32 %v4167
    %4170 = vmax.xlane.f32.xlu0 %v4169
    %v4171 = vpop.xlane.xlu0 %4170
    %vm4172 = vcmp.eq.f32.partialorder %v4169, %v4171
    %v4173 = vsel %vm4172, %v4168, -inf
    %4174 = vmax.xlane.f32.xlu0 %v4173
    %v4175 = vpop.xlane.xlu0 %4174
    %v4176 = vcvt.f32.s32 %v4175
    %v4177 = vcvt.f32.s32 %v4171
    %v4178 = vshll.u32 %v4177, 16
    %v4179 = vadd.s32 %v4178, %v4176
    %v4180 = vrot.slane %v4179, 4
    %vm4181 = vcmp.gt.s32.totalorder %v4179, %v4180
    %v4182 = vsel %vm4181, %v4179, %v4180
    %v4183 = vrot.slane %v4182, 2
    %vm4184 = vcmp.gt.s32.totalorder %v4182, %v4183
    %v4185 = vsel %vm4184, %v4182, %v4183
    %v4186 = vrot.slane %v4185, 1
    %vm4187 = vcmp.gt.s32.totalorder %v4185, %v4186
    %v4188 = vsel %vm4187, %v4185, %v4186
    %s4189 = vtos %v4188
    %v4190 = vstv %s4189
    %vm4191 = vcmp.eq.s32.totalorder %v108, %v4190
    %v4192 = vsel %vm4191, 1, 0
    %4193 = vset.pattern.permute.xlu0 0
    %4194 = vperm.xlu0 %4193, %v4192
    %v4195 = vpop.permute.xlu0 %4194
    %vm4196 = vcmp.eq.s32.totalorder %v4195, 1
    %v4197 = vsel %vm4196, %v4163, 0.0
    %v4198 = vpack.c.bf16 %v4197, %v4197
    %v4199 = vld [vmem:[%s9] sm:$0xf]
    %v4200 = vld [vmem:[%s9 + $0x4] sm:$0xf]
    %v4201 = vld [vmem:[%s9 + $0x8] sm:$0xf]
    %v4202 = vld [vmem:[%s9 + $0xc] sm:$0xf]
    %v4203 = vld [vmem:[%s9 + $0x10] sm:$0xf]
    %v4204 = vld [vmem:[%s9 + $0x14] sm:$0xf]
    %v4205 = vld [vmem:[%s9 + $0x18] sm:$0xf]
    %v4206 = vld [vmem:[%s9 + $0x1c] sm:$0xf]
    %v4207 = vld [vmem:[%s9 + $0x20] sm:$0xf]
    %v4208 = vld [vmem:[%s9 + $0x24] sm:$0xf]
    %v4209 = vld [vmem:[%s9 + $0x28] sm:$0xf]
    %v4210 = vld [vmem:[%s9 + $0x2c] sm:$0xf]
    %v4211 = vld [vmem:[%s9 + $0x30] sm:$0xf]
    %v4212 = vld [vmem:[%s9 + $0x34] sm:$0xf]
    %v4213 = vld [vmem:[%s9 + $0x38] sm:$0xf]
    %v4214 = vld [vmem:[%s9 + $0x3c] sm:$0xf]
    %v4215 = vld [vmem:[%s10] sm:$0x1]
    %v4217 = vperm.slane %v4215, 0
    %v4235 = vunpack.c.l.b16 %v4199
    %v4236 = vunpack.c.l.b16 %v4200
    %v4237 = vunpack.c.l.b16 %v4201
    %v4238 = vunpack.c.l.b16 %v4202
    %v4239 = vunpack.c.l.b16 %v4203
    %v4240 = vunpack.c.l.b16 %v4204
    %v4241 = vunpack.c.l.b16 %v4205
    %v4242 = vunpack.c.l.b16 %v4206
    %v4243 = vunpack.c.l.b16 %v4207
    %v4244 = vunpack.c.l.b16 %v4208
    %v4245 = vunpack.c.l.b16 %v4209
    %v4246 = vunpack.c.l.b16 %v4210
    %v4247 = vunpack.c.l.b16 %v4211
    %v4248 = vunpack.c.l.b16 %v4212
    %v4249 = vunpack.c.l.b16 %v4213
    %v4250 = vunpack.c.l.b16 %v4214
    %v4251 = vpack.c.b16 %v4236, %v4235
    %v4252 = vpack.c.b16 %v4238, %v4237
    %v4253 = vpack.c.b16 %v4240, %v4239
    %v4254 = vpack.c.b16 %v4242, %v4241
    %v4255 = vpack.c.b16 %v4244, %v4243
    %v4256 = vpack.c.b16 %v4246, %v4245
    %v4257 = vpack.c.b16 %v4248, %v4247
    %v4258 = vpack.c.b16 %v4250, %v4249
    %4267 = vmatpush.bf16.msra.mxu0 %v4258
    %4268 = vmatpush.bf16.msra.mxu0 %v4257
    %4269 = vmatpush.bf16.msra.mxu0 %v4256
    %4270 = vmatpush.bf16.msra.mxu0 %v4255
    %4271 = vmatpush.bf16.msra.mxu0 %v4254
    %4272 = vmatpush.bf16.msra.mxu0 %v4253
    %4273 = vmatpush.bf16.msra.mxu0 %v4252
    %4274 = vmatpush.bf16.msra.mxu0 %v4251
    %4275 = vmatmul.bf16.gmra.mxu0 %v4198
    %v4276 = vpop.f32.mrf.mxu0
    %v4277 = vadd.f32 %v4217, %v4276
    %v4278 = vpop.f32.mrf.mxu0
    %4279 = vdwg.mxu0
    %v4280 = vmax.f32 %v4277, 0.0
    %v4281 = vpack.c.bf16 %v4280, %v4280
    %v4282 = vld [vmem:[%s11] sm:$0xf]
    %v4283 = vld [vmem:[%s11 + $0x4] sm:$0xf]
    %v4284 = vld [vmem:[%s11 + $0x8] sm:$0xf]
    %v4285 = vld [vmem:[%s11 + $0xc] sm:$0xf]
    %v4286 = vld [vmem:[%s11 + $0x10] sm:$0xf]
    %v4287 = vld [vmem:[%s11 + $0x14] sm:$0xf]
    %v4288 = vld [vmem:[%s11 + $0x18] sm:$0xf]
    %v4289 = vld [vmem:[%s11 + $0x1c] sm:$0xf]
    %v4290 = vld [vmem:[%s11 + $0x20] sm:$0xf]
    %v4291 = vld [vmem:[%s11 + $0x24] sm:$0xf]
    %v4292 = vld [vmem:[%s11 + $0x28] sm:$0xf]
    %v4293 = vld [vmem:[%s11 + $0x2c] sm:$0xf]
    %v4294 = vld [vmem:[%s11 + $0x30] sm:$0xf]
    %v4295 = vld [vmem:[%s11 + $0x34] sm:$0xf]
    %v4296 = vld [vmem:[%s11 + $0x38] sm:$0xf]
    %v4297 = vld [vmem:[%s11 + $0x3c] sm:$0xf]
    %v4298 = vld [vmem:[%s12] sm:$0x1]
    %v4300 = vperm.slane %v4298, 0
    %v4318 = vunpack.c.l.b16 %v4282
    %v4319 = vunpack.c.l.b16 %v4283
    %v4320 = vunpack.c.l.b16 %v4284
    %v4321 = vunpack.c.l.b16 %v4285
    %v4322 = vunpack.c.l.b16 %v4286
    %v4323 = vunpack.c.l.b16 %v4287
    %v4324 = vunpack.c.l.b16 %v4288
    %v4325 = vunpack.c.l.b16 %v4289
    %v4326 = vunpack.c.l.b16 %v4290
    %v4327 = vunpack.c.l.b16 %v4291
    %v4328 = vunpack.c.l.b16 %v4292
    %v4329 = vunpack.c.l.b16 %v4293
    %v4330 = vunpack.c.l.b16 %v4294
    %v4331 = vunpack.c.l.b16 %v4295
    %v4332 = vunpack.c.l.b16 %v4296
    %v4333 = vunpack.c.l.b16 %v4297
    %v4334 = vpack.c.b16 %v4319, %v4318
    %v4335 = vpack.c.b16 %v4321, %v4320
    %v4336 = vpack.c.b16 %v4323, %v4322
    %v4337 = vpack.c.b16 %v4325, %v4324
    %v4338 = vpack.c.b16 %v4327, %v4326
    %v4339 = vpack.c.b16 %v4329, %v4328
    %v4340 = vpack.c.b16 %v4331, %v4330
    %v4341 = vpack.c.b16 %v4333, %v4332
    %4350 = vmatpush.bf16.msra.mxu0 %v4341
    %4351 = vmatpush.bf16.msra.mxu0 %v4340
    %4352 = vmatpush.bf16.msra.mxu0 %v4339
    %4353 = vmatpush.bf16.msra.mxu0 %v4338
    %4354 = vmatpush.bf16.msra.mxu0 %v4337
    %4355 = vmatpush.bf16.msra.mxu0 %v4336
    %4356 = vmatpush.bf16.msra.mxu0 %v4335
    %4357 = vmatpush.bf16.msra.mxu0 %v4334
    %4358 = vmatmul.bf16.gmra.mxu0 %v4281
    %v4359 = vpop.f32.mrf.mxu0
    %v4360 = vadd.f32 %v4300, %v4359
    %v4361 = vpop.f32.mrf.mxu0
    %4362 = vdwg.mxu0
    %4363 = vst [vmem:[%s13] sm:$0xff] %v4360
    // Predicated region
    $region70: #{lstm_forward.1} parent=1 // pred_check
      _
    $region71: #{lstm_forward.1} parent=1 // pred_check_branch
      %4365 = sbr.rel (0) target = $region73
    $region72: #{lstm_forward.1} parent=1 // pred_region
      _
    $region73: #{lstm_forward.1} parent=1 // pred_fallthru
      _
    // Predicated region
    $region74: #{lstm_forward.1} parent=1 // pred_check
      _
    $region75: #{lstm_forward.1} parent=1 // pred_check_branch
      %4367 = sbr.rel (0) target = $region77
    $region76: #{lstm_forward.1} parent=1 // pred_region
      _
    $region77: #{lstm_forward.1} parent=1 // pred_fallthru
      _
    %4368 = vsyncpa [#allocation4], 1
    %4369 = vsyncpa [#allocation6], 1
    %4370 = vsyncpa [#allocation9], 1

</llo_original>
